<compile_context>
chip_gen: v7x
topology: tpu7x:2x2x1
jax: 0.10.0
libtpu: 0.0.40
codegen_flags: <defaults>
</compile_context>

<pallas_src>
import functools

import jax
import jax.numpy as jnp
from jax import lax
from jax.experimental import pallas as pl
from jax.experimental.pallas import tpu as pltpu


def _round_up(x, m):
    return ((x + m - 1) // m) * m


# ---------------------------------------------------------------------------
# Fused Pallas kernel
# ---------------------------------------------------------------------------

def _make_bilstm_kernel(T, B, H, num_layers, ihk):
    """Builds the fused BiLSTM+fc kernel (all shapes static).

    Ref order:
      inputs : x_pad (T*B, ihk) bf16        time-major, zero-padded features
               w_all (L, ihk+2H, 8H) bf16   rows [0:ihk) = fused W_ih (padded),
                                            rows [ihk:ihk+2H) = block-diag W_hh
               b_all (L, 8H) f32            fused b_ih + b_hh
               fc_w  (2H, O) bf16
               fc_b  (1, O) f32
      output : out   (B, O) f32
      scratch: xg    (T*B, 8H) f32          hoisted input-projection gates
               seq[] (T*B, 2H) f32          per-layer [fwd|rev] outputs (ping/pong)

    Fused gate-column layout (width 8H): [i_f i_r | f_f f_r | g_f g_r | o_f o_r];
    g columns were pre-scaled by 2 host-side so tanh(z) == 2*sigmoid(2z) - 1.
    """
    H2, H8 = 2 * H, 8 * H

    def kernel(x_ref, w_ref, b_ref, fcw_ref, fcb_ref, out_ref, xg_scr, *seq_scrs):
        # Hoisted lane masks over a (B, 8H) gates tile.
        lanes = lax.broadcasted_iota(jnp.int32, (B, H8), 1)
        g_mask = (lanes >= 4 * H) & (lanes < 6 * H)      # tanh ('g') gate columns
        fwd_mask = (lanes % H2) < H                      # fwd half of each gate

        seq_in = x_ref[...]                              # (T*B, ihk) bf16
        last_scr = seq_scrs[0]

        for l in range(num_layers):
            k_in = ihk if l == 0 else H2
            w_l = w_ref.at[l]                            # (ihk+2H, 8H) ref view
            w_ih = w_l[pl.ds(0, k_in), :]                # (k_in, 8H) bf16
            w_hh = w_l[pl.ds(ihk, H2), :]                # (2H, 8H) bf16, resident
            b_l = b_ref[pl.ds(l, 1), :]                  # (1, 8H) f32

            # Hoisted input projection for BOTH directions in one MXU matmul
            # (+ folded bias); row block t holds the gate inputs of time step t.
            xg_scr[...] = (jnp.dot(seq_in, w_ih,
                                   preferred_element_type=jnp.float32) + b_l)

            out_scr = seq_scrs[l % len(seq_scrs)]        # (T*B, 2H) f32
            last_scr = out_scr

            def step(s, carry, w_hh=w_hh, out_scr=out_scr):
                h, c = carry                             # (B, 2H) f32 registers
                row_f = pl.multiple_of(s * B, B)         # fwd processes time s
                row_r = pl.multiple_of((T - 1 - s) * B, B)   # rev: time T-1-s
                # fwd columns read time s, rev columns read time T-1-s.
                xg = jnp.where(fwd_mask,
                               xg_scr[pl.ds(row_f, B), :],
                               xg_scr[pl.ds(row_r, B), :])
                # Single block-diagonal recurrence matmul covers both directions.
                gates = xg + jnp.dot(h.astype(jnp.bfloat16), w_hh,
                                     preferred_element_type=jnp.float32)
                # One transcendental pass; g columns were pre-scaled by 2 so
                # 2*sigmoid(.) - 1 reproduces tanh of the original gate input.
                sg = jax.nn.sigmoid(gates)
                a = jnp.where(g_mask, 2.0 * sg - 1.0, sg)
                i_g = a[:, 0:H2]
                f_g = a[:, H2:2 * H2]
                g_g = a[:, 2 * H2:3 * H2]
                o_g = a[:, 3 * H2:4 * H2]
                c = f_g * c + i_g * g_g                  # (B, 2H), both dirs
                h = o_g * jnp.tanh(c)
                # fwd/rev halves land pre-concatenated in the shared buffer;
                # stores are off the serial h/c dependency chain.
                out_scr[pl.ds(row_f, B), pl.ds(0, H)] = h[:, 0:H]
                out_scr[pl.ds(row_r, B), pl.ds(H, H)] = h[:, H:H2]
                return h, c

            z = jnp.zeros((B, H2), jnp.float32)
            # Recurrence: h/c carried in registers; fully unrolled (T static)
            # so per-step work interleaves across the unrolled chain.
            lax.fori_loop(0, T, step, (z, z), unroll=True)

            if l + 1 < num_layers:
                seq_in = out_scr[...].astype(jnp.bfloat16)   # next layer input

        # fc head on out[:, -1, :]: rows [(T-1)*B, T*B) of the last layer hold
        # [fwd h at t=T-1 | rev h aligned to t=T-1] already concatenated.
        last = last_scr[pl.ds((T - 1) * B, B), :].astype(jnp.bfloat16)
        out_ref[...] = (jnp.dot(last, fcw_ref[...],
                                preferred_element_type=jnp.float32)
                        + fcb_ref[...]).astype(out_ref.dtype)

    return kernel


# ---------------------------------------------------------------------------
# Host-side packing + wrapper
# ---------------------------------------------------------------------------

def _interleave_gates(wf, wr, H):
    """(..., 4H) fwd + (..., 4H) rev -> (..., 8H) grouped [i_f i_r|f_f f_r|g_f g_r|o_f o_r]."""
    parts = []
    for k in range(4):
        parts.append(wf[..., k * H:(k + 1) * H])
        parts.append(wr[..., k * H:(k + 1) * H])
    return jnp.concatenate(parts, axis=-1)


@functools.partial(jax.jit, static_argnames=("hidden_size", "num_layers"))
def bilstm_forward(x, params, hidden_size, num_layers):
    """x: (B, T, input_size) f32  ->  (B, output_size) f32."""
    B, T, In = x.shape
    H = hidden_size
    H2, H8 = 2 * H, 8 * H
    ihk = _round_up(max(In, H2), 16)       # bf16 sublane-pack aligned K for W_ih

    # g-gate scale: 2x on fused columns [4H, 6H) so tanh(z) = 2*sigmoid(2z) - 1
    # costs nothing extra in the kernel.
    col = jnp.arange(H8)
    g_scale = jnp.where((col >= 4 * H) & (col < 6 * H), 2.0, 1.0).astype(jnp.float32)

    w_layers, b_layers = [], []
    for l in range(num_layers):
        in_l = In if l == 0 else H2
        pf, pr = params[f"l{l}_fwd"], params[f"l{l}_rev"]
        # Fused input-projection weights (in_l, 8H), zero-padded to ihk rows.
        w_ih = _interleave_gates(pf["w_ih"], pr["w_ih"], H) * g_scale
        w_ih = jnp.pad(w_ih, ((0, ihk - in_l), (0, 0)))
        # Block-diagonal fused recurrence weights (2H, 8H).
        top = _interleave_gates(pf["w_hh"], jnp.zeros_like(pr["w_hh"]), H)
        bot = _interleave_gates(jnp.zeros_like(pf["w_hh"]), pr["w_hh"], H)
        w_hh = jnp.concatenate([top, bot], axis=0) * g_scale
        w_layers.append(jnp.concatenate([w_ih, w_hh], axis=0))
        b_layers.append((_interleave_gates(pf["b"], pr["b"], H) * g_scale)[0])

    w_all = jnp.stack(w_layers).astype(jnp.bfloat16)          # (L, ihk+2H, 8H)
    b_all = jnp.stack(b_layers).astype(jnp.float32)           # (L, 8H)

    # Time-major rows [t*B, (t+1)*B) are time step t; features padded to ihk.
    x_pad = jnp.transpose(x, (1, 0, 2)).reshape(T * B, In)
    x_pad = jnp.pad(x_pad, ((0, 0), (0, ihk - In))).astype(jnp.bfloat16)

    fc_w = params["fc_w"].astype(jnp.bfloat16)
    fc_b = params["fc_b"].astype(jnp.float32)
    out_size = fc_w.shape[1]

    n_seq = 2 if num_layers > 1 else 1
    kernel = _make_bilstm_kernel(T, B, H, num_layers, ihk)

    # Single grid-less call: everything fits comfortably in VMEM on v5e/v6e/v7x
    # (<1 MiB total).  At larger T/B/H, store xg in bf16 / tile the projection
    # and set vmem_limit_bytes; at B>=16 on v7x add a batch grid with
    # dimension_semantics=("parallel",) to use the second TensorCore.
    return pl.pallas_call(
        kernel,
        out_shape=jax.ShapeDtypeStruct((B, out_size), jnp.float32),
        in_specs=[pl.BlockSpec(memory_space=pltpu.MemorySpace.VMEM)] * 5,
        out_specs=pl.BlockSpec(memory_space=pltpu.MemorySpace.VMEM),
        scratch_shapes=(
            [pltpu.VMEM((T * B, H8), jnp.float32)]            # fused gate proj
            + [pltpu.VMEM((T * B, H2), jnp.float32)] * n_seq  # layer outputs
        ),
    )(x_pad, w_all, b_all, fc_w, fc_b)


# ---------------------------------------------------------------------------
# Pure-JAX f32 reference (matches PyTorch nn.LSTM bidirectional + fc semantics)
# ---------------------------------------------------------------------------

def bilstm_reference(x, params, hidden_size, num_layers):
    B, T, In = x.shape
    H = hidden_size

    def lstm_dir(seq, p):                      # seq: (T, B, in) -> (T, B, H)
        def step(carry, xt):
            h, c = carry
            gates = xt @ p["w_ih"] + h @ p["w_hh"] + p["b"][0]
            i = jax.nn.sigmoid(gates[:, 0:H])
            f = jax.nn.sigmoid(gates[:, H:2 * H])
            g = jnp.tanh(gates[:, 2 * H:3 * H])
            o = jax.nn.sigmoid(gates[:, 3 * H:4 * H])
            c = f * c + i * g
            h = o * jnp.tanh(c)
            return (h, c), h

        z = jnp.zeros((B, H), jnp.float32)
        _, hs = lax.scan(step, (z, z), seq)
        return hs

    seq = jnp.transpose(x, (1, 0, 2))          # (T, B, In)
    for l in range(num_layers):
        hf = lstm_dir(seq, params[f"l{l}_fwd"])
        hr = lstm_dir(seq[::-1], params[f"l{l}_rev"])[::-1]
        seq = jnp.concatenate([hf, hr], axis=-1)
    return seq[-1] @ params["fc_w"] + params["fc_b"]


# ---------------------------------------------------------------------------
# Deterministic parameter init (PyTorch-style, uniform(-1/sqrt(H), 1/sqrt(H)))
# ---------------------------------------------------------------------------

def init_bilstm_params(key, input_size, hidden_size, num_layers, output_size):
    params = {}
    bound = 1.0 / jnp.sqrt(jnp.float32(hidden_size))

    def uni(k, shape, b):
        return jax.random.uniform(k, shape, jnp.float32, -b, b)

    for l in range(num_layers):
        in_l = input_size if l == 0 else 2 * hidden_size
        for dname in ("fwd", "rev"):
            key, k1, k2, k3, k4 = jax.random.split(key, 5)
            # PyTorch stores weight_ih (4H, in) / weight_hh (4H, H); kept
            # pre-transposed here for x @ W; gate column order is (i, f, g, o).
            w_ih = uni(k1, (in_l, 4 * hidden_size), bound)
            w_hh = uni(k2, (hidden_size, 4 * hidden_size), bound)
            b = (uni(k3, (1, 4 * hidden_size), bound)
                 + uni(k4, (1, 4 * hidden_size), bound))    # b_ih + b_hh
            params[f"l{l}_{dname}"] = {"w_ih": w_ih, "w_hh": w_hh, "b": b}

    key, k1, k2 = jax.random.split(key, 3)
    fc_bound = 1.0 / jnp.sqrt(jnp.float32(2 * hidden_size))
    params["fc_w"] = uni(k1, (2 * hidden_size, output_size), fc_bound)
    params["fc_b"] = uni(k2, (1, output_size), fc_bound)
    return params


# ---------------------------------------------------------------------------
# Main
# ---------------------------------------------------------------------------

if __name__ == "__main__":
    input_size = 8
    hidden_size = 32       # 2H = 64 state lanes, 8H = 256 fused gate lanes
    num_layers = 2
    output_size = 4
    batch = 8              # multiple of the 8-sublane tile for aligned row stores
    seq_len = 8

    key = jax.random.PRNGKey(0)
    key, kx, kp = jax.random.split(key, 3)

    x = jax.random.normal(kx, (batch, seq_len, input_size), jnp.float32)
    params = init_bilstm_params(kp, input_size, hidden_size, num_layers,
                                output_size)

    out = bilstm_forward(x, params, hidden_size, num_layers)
    out = jax.block_until_ready(out)
    assert out.shape == (batch, output_size), out.shape
    assert bool(jnp.all(jnp.isfinite(out)))

    # Validate against the f32 reference (bf16 MXU operands -> loose tolerance).
    ref = bilstm_reference(x, params, hidden_size, num_layers)
    assert bool(jnp.allclose(out, ref, atol=5e-2, rtol=5e-2)), (
        float(jnp.max(jnp.abs(out - ref))))
    print("KERNEL_OK")
</pallas_src>

<mosaic_0001>
module attributes {stable_mosaic.version = 11 : i64} {
  func.func @kernel(%arg0: memref<64x64xbf16, #tpu.memory_space<vmem>>, %arg1: memref<2x128x256xbf16, #tpu.memory_space<vmem>>, %arg2: memref<2x256xf32, #tpu.memory_space<vmem>>, %arg3: memref<64x4xbf16, #tpu.memory_space<vmem>>, %arg4: memref<1x4xf32, #tpu.memory_space<vmem>>, %arg5: memref<8x4xf32, #tpu.memory_space<vmem>>, %arg6: memref<64x256xf32, #tpu.memory_space<vmem>>, %arg7: memref<64x64xf32, #tpu.memory_space<vmem>>, %arg8: memref<64x64xf32, #tpu.memory_space<vmem>>) attributes {dimension_semantics = [], scalar_prefetch = 0 : i64, scratch_operands = 3 : i64, tpu.core_type = #tpu.core_type<tc>} {
    %0 = tpu.iota {dimensions = array<i32: 1>} : vector<8x256xi32>
    %c128_i32 = arith.constant 128 : i32
    %1 = vector.broadcast %c128_i32 : i32 to vector<8x256xi32>
    %2 = arith.cmpi sge, %0, %1 : vector<8x256xi32>
    %c192_i32 = arith.constant 192 : i32
    %3 = vector.broadcast %c192_i32 : i32 to vector<8x256xi32>
    %4 = arith.cmpi slt, %0, %3 : vector<8x256xi32>
    %5 = arith.andi %2, %4 : vector<8x256xi1>
    %c64_i32 = arith.constant 64 : i32
    %c0_i32 = arith.constant 0 : i32
    %6 = arith.cmpi eq, %c64_i32, %c0_i32 : i32
    %c1_i32 = arith.constant 1 : i32
    %7 = arith.select %6, %c1_i32, %c64_i32 : i32
    %8 = vector.broadcast %7 : i32 to vector<8x256xi32>
    %9 = arith.remsi %0, %8 : vector<8x256xi32>
    %c0_i32_0 = arith.constant 0 : i32
    %10 = vector.broadcast %c0_i32_0 : i32 to vector<8x256xi32>
    %11 = arith.cmpi ne, %9, %10 : vector<8x256xi32>
    %c0_i32_1 = arith.constant 0 : i32
    %12 = vector.broadcast %c0_i32_1 : i32 to vector<8x256xi32>
    %13 = arith.cmpi slt, %9, %12 : vector<8x256xi32>
    %c0_i32_2 = arith.constant 0 : i32
    %14 = arith.cmpi slt, %7, %c0_i32_2 : i32
    %15 = vector.broadcast %14 : i1 to vector<8x256xi1>
    %16 = vector.broadcast %15 : vector<8x256xi1> to vector<8x256xi1>
    %17 = arith.xori %13, %16 : vector<8x256xi1>
    %18 = arith.andi %17, %11 : vector<8x256xi1>
    %19 = vector.broadcast %7 : i32 to vector<8x256xi32>
    %20 = arith.addi %9, %19 : vector<8x256xi32>
    %21 = arith.select %18, %20, %9 : vector<8x256xi1>, vector<8x256xi32>
    %c32_i32 = arith.constant 32 : i32
    %22 = vector.broadcast %c32_i32 : i32 to vector<8x256xi32>
    %23 = arith.cmpi slt, %21, %22 : vector<8x256xi32>
    %c0 = arith.constant 0 : index
    %c0_3 = arith.constant 0 : index
    %24 = vector.load %arg0[%c0, %c0_3] : memref<64x64xbf16, #tpu.memory_space<vmem>>, vector<64x64xbf16>
    %c0_i32_4 = arith.constant 0 : i32
    %c0_i32_5 = arith.constant 0 : i32
    %c0_i32_6 = arith.constant 0 : i32
    %25 = tpu.memref_slice %arg1[%c0_i32_4, %c0_i32_5, %c0_i32_6] : memref<2x128x256xbf16, #tpu.memory_space<vmem>> -> memref<1x128x256xbf16, #tpu.memory_space<vmem>>
    %26 = tpu.memref_squeeze %25 : memref<1x128x256xbf16, #tpu.memory_space<vmem>> -> memref<128x256xbf16, #tpu.memory_space<vmem>>
    %c0_7 = arith.constant 0 : index
    %c0_8 = arith.constant 0 : index
    %27 = vector.load %26[%c0_7, %c0_8] : memref<128x256xbf16, #tpu.memory_space<vmem>>, vector<64x256xbf16>
    %c0_i32_9 = arith.constant 0 : i32
    %c0_i32_10 = arith.constant 0 : i32
    %c0_i32_11 = arith.constant 0 : i32
    %28 = tpu.memref_slice %arg1[%c0_i32_9, %c0_i32_10, %c0_i32_11] : memref<2x128x256xbf16, #tpu.memory_space<vmem>> -> memref<1x128x256xbf16, #tpu.memory_space<vmem>>
    %29 = tpu.memref_squeeze %28 : memref<1x128x256xbf16, #tpu.memory_space<vmem>> -> memref<128x256xbf16, #tpu.memory_space<vmem>>
    %c64 = arith.constant 64 : index
    %c0_12 = arith.constant 0 : index
    %30 = vector.load %29[%c64, %c0_12] : memref<128x256xbf16, #tpu.memory_space<vmem>>, vector<64x256xbf16>
    %c0_13 = arith.constant 0 : index
    %c0_14 = arith.constant 0 : index
    %31 = vector.load %arg2[%c0_13, %c0_14] : memref<2x256xf32, #tpu.memory_space<vmem>>, vector<1x256xf32>
    %cst = arith.constant dense<0.000000e+00> : vector<64x256xf32>
    %32 = tpu.matmul %24, %27, %cst {dimension_numbers = #tpu.dot_dimension_numbers<[1], [0], [0], [1], [0, 0, 1, 1], [], []>} : vector<64x64xbf16>, vector<64x256xbf16>, vector<64x256xf32> -> vector<64x256xf32>
    %33 = vector.broadcast %31 : vector<1x256xf32> to vector<64x256xf32>
    %34 = arith.addf %32, %33 : vector<64x256xf32>
    %c0_15 = arith.constant 0 : index
    %c0_16 = arith.constant 0 : index
    %35 = vector.load %arg6[%c0_15, %c0_16] : memref<64x256xf32, #tpu.memory_space<vmem>>, vector<64x256xf32>
    tpu.vector_store %arg6[%c0_15, %c0_16], %34 {strides = array<i32>} : memref<64x256xf32, #tpu.memory_space<vmem>>, vector<64x256xf32>,
    %cst_17 = arith.constant 0.000000e+00 : f32
    %36 = vector.broadcast %cst_17 : f32 to vector<8x64xf32>
    %c0_i32_18 = arith.constant 0 : i32
    %c8_i32 = arith.constant 8 : i32
    %37 = arith.muli %c0_i32_18, %c8_i32 : i32
    %38 = tpu.assume_multiple %37, 8 : i32
    %c7_i32 = arith.constant 7 : i32
    %39 = arith.subi %c7_i32, %c0_i32_18 : i32
    %c8_i32_19 = arith.constant 8 : i32
    %40 = arith.muli %39, %c8_i32_19 : i32
    %41 = tpu.assume_multiple %40, 8 : i32
    %42 = arith.index_cast %38 : i32 to index
    %c0_20 = arith.constant 0 : index
    %43 = vector.load %arg6[%42, %c0_20] : memref<64x256xf32, #tpu.memory_space<vmem>>, vector<8x256xf32>
    %44 = arith.index_cast %41 : i32 to index
    %c0_21 = arith.constant 0 : index
    %45 = vector.load %arg6[%44, %c0_21] : memref<64x256xf32, #tpu.memory_space<vmem>>, vector<8x256xf32>
    %46 = arith.select %23, %43, %45 : vector<8x256xi1>, vector<8x256xf32>
    %47 = arith.truncf %36 : vector<8x64xf32> to vector<8x64xbf16>
    %cst_22 = arith.constant dense<0.000000e+00> : vector<8x256xf32>
    %48 = tpu.matmul %47, %30, %cst_22 {dimension_numbers = #tpu.dot_dimension_numbers<[1], [0], [0], [1], [0, 0, 1, 1], [], []>} : vector<8x64xbf16>, vector<64x256xbf16>, vector<8x256xf32> -> vector<8x256xf32>
    %49 = arith.addf %46, %48 : vector<8x256xf32>
    %50 = arith.negf %49 : vector<8x256xf32>
    %51 = math.exp %50 : vector<8x256xf32>
    %cst_23 = arith.constant 1.000000e+00 : f32
    %52 = vector.broadcast %cst_23 : f32 to vector<8x256xf32>
    %53 = arith.addf %52, %51 : vector<8x256xf32>
    %54 = arith.divf %52, %53 : vector<8x256xf32>
    %cst_24 = arith.constant 2.000000e+00 : f32
    %55 = vector.broadcast %cst_24 : f32 to vector<8x256xf32>
    %56 = arith.mulf %55, %54 : vector<8x256xf32>
    %cst_25 = arith.constant 1.000000e+00 : f32
    %57 = vector.broadcast %cst_25 : f32 to vector<8x256xf32>
    %58 = arith.subf %56, %57 : vector<8x256xf32>
    %59 = arith.select %5, %58, %54 : vector<8x256xi1>, vector<8x256xf32>
    %60 = vector.extract_strided_slice %59 {offsets = [0, 0], sizes = [8, 64], strides = [1, 1]} : vector<8x256xf32> to vector<8x64xf32>
    %61 = vector.extract_strided_slice %59 {offsets = [0, 64], sizes = [8, 64], strides = [1, 1]} : vector<8x256xf32> to vector<8x64xf32>
    %62 = vector.extract_strided_slice %59 {offsets = [0, 128], sizes = [8, 64], strides = [1, 1]} : vector<8x256xf32> to vector<8x64xf32>
    %63 = vector.extract_strided_slice %59 {offsets = [0, 192], sizes = [8, 64], strides = [1, 1]} : vector<8x256xf32> to vector<8x64xf32>
    %64 = arith.mulf %61, %36 : vector<8x64xf32>
    %65 = arith.mulf %60, %62 : vector<8x64xf32>
    %66 = arith.addf %64, %65 : vector<8x64xf32>
    %67 = math.tanh %66 : vector<8x64xf32>
    %68 = arith.mulf %63, %67 : vector<8x64xf32>
    %69 = vector.extract_strided_slice %68 {offsets = [0, 0], sizes = [8, 32], strides = [1, 1]} : vector<8x64xf32> to vector<8x32xf32>
    %70 = arith.index_cast %38 : i32 to index
    %c0_26 = arith.constant 0 : index
    %71 = vector.load %arg7[%70, %c0_26] : memref<64x64xf32, #tpu.memory_space<vmem>>, vector<8x32xf32>
    tpu.vector_store %arg7[%70, %c0_26], %69 {strides = array<i32>} : memref<64x64xf32, #tpu.memory_space<vmem>>, vector<8x32xf32>,
    %72 = vector.extract_strided_slice %68 {offsets = [0, 32], sizes = [8, 32], strides = [1, 1]} : vector<8x64xf32> to vector<8x32xf32>
    %73 = arith.index_cast %41 : i32 to index
    %c32 = arith.constant 32 : index
    %74 = vector.load %arg7[%73, %c32] : memref<64x64xf32, #tpu.memory_space<vmem>>, vector<8x32xf32>
    tpu.vector_store %arg7[%73, %c32], %72 {strides = array<i32>} : memref<64x64xf32, #tpu.memory_space<vmem>>, vector<8x32xf32>,
    %c1_i32_27 = arith.constant 1 : i32
    %c8_i32_28 = arith.constant 8 : i32
    %75 = arith.muli %c1_i32_27, %c8_i32_28 : i32
    %76 = tpu.assume_multiple %75, 8 : i32
    %c7_i32_29 = arith.constant 7 : i32
    %77 = arith.subi %c7_i32_29, %c1_i32_27 : i32
    %c8_i32_30 = arith.constant 8 : i32
    %78 = arith.muli %77, %c8_i32_30 : i32
    %79 = tpu.assume_multiple %78, 8 : i32
    %80 = arith.index_cast %76 : i32 to index
    %c0_31 = arith.constant 0 : index
    %81 = vector.load %arg6[%80, %c0_31] : memref<64x256xf32, #tpu.memory_space<vmem>>, vector<8x256xf32>
    %82 = arith.index_cast %79 : i32 to index
    %c0_32 = arith.constant 0 : index
    %83 = vector.load %arg6[%82, %c0_32] : memref<64x256xf32, #tpu.memory_space<vmem>>, vector<8x256xf32>
    %84 = arith.select %23, %81, %83 : vector<8x256xi1>, vector<8x256xf32>
    %85 = arith.truncf %68 : vector<8x64xf32> to vector<8x64xbf16>
    %cst_33 = arith.constant dense<0.000000e+00> : vector<8x256xf32>
    %86 = tpu.matmul %85, %30, %cst_33 {dimension_numbers = #tpu.dot_dimension_numbers<[1], [0], [0], [1], [0, 0, 1, 1], [], []>} : vector<8x64xbf16>, vector<64x256xbf16>, vector<8x256xf32> -> vector<8x256xf32>
    %87 = arith.addf %84, %86 : vector<8x256xf32>
    %88 = arith.negf %87 : vector<8x256xf32>
    %89 = math.exp %88 : vector<8x256xf32>
    %cst_34 = arith.constant 1.000000e+00 : f32
    %90 = vector.broadcast %cst_34 : f32 to vector<8x256xf32>
    %91 = arith.addf %90, %89 : vector<8x256xf32>
    %92 = arith.divf %90, %91 : vector<8x256xf32>
    %cst_35 = arith.constant 2.000000e+00 : f32
    %93 = vector.broadcast %cst_35 : f32 to vector<8x256xf32>
    %94 = arith.mulf %93, %92 : vector<8x256xf32>
    %cst_36 = arith.constant 1.000000e+00 : f32
    %95 = vector.broadcast %cst_36 : f32 to vector<8x256xf32>
    %96 = arith.subf %94, %95 : vector<8x256xf32>
    %97 = arith.select %5, %96, %92 : vector<8x256xi1>, vector<8x256xf32>
    %98 = vector.extract_strided_slice %97 {offsets = [0, 0], sizes = [8, 64], strides = [1, 1]} : vector<8x256xf32> to vector<8x64xf32>
    %99 = vector.extract_strided_slice %97 {offsets = [0, 64], sizes = [8, 64], strides = [1, 1]} : vector<8x256xf32> to vector<8x64xf32>
    %100 = vector.extract_strided_slice %97 {offsets = [0, 128], sizes = [8, 64], strides = [1, 1]} : vector<8x256xf32> to vector<8x64xf32>
    %101 = vector.extract_strided_slice %97 {offsets = [0, 192], sizes = [8, 64], strides = [1, 1]} : vector<8x256xf32> to vector<8x64xf32>
    %102 = arith.mulf %99, %66 : vector<8x64xf32>
    %103 = arith.mulf %98, %100 : vector<8x64xf32>
    %104 = arith.addf %102, %103 : vector<8x64xf32>
    %105 = math.tanh %104 : vector<8x64xf32>
    %106 = arith.mulf %101, %105 : vector<8x64xf32>
    %107 = vector.extract_strided_slice %106 {offsets = [0, 0], sizes = [8, 32], strides = [1, 1]} : vector<8x64xf32> to vector<8x32xf32>
    %108 = arith.index_cast %76 : i32 to index
    %c0_37 = arith.constant 0 : index
    %109 = vector.load %arg7[%108, %c0_37] : memref<64x64xf32, #tpu.memory_space<vmem>>, vector<8x32xf32>
    tpu.vector_store %arg7[%108, %c0_37], %107 {strides = array<i32>} : memref<64x64xf32, #tpu.memory_space<vmem>>, vector<8x32xf32>,
    %110 = vector.extract_strided_slice %106 {offsets = [0, 32], sizes = [8, 32], strides = [1, 1]} : vector<8x64xf32> to vector<8x32xf32>
    %111 = arith.index_cast %79 : i32 to index
    %c32_38 = arith.constant 32 : index
    %112 = vector.load %arg7[%111, %c32_38] : memref<64x64xf32, #tpu.memory_space<vmem>>, vector<8x32xf32>
    tpu.vector_store %arg7[%111, %c32_38], %110 {strides = array<i32>} : memref<64x64xf32, #tpu.memory_space<vmem>>, vector<8x32xf32>,
    %c2_i32 = arith.constant 2 : i32
    %c8_i32_39 = arith.constant 8 : i32
    %113 = arith.muli %c2_i32, %c8_i32_39 : i32
    %114 = tpu.assume_multiple %113, 8 : i32
    %c7_i32_40 = arith.constant 7 : i32
    %115 = arith.subi %c7_i32_40, %c2_i32 : i32
    %c8_i32_41 = arith.constant 8 : i32
    %116 = arith.muli %115, %c8_i32_41 : i32
    %117 = tpu.assume_multiple %116, 8 : i32
    %118 = arith.index_cast %114 : i32 to index
    %c0_42 = arith.constant 0 : index
    %119 = vector.load %arg6[%118, %c0_42] : memref<64x256xf32, #tpu.memory_space<vmem>>, vector<8x256xf32>
    %120 = arith.index_cast %117 : i32 to index
    %c0_43 = arith.constant 0 : index
    %121 = vector.load %arg6[%120, %c0_43] : memref<64x256xf32, #tpu.memory_space<vmem>>, vector<8x256xf32>
    %122 = arith.select %23, %119, %121 : vector<8x256xi1>, vector<8x256xf32>
    %123 = arith.truncf %106 : vector<8x64xf32> to vector<8x64xbf16>
    %cst_44 = arith.constant dense<0.000000e+00> : vector<8x256xf32>
    %124 = tpu.matmul %123, %30, %cst_44 {dimension_numbers = #tpu.dot_dimension_numbers<[1], [0], [0], [1], [0, 0, 1, 1], [], []>} : vector<8x64xbf16>, vector<64x256xbf16>, vector<8x256xf32> -> vector<8x256xf32>
    %125 = arith.addf %122, %124 : vector<8x256xf32>
    %126 = arith.negf %125 : vector<8x256xf32>
    %127 = math.exp %126 : vector<8x256xf32>
    %cst_45 = arith.constant 1.000000e+00 : f32
    %128 = vector.broadcast %cst_45 : f32 to vector<8x256xf32>
    %129 = arith.addf %128, %127 : vector<8x256xf32>
    %130 = arith.divf %128, %129 : vector<8x256xf32>
    %cst_46 = arith.constant 2.000000e+00 : f32
    %131 = vector.broadcast %cst_46 : f32 to vector<8x256xf32>
    %132 = arith.mulf %131, %130 : vector<8x256xf32>
    %cst_47 = arith.constant 1.000000e+00 : f32
    %133 = vector.broadcast %cst_47 : f32 to vector<8x256xf32>
    %134 = arith.subf %132, %133 : vector<8x256xf32>
    %135 = arith.select %5, %134, %130 : vector<8x256xi1>, vector<8x256xf32>
    %136 = vector.extract_strided_slice %135 {offsets = [0, 0], sizes = [8, 64], strides = [1, 1]} : vector<8x256xf32> to vector<8x64xf32>
    %137 = vector.extract_strided_slice %135 {offsets = [0, 64], sizes = [8, 64], strides = [1, 1]} : vector<8x256xf32> to vector<8x64xf32>
    %138 = vector.extract_strided_slice %135 {offsets = [0, 128], sizes = [8, 64], strides = [1, 1]} : vector<8x256xf32> to vector<8x64xf32>
    %139 = vector.extract_strided_slice %135 {offsets = [0, 192], sizes = [8, 64], strides = [1, 1]} : vector<8x256xf32> to vector<8x64xf32>
    %140 = arith.mulf %137, %104 : vector<8x64xf32>
    %141 = arith.mulf %136, %138 : vector<8x64xf32>
    %142 = arith.addf %140, %141 : vector<8x64xf32>
    %143 = math.tanh %142 : vector<8x64xf32>
    %144 = arith.mulf %139, %143 : vector<8x64xf32>
    %145 = vector.extract_strided_slice %144 {offsets = [0, 0], sizes = [8, 32], strides = [1, 1]} : vector<8x64xf32> to vector<8x32xf32>
    %146 = arith.index_cast %114 : i32 to index
    %c0_48 = arith.constant 0 : index
    %147 = vector.load %arg7[%146, %c0_48] : memref<64x64xf32, #tpu.memory_space<vmem>>, vector<8x32xf32>
    tpu.vector_store %arg7[%146, %c0_48], %145 {strides = array<i32>} : memref<64x64xf32, #tpu.memory_space<vmem>>, vector<8x32xf32>,
    %148 = vector.extract_strided_slice %144 {offsets = [0, 32], sizes = [8, 32], strides = [1, 1]} : vector<8x64xf32> to vector<8x32xf32>
    %149 = arith.index_cast %117 : i32 to index
    %c32_49 = arith.constant 32 : index
    %150 = vector.load %arg7[%149, %c32_49] : memref<64x64xf32, #tpu.memory_space<vmem>>, vector<8x32xf32>
    tpu.vector_store %arg7[%149, %c32_49], %148 {strides = array<i32>} : memref<64x64xf32, #tpu.memory_space<vmem>>, vector<8x32xf32>,
    %c3_i32 = arith.constant 3 : i32
    %c8_i32_50 = arith.constant 8 : i32
    %151 = arith.muli %c3_i32, %c8_i32_50 : i32
    %152 = tpu.assume_multiple %151, 8 : i32
    %c7_i32_51 = arith.constant 7 : i32
    %153 = arith.subi %c7_i32_51, %c3_i32 : i32
    %c8_i32_52 = arith.constant 8 : i32
    %154 = arith.muli %153, %c8_i32_52 : i32
    %155 = tpu.assume_multiple %154, 8 : i32
    %156 = arith.index_cast %152 : i32 to index
    %c0_53 = arith.constant 0 : index
    %157 = vector.load %arg6[%156, %c0_53] : memref<64x256xf32, #tpu.memory_space<vmem>>, vector<8x256xf32>
    %158 = arith.index_cast %155 : i32 to index
    %c0_54 = arith.constant 0 : index
    %159 = vector.load %arg6[%158, %c0_54] : memref<64x256xf32, #tpu.memory_space<vmem>>, vector<8x256xf32>
    %160 = arith.select %23, %157, %159 : vector<8x256xi1>, vector<8x256xf32>
    %161 = arith.truncf %144 : vector<8x64xf32> to vector<8x64xbf16>
    %cst_55 = arith.constant dense<0.000000e+00> : vector<8x256xf32>
    %162 = tpu.matmul %161, %30, %cst_55 {dimension_numbers = #tpu.dot_dimension_numbers<[1], [0], [0], [1], [0, 0, 1, 1], [], []>} : vector<8x64xbf16>, vector<64x256xbf16>, vector<8x256xf32> -> vector<8x256xf32>
    %163 = arith.addf %160, %162 : vector<8x256xf32>
    %164 = arith.negf %163 : vector<8x256xf32>
    %165 = math.exp %164 : vector<8x256xf32>
    %cst_56 = arith.constant 1.000000e+00 : f32
    %166 = vector.broadcast %cst_56 : f32 to vector<8x256xf32>
    %167 = arith.addf %166, %165 : vector<8x256xf32>
    %168 = arith.divf %166, %167 : vector<8x256xf32>
    %cst_57 = arith.constant 2.000000e+00 : f32
    %169 = vector.broadcast %cst_57 : f32 to vector<8x256xf32>
    %170 = arith.mulf %169, %168 : vector<8x256xf32>
    %cst_58 = arith.constant 1.000000e+00 : f32
    %171 = vector.broadcast %cst_58 : f32 to vector<8x256xf32>
    %172 = arith.subf %170, %171 : vector<8x256xf32>
    %173 = arith.select %5, %172, %168 : vector<8x256xi1>, vector<8x256xf32>
    %174 = vector.extract_strided_slice %173 {offsets = [0, 0], sizes = [8, 64], strides = [1, 1]} : vector<8x256xf32> to vector<8x64xf32>
    %175 = vector.extract_strided_slice %173 {offsets = [0, 64], sizes = [8, 64], strides = [1, 1]} : vector<8x256xf32> to vector<8x64xf32>
    %176 = vector.extract_strided_slice %173 {offsets = [0, 128], sizes = [8, 64], strides = [1, 1]} : vector<8x256xf32> to vector<8x64xf32>
    %177 = vector.extract_strided_slice %173 {offsets = [0, 192], sizes = [8, 64], strides = [1, 1]} : vector<8x256xf32> to vector<8x64xf32>
    %178 = arith.mulf %175, %142 : vector<8x64xf32>
    %179 = arith.mulf %174, %176 : vector<8x64xf32>
    %180 = arith.addf %178, %179 : vector<8x64xf32>
    %181 = math.tanh %180 : vector<8x64xf32>
    %182 = arith.mulf %177, %181 : vector<8x64xf32>
    %183 = vector.extract_strided_slice %182 {offsets = [0, 0], sizes = [8, 32], strides = [1, 1]} : vector<8x64xf32> to vector<8x32xf32>
    %184 = arith.index_cast %152 : i32 to index
    %c0_59 = arith.constant 0 : index
    %185 = vector.load %arg7[%184, %c0_59] : memref<64x64xf32, #tpu.memory_space<vmem>>, vector<8x32xf32>
    tpu.vector_store %arg7[%184, %c0_59], %183 {strides = array<i32>} : memref<64x64xf32, #tpu.memory_space<vmem>>, vector<8x32xf32>,
    %186 = vector.extract_strided_slice %182 {offsets = [0, 32], sizes = [8, 32], strides = [1, 1]} : vector<8x64xf32> to vector<8x32xf32>
    %187 = arith.index_cast %155 : i32 to index
    %c32_60 = arith.constant 32 : index
    %188 = vector.load %arg7[%187, %c32_60] : memref<64x64xf32, #tpu.memory_space<vmem>>, vector<8x32xf32>
    tpu.vector_store %arg7[%187, %c32_60], %186 {strides = array<i32>} : memref<64x64xf32, #tpu.memory_space<vmem>>, vector<8x32xf32>,
    %c4_i32 = arith.constant 4 : i32
    %c8_i32_61 = arith.constant 8 : i32
    %189 = arith.muli %c4_i32, %c8_i32_61 : i32
    %190 = tpu.assume_multiple %189, 8 : i32
    %c7_i32_62 = arith.constant 7 : i32
    %191 = arith.subi %c7_i32_62, %c4_i32 : i32
    %c8_i32_63 = arith.constant 8 : i32
    %192 = arith.muli %191, %c8_i32_63 : i32
    %193 = tpu.assume_multiple %192, 8 : i32
    %194 = arith.index_cast %190 : i32 to index
    %c0_64 = arith.constant 0 : index
    %195 = vector.load %arg6[%194, %c0_64] : memref<64x256xf32, #tpu.memory_space<vmem>>, vector<8x256xf32>
    %196 = arith.index_cast %193 : i32 to index
    %c0_65 = arith.constant 0 : index
    %197 = vector.load %arg6[%196, %c0_65] : memref<64x256xf32, #tpu.memory_space<vmem>>, vector<8x256xf32>
    %198 = arith.select %23, %195, %197 : vector<8x256xi1>, vector<8x256xf32>
    %199 = arith.truncf %182 : vector<8x64xf32> to vector<8x64xbf16>
    %cst_66 = arith.constant dense<0.000000e+00> : vector<8x256xf32>
    %200 = tpu.matmul %199, %30, %cst_66 {dimension_numbers = #tpu.dot_dimension_numbers<[1], [0], [0], [1], [0, 0, 1, 1], [], []>} : vector<8x64xbf16>, vector<64x256xbf16>, vector<8x256xf32> -> vector<8x256xf32>
    %201 = arith.addf %198, %200 : vector<8x256xf32>
    %202 = arith.negf %201 : vector<8x256xf32>
    %203 = math.exp %202 : vector<8x256xf32>
    %cst_67 = arith.constant 1.000000e+00 : f32
    %204 = vector.broadcast %cst_67 : f32 to vector<8x256xf32>
    %205 = arith.addf %204, %203 : vector<8x256xf32>
    %206 = arith.divf %204, %205 : vector<8x256xf32>
    %cst_68 = arith.constant 2.000000e+00 : f32
    %207 = vector.broadcast %cst_68 : f32 to vector<8x256xf32>
    %208 = arith.mulf %207, %206 : vector<8x256xf32>
    %cst_69 = arith.constant 1.000000e+00 : f32
    %209 = vector.broadcast %cst_69 : f32 to vector<8x256xf32>
    %210 = arith.subf %208, %209 : vector<8x256xf32>
    %211 = arith.select %5, %210, %206 : vector<8x256xi1>, vector<8x256xf32>
    %212 = vector.extract_strided_slice %211 {offsets = [0, 0], sizes = [8, 64], strides = [1, 1]} : vector<8x256xf32> to vector<8x64xf32>
    %213 = vector.extract_strided_slice %211 {offsets = [0, 64], sizes = [8, 64], strides = [1, 1]} : vector<8x256xf32> to vector<8x64xf32>
    %214 = vector.extract_strided_slice %211 {offsets = [0, 128], sizes = [8, 64], strides = [1, 1]} : vector<8x256xf32> to vector<8x64xf32>
    %215 = vector.extract_strided_slice %211 {offsets = [0, 192], sizes = [8, 64], strides = [1, 1]} : vector<8x256xf32> to vector<8x64xf32>
    %216 = arith.mulf %213, %180 : vector<8x64xf32>
    %217 = arith.mulf %212, %214 : vector<8x64xf32>
    %218 = arith.addf %216, %217 : vector<8x64xf32>
    %219 = math.tanh %218 : vector<8x64xf32>
    %220 = arith.mulf %215, %219 : vector<8x64xf32>
    %221 = vector.extract_strided_slice %220 {offsets = [0, 0], sizes = [8, 32], strides = [1, 1]} : vector<8x64xf32> to vector<8x32xf32>
    %222 = arith.index_cast %190 : i32 to index
    %c0_70 = arith.constant 0 : index
    %223 = vector.load %arg7[%222, %c0_70] : memref<64x64xf32, #tpu.memory_space<vmem>>, vector<8x32xf32>
    tpu.vector_store %arg7[%222, %c0_70], %221 {strides = array<i32>} : memref<64x64xf32, #tpu.memory_space<vmem>>, vector<8x32xf32>,
    %224 = vector.extract_strided_slice %220 {offsets = [0, 32], sizes = [8, 32], strides = [1, 1]} : vector<8x64xf32> to vector<8x32xf32>
    %225 = arith.index_cast %193 : i32 to index
    %c32_71 = arith.constant 32 : index
    %226 = vector.load %arg7[%225, %c32_71] : memref<64x64xf32, #tpu.memory_space<vmem>>, vector<8x32xf32>
    tpu.vector_store %arg7[%225, %c32_71], %224 {strides = array<i32>} : memref<64x64xf32, #tpu.memory_space<vmem>>, vector<8x32xf32>,
    %c5_i32 = arith.constant 5 : i32
    %c8_i32_72 = arith.constant 8 : i32
    %227 = arith.muli %c5_i32, %c8_i32_72 : i32
    %228 = tpu.assume_multiple %227, 8 : i32
    %c7_i32_73 = arith.constant 7 : i32
    %229 = arith.subi %c7_i32_73, %c5_i32 : i32
    %c8_i32_74 = arith.constant 8 : i32
    %230 = arith.muli %229, %c8_i32_74 : i32
    %231 = tpu.assume_multiple %230, 8 : i32
    %232 = arith.index_cast %228 : i32 to index
    %c0_75 = arith.constant 0 : index
    %233 = vector.load %arg6[%232, %c0_75] : memref<64x256xf32, #tpu.memory_space<vmem>>, vector<8x256xf32>
    %234 = arith.index_cast %231 : i32 to index
    %c0_76 = arith.constant 0 : index
    %235 = vector.load %arg6[%234, %c0_76] : memref<64x256xf32, #tpu.memory_space<vmem>>, vector<8x256xf32>
    %236 = arith.select %23, %233, %235 : vector<8x256xi1>, vector<8x256xf32>
    %237 = arith.truncf %220 : vector<8x64xf32> to vector<8x64xbf16>
    %cst_77 = arith.constant dense<0.000000e+00> : vector<8x256xf32>
    %238 = tpu.matmul %237, %30, %cst_77 {dimension_numbers = #tpu.dot_dimension_numbers<[1], [0], [0], [1], [0, 0, 1, 1], [], []>} : vector<8x64xbf16>, vector<64x256xbf16>, vector<8x256xf32> -> vector<8x256xf32>
    %239 = arith.addf %236, %238 : vector<8x256xf32>
    %240 = arith.negf %239 : vector<8x256xf32>
    %241 = math.exp %240 : vector<8x256xf32>
    %cst_78 = arith.constant 1.000000e+00 : f32
    %242 = vector.broadcast %cst_78 : f32 to vector<8x256xf32>
    %243 = arith.addf %242, %241 : vector<8x256xf32>
    %244 = arith.divf %242, %243 : vector<8x256xf32>
    %cst_79 = arith.constant 2.000000e+00 : f32
    %245 = vector.broadcast %cst_79 : f32 to vector<8x256xf32>
    %246 = arith.mulf %245, %244 : vector<8x256xf32>
    %cst_80 = arith.constant 1.000000e+00 : f32
    %247 = vector.broadcast %cst_80 : f32 to vector<8x256xf32>
    %248 = arith.subf %246, %247 : vector<8x256xf32>
    %249 = arith.select %5, %248, %244 : vector<8x256xi1>, vector<8x256xf32>
    %250 = vector.extract_strided_slice %249 {offsets = [0, 0], sizes = [8, 64], strides = [1, 1]} : vector<8x256xf32> to vector<8x64xf32>
    %251 = vector.extract_strided_slice %249 {offsets = [0, 64], sizes = [8, 64], strides = [1, 1]} : vector<8x256xf32> to vector<8x64xf32>
    %252 = vector.extract_strided_slice %249 {offsets = [0, 128], sizes = [8, 64], strides = [1, 1]} : vector<8x256xf32> to vector<8x64xf32>
    %253 = vector.extract_strided_slice %249 {offsets = [0, 192], sizes = [8, 64], strides = [1, 1]} : vector<8x256xf32> to vector<8x64xf32>
    %254 = arith.mulf %251, %218 : vector<8x64xf32>
    %255 = arith.mulf %250, %252 : vector<8x64xf32>
    %256 = arith.addf %254, %255 : vector<8x64xf32>
    %257 = math.tanh %256 : vector<8x64xf32>
    %258 = arith.mulf %253, %257 : vector<8x64xf32>
    %259 = vector.extract_strided_slice %258 {offsets = [0, 0], sizes = [8, 32], strides = [1, 1]} : vector<8x64xf32> to vector<8x32xf32>
    %260 = arith.index_cast %228 : i32 to index
    %c0_81 = arith.constant 0 : index
    %261 = vector.load %arg7[%260, %c0_81] : memref<64x64xf32, #tpu.memory_space<vmem>>, vector<8x32xf32>
    tpu.vector_store %arg7[%260, %c0_81], %259 {strides = array<i32>} : memref<64x64xf32, #tpu.memory_space<vmem>>, vector<8x32xf32>,
    %262 = vector.extract_strided_slice %258 {offsets = [0, 32], sizes = [8, 32], strides = [1, 1]} : vector<8x64xf32> to vector<8x32xf32>
    %263 = arith.index_cast %231 : i32 to index
    %c32_82 = arith.constant 32 : index
    %264 = vector.load %arg7[%263, %c32_82] : memref<64x64xf32, #tpu.memory_space<vmem>>, vector<8x32xf32>
    tpu.vector_store %arg7[%263, %c32_82], %262 {strides = array<i32>} : memref<64x64xf32, #tpu.memory_space<vmem>>, vector<8x32xf32>,
    %c6_i32 = arith.constant 6 : i32
    %c8_i32_83 = arith.constant 8 : i32
    %265 = arith.muli %c6_i32, %c8_i32_83 : i32
    %266 = tpu.assume_multiple %265, 8 : i32
    %c7_i32_84 = arith.constant 7 : i32
    %267 = arith.subi %c7_i32_84, %c6_i32 : i32
    %c8_i32_85 = arith.constant 8 : i32
    %268 = arith.muli %267, %c8_i32_85 : i32
    %269 = tpu.assume_multiple %268, 8 : i32
    %270 = arith.index_cast %266 : i32 to index
    %c0_86 = arith.constant 0 : index
    %271 = vector.load %arg6[%270, %c0_86] : memref<64x256xf32, #tpu.memory_space<vmem>>, vector<8x256xf32>
    %272 = arith.index_cast %269 : i32 to index
    %c0_87 = arith.constant 0 : index
    %273 = vector.load %arg6[%272, %c0_87] : memref<64x256xf32, #tpu.memory_space<vmem>>, vector<8x256xf32>
    %274 = arith.select %23, %271, %273 : vector<8x256xi1>, vector<8x256xf32>
    %275 = arith.truncf %258 : vector<8x64xf32> to vector<8x64xbf16>
    %cst_88 = arith.constant dense<0.000000e+00> : vector<8x256xf32>
    %276 = tpu.matmul %275, %30, %cst_88 {dimension_numbers = #tpu.dot_dimension_numbers<[1], [0], [0], [1], [0, 0, 1, 1], [], []>} : vector<8x64xbf16>, vector<64x256xbf16>, vector<8x256xf32> -> vector<8x256xf32>
    %277 = arith.addf %274, %276 : vector<8x256xf32>
    %278 = arith.negf %277 : vector<8x256xf32>
    %279 = math.exp %278 : vector<8x256xf32>
    %cst_89 = arith.constant 1.000000e+00 : f32
    %280 = vector.broadcast %cst_89 : f32 to vector<8x256xf32>
    %281 = arith.addf %280, %279 : vector<8x256xf32>
    %282 = arith.divf %280, %281 : vector<8x256xf32>
    %cst_90 = arith.constant 2.000000e+00 : f32
    %283 = vector.broadcast %cst_90 : f32 to vector<8x256xf32>
    %284 = arith.mulf %283, %282 : vector<8x256xf32>
    %cst_91 = arith.constant 1.000000e+00 : f32
    %285 = vector.broadcast %cst_91 : f32 to vector<8x256xf32>
    %286 = arith.subf %284, %285 : vector<8x256xf32>
    %287 = arith.select %5, %286, %282 : vector<8x256xi1>, vector<8x256xf32>
    %288 = vector.extract_strided_slice %287 {offsets = [0, 0], sizes = [8, 64], strides = [1, 1]} : vector<8x256xf32> to vector<8x64xf32>
    %289 = vector.extract_strided_slice %287 {offsets = [0, 64], sizes = [8, 64], strides = [1, 1]} : vector<8x256xf32> to vector<8x64xf32>
    %290 = vector.extract_strided_slice %287 {offsets = [0, 128], sizes = [8, 64], strides = [1, 1]} : vector<8x256xf32> to vector<8x64xf32>
    %291 = vector.extract_strided_slice %287 {offsets = [0, 192], sizes = [8, 64], strides = [1, 1]} : vector<8x256xf32> to vector<8x64xf32>
    %292 = arith.mulf %289, %256 : vector<8x64xf32>
    %293 = arith.mulf %288, %290 : vector<8x64xf32>
    %294 = arith.addf %292, %293 : vector<8x64xf32>
    %295 = math.tanh %294 : vector<8x64xf32>
    %296 = arith.mulf %291, %295 : vector<8x64xf32>
    %297 = vector.extract_strided_slice %296 {offsets = [0, 0], sizes = [8, 32], strides = [1, 1]} : vector<8x64xf32> to vector<8x32xf32>
    %298 = arith.index_cast %266 : i32 to index
    %c0_92 = arith.constant 0 : index
    %299 = vector.load %arg7[%298, %c0_92] : memref<64x64xf32, #tpu.memory_space<vmem>>, vector<8x32xf32>
    tpu.vector_store %arg7[%298, %c0_92], %297 {strides = array<i32>} : memref<64x64xf32, #tpu.memory_space<vmem>>, vector<8x32xf32>,
    %300 = vector.extract_strided_slice %296 {offsets = [0, 32], sizes = [8, 32], strides = [1, 1]} : vector<8x64xf32> to vector<8x32xf32>
    %301 = arith.index_cast %269 : i32 to index
    %c32_93 = arith.constant 32 : index
    %302 = vector.load %arg7[%301, %c32_93] : memref<64x64xf32, #tpu.memory_space<vmem>>, vector<8x32xf32>
    tpu.vector_store %arg7[%301, %c32_93], %300 {strides = array<i32>} : memref<64x64xf32, #tpu.memory_space<vmem>>, vector<8x32xf32>,
    %c7_i32_94 = arith.constant 7 : i32
    %c8_i32_95 = arith.constant 8 : i32
    %303 = arith.muli %c7_i32_94, %c8_i32_95 : i32
    %304 = tpu.assume_multiple %303, 8 : i32
    %c7_i32_96 = arith.constant 7 : i32
    %305 = arith.subi %c7_i32_96, %c7_i32_94 : i32
    %c8_i32_97 = arith.constant 8 : i32
    %306 = arith.muli %305, %c8_i32_97 : i32
    %307 = tpu.assume_multiple %306, 8 : i32
    %308 = arith.index_cast %304 : i32 to index
    %c0_98 = arith.constant 0 : index
    %309 = vector.load %arg6[%308, %c0_98] : memref<64x256xf32, #tpu.memory_space<vmem>>, vector<8x256xf32>
    %310 = arith.index_cast %307 : i32 to index
    %c0_99 = arith.constant 0 : index
    %311 = vector.load %arg6[%310, %c0_99] : memref<64x256xf32, #tpu.memory_space<vmem>>, vector<8x256xf32>
    %312 = arith.select %23, %309, %311 : vector<8x256xi1>, vector<8x256xf32>
    %313 = arith.truncf %296 : vector<8x64xf32> to vector<8x64xbf16>
    %cst_100 = arith.constant dense<0.000000e+00> : vector<8x256xf32>
    %314 = tpu.matmul %313, %30, %cst_100 {dimension_numbers = #tpu.dot_dimension_numbers<[1], [0], [0], [1], [0, 0, 1, 1], [], []>} : vector<8x64xbf16>, vector<64x256xbf16>, vector<8x256xf32> -> vector<8x256xf32>
    %315 = arith.addf %312, %314 : vector<8x256xf32>
    %316 = arith.negf %315 : vector<8x256xf32>
    %317 = math.exp %316 : vector<8x256xf32>
    %cst_101 = arith.constant 1.000000e+00 : f32
    %318 = vector.broadcast %cst_101 : f32 to vector<8x256xf32>
    %319 = arith.addf %318, %317 : vector<8x256xf32>
    %320 = arith.divf %318, %319 : vector<8x256xf32>
    %cst_102 = arith.constant 2.000000e+00 : f32
    %321 = vector.broadcast %cst_102 : f32 to vector<8x256xf32>
    %322 = arith.mulf %321, %320 : vector<8x256xf32>
    %cst_103 = arith.constant 1.000000e+00 : f32
    %323 = vector.broadcast %cst_103 : f32 to vector<8x256xf32>
    %324 = arith.subf %322, %323 : vector<8x256xf32>
    %325 = arith.select %5, %324, %320 : vector<8x256xi1>, vector<8x256xf32>
    %326 = vector.extract_strided_slice %325 {offsets = [0, 0], sizes = [8, 64], strides = [1, 1]} : vector<8x256xf32> to vector<8x64xf32>
    %327 = vector.extract_strided_slice %325 {offsets = [0, 64], sizes = [8, 64], strides = [1, 1]} : vector<8x256xf32> to vector<8x64xf32>
    %328 = vector.extract_strided_slice %325 {offsets = [0, 128], sizes = [8, 64], strides = [1, 1]} : vector<8x256xf32> to vector<8x64xf32>
    %329 = vector.extract_strided_slice %325 {offsets = [0, 192], sizes = [8, 64], strides = [1, 1]} : vector<8x256xf32> to vector<8x64xf32>
    %330 = arith.mulf %327, %294 : vector<8x64xf32>
    %331 = arith.mulf %326, %328 : vector<8x64xf32>
    %332 = arith.addf %330, %331 : vector<8x64xf32>
    %333 = math.tanh %332 : vector<8x64xf32>
    %334 = arith.mulf %329, %333 : vector<8x64xf32>
    %335 = vector.extract_strided_slice %334 {offsets = [0, 0], sizes = [8, 32], strides = [1, 1]} : vector<8x64xf32> to vector<8x32xf32>
    %336 = arith.index_cast %304 : i32 to index
    %c0_104 = arith.constant 0 : index
    %337 = vector.load %arg7[%336, %c0_104] : memref<64x64xf32, #tpu.memory_space<vmem>>, vector<8x32xf32>
    tpu.vector_store %arg7[%336, %c0_104], %335 {strides = array<i32>} : memref<64x64xf32, #tpu.memory_space<vmem>>, vector<8x32xf32>,
    %338 = vector.extract_strided_slice %334 {offsets = [0, 32], sizes = [8, 32], strides = [1, 1]} : vector<8x64xf32> to vector<8x32xf32>
    %339 = arith.index_cast %307 : i32 to index
    %c32_105 = arith.constant 32 : index
    %340 = vector.load %arg7[%339, %c32_105] : memref<64x64xf32, #tpu.memory_space<vmem>>, vector<8x32xf32>
    tpu.vector_store %arg7[%339, %c32_105], %338 {strides = array<i32>} : memref<64x64xf32, #tpu.memory_space<vmem>>, vector<8x32xf32>,
    %c8_i32_106 = arith.constant 8 : i32
    %c0_107 = arith.constant 0 : index
    %c0_108 = arith.constant 0 : index
    %341 = vector.load %arg7[%c0_107, %c0_108] : memref<64x64xf32, #tpu.memory_space<vmem>>, vector<64x64xf32>
    %342 = arith.truncf %341 : vector<64x64xf32> to vector<64x64xbf16>
    %c1_i32_109 = arith.constant 1 : i32
    %c0_i32_110 = arith.constant 0 : i32
    %c0_i32_111 = arith.constant 0 : i32
    %343 = tpu.memref_slice %arg1[%c1_i32_109, %c0_i32_110, %c0_i32_111] : memref<2x128x256xbf16, #tpu.memory_space<vmem>> -> memref<1x128x256xbf16, #tpu.memory_space<vmem>>
    %344 = tpu.memref_squeeze %343 : memref<1x128x256xbf16, #tpu.memory_space<vmem>> -> memref<128x256xbf16, #tpu.memory_space<vmem>>
    %c0_112 = arith.constant 0 : index
    %c0_113 = arith.constant 0 : index
    %345 = vector.load %344[%c0_112, %c0_113] : memref<128x256xbf16, #tpu.memory_space<vmem>>, vector<64x256xbf16>
    %c1_i32_114 = arith.constant 1 : i32
    %c0_i32_115 = arith.constant 0 : i32
    %c0_i32_116 = arith.constant 0 : i32
    %346 = tpu.memref_slice %arg1[%c1_i32_114, %c0_i32_115, %c0_i32_116] : memref<2x128x256xbf16, #tpu.memory_space<vmem>> -> memref<1x128x256xbf16, #tpu.memory_space<vmem>>
    %347 = tpu.memref_squeeze %346 : memref<1x128x256xbf16, #tpu.memory_space<vmem>> -> memref<128x256xbf16, #tpu.memory_space<vmem>>
    %c64_117 = arith.constant 64 : index
    %c0_118 = arith.constant 0 : index
    %348 = vector.load %347[%c64_117, %c0_118] : memref<128x256xbf16, #tpu.memory_space<vmem>>, vector<64x256xbf16>
    %c1 = arith.constant 1 : index
    %c0_119 = arith.constant 0 : index
    %349 = vector.load %arg2[%c1, %c0_119] : memref<2x256xf32, #tpu.memory_space<vmem>>, vector<1x256xf32>
    %cst_120 = arith.constant dense<0.000000e+00> : vector<64x256xf32>
    %350 = tpu.matmul %342, %345, %cst_120 {dimension_numbers = #tpu.dot_dimension_numbers<[1], [0], [0], [1], [0, 0, 1, 1], [], []>} : vector<64x64xbf16>, vector<64x256xbf16>, vector<64x256xf32> -> vector<64x256xf32>
    %351 = vector.broadcast %349 : vector<1x256xf32> to vector<64x256xf32>
    %352 = arith.addf %350, %351 : vector<64x256xf32>
    %c0_121 = arith.constant 0 : index
    %c0_122 = arith.constant 0 : index
    %353 = vector.load %arg6[%c0_121, %c0_122] : memref<64x256xf32, #tpu.memory_space<vmem>>, vector<64x256xf32>
    tpu.vector_store %arg6[%c0_121, %c0_122], %352 {strides = array<i32>} : memref<64x256xf32, #tpu.memory_space<vmem>>, vector<64x256xf32>,
    %cst_123 = arith.constant 0.000000e+00 : f32
    %354 = vector.broadcast %cst_123 : f32 to vector<8x64xf32>
    %c0_i32_124 = arith.constant 0 : i32
    %c8_i32_125 = arith.constant 8 : i32
    %355 = arith.muli %c0_i32_124, %c8_i32_125 : i32
    %356 = tpu.assume_multiple %355, 8 : i32
    %c7_i32_126 = arith.constant 7 : i32
    %357 = arith.subi %c7_i32_126, %c0_i32_124 : i32
    %c8_i32_127 = arith.constant 8 : i32
    %358 = arith.muli %357, %c8_i32_127 : i32
    %359 = tpu.assume_multiple %358, 8 : i32
    %360 = arith.index_cast %356 : i32 to index
    %c0_128 = arith.constant 0 : index
    %361 = vector.load %arg6[%360, %c0_128] : memref<64x256xf32, #tpu.memory_space<vmem>>, vector<8x256xf32>
    %362 = arith.index_cast %359 : i32 to index
    %c0_129 = arith.constant 0 : index
    %363 = vector.load %arg6[%362, %c0_129] : memref<64x256xf32, #tpu.memory_space<vmem>>, vector<8x256xf32>
    %364 = arith.select %23, %361, %363 : vector<8x256xi1>, vector<8x256xf32>
    %365 = arith.truncf %354 : vector<8x64xf32> to vector<8x64xbf16>
    %cst_130 = arith.constant dense<0.000000e+00> : vector<8x256xf32>
    %366 = tpu.matmul %365, %348, %cst_130 {dimension_numbers = #tpu.dot_dimension_numbers<[1], [0], [0], [1], [0, 0, 1, 1], [], []>} : vector<8x64xbf16>, vector<64x256xbf16>, vector<8x256xf32> -> vector<8x256xf32>
    %367 = arith.addf %364, %366 : vector<8x256xf32>
    %368 = arith.negf %367 : vector<8x256xf32>
    %369 = math.exp %368 : vector<8x256xf32>
    %cst_131 = arith.constant 1.000000e+00 : f32
    %370 = vector.broadcast %cst_131 : f32 to vector<8x256xf32>
    %371 = arith.addf %370, %369 : vector<8x256xf32>
    %372 = arith.divf %370, %371 : vector<8x256xf32>
    %cst_132 = arith.constant 2.000000e+00 : f32
    %373 = vector.broadcast %cst_132 : f32 to vector<8x256xf32>
    %374 = arith.mulf %373, %372 : vector<8x256xf32>
    %cst_133 = arith.constant 1.000000e+00 : f32
    %375 = vector.broadcast %cst_133 : f32 to vector<8x256xf32>
    %376 = arith.subf %374, %375 : vector<8x256xf32>
    %377 = arith.select %5, %376, %372 : vector<8x256xi1>, vector<8x256xf32>
    %378 = vector.extract_strided_slice %377 {offsets = [0, 0], sizes = [8, 64], strides = [1, 1]} : vector<8x256xf32> to vector<8x64xf32>
    %379 = vector.extract_strided_slice %377 {offsets = [0, 64], sizes = [8, 64], strides = [1, 1]} : vector<8x256xf32> to vector<8x64xf32>
    %380 = vector.extract_strided_slice %377 {offsets = [0, 128], sizes = [8, 64], strides = [1, 1]} : vector<8x256xf32> to vector<8x64xf32>
    %381 = vector.extract_strided_slice %377 {offsets = [0, 192], sizes = [8, 64], strides = [1, 1]} : vector<8x256xf32> to vector<8x64xf32>
    %382 = arith.mulf %379, %354 : vector<8x64xf32>
    %383 = arith.mulf %378, %380 : vector<8x64xf32>
    %384 = arith.addf %382, %383 : vector<8x64xf32>
    %385 = math.tanh %384 : vector<8x64xf32>
    %386 = arith.mulf %381, %385 : vector<8x64xf32>
    %387 = vector.extract_strided_slice %386 {offsets = [0, 0], sizes = [8, 32], strides = [1, 1]} : vector<8x64xf32> to vector<8x32xf32>
    %388 = arith.index_cast %356 : i32 to index
    %c0_134 = arith.constant 0 : index
    %389 = vector.load %arg8[%388, %c0_134] : memref<64x64xf32, #tpu.memory_space<vmem>>, vector<8x32xf32>
    tpu.vector_store %arg8[%388, %c0_134], %387 {strides = array<i32>} : memref<64x64xf32, #tpu.memory_space<vmem>>, vector<8x32xf32>,
    %390 = vector.extract_strided_slice %386 {offsets = [0, 32], sizes = [8, 32], strides = [1, 1]} : vector<8x64xf32> to vector<8x32xf32>
    %391 = arith.index_cast %359 : i32 to index
    %c32_135 = arith.constant 32 : index
    %392 = vector.load %arg8[%391, %c32_135] : memref<64x64xf32, #tpu.memory_space<vmem>>, vector<8x32xf32>
    tpu.vector_store %arg8[%391, %c32_135], %390 {strides = array<i32>} : memref<64x64xf32, #tpu.memory_space<vmem>>, vector<8x32xf32>,
    %c1_i32_136 = arith.constant 1 : i32
    %c8_i32_137 = arith.constant 8 : i32
    %393 = arith.muli %c1_i32_136, %c8_i32_137 : i32
    %394 = tpu.assume_multiple %393, 8 : i32
    %c7_i32_138 = arith.constant 7 : i32
    %395 = arith.subi %c7_i32_138, %c1_i32_136 : i32
    %c8_i32_139 = arith.constant 8 : i32
    %396 = arith.muli %395, %c8_i32_139 : i32
    %397 = tpu.assume_multiple %396, 8 : i32
    %398 = arith.index_cast %394 : i32 to index
    %c0_140 = arith.constant 0 : index
    %399 = vector.load %arg6[%398, %c0_140] : memref<64x256xf32, #tpu.memory_space<vmem>>, vector<8x256xf32>
    %400 = arith.index_cast %397 : i32 to index
    %c0_141 = arith.constant 0 : index
    %401 = vector.load %arg6[%400, %c0_141] : memref<64x256xf32, #tpu.memory_space<vmem>>, vector<8x256xf32>
    %402 = arith.select %23, %399, %401 : vector<8x256xi1>, vector<8x256xf32>
    %403 = arith.truncf %386 : vector<8x64xf32> to vector<8x64xbf16>
    %cst_142 = arith.constant dense<0.000000e+00> : vector<8x256xf32>
    %404 = tpu.matmul %403, %348, %cst_142 {dimension_numbers = #tpu.dot_dimension_numbers<[1], [0], [0], [1], [0, 0, 1, 1], [], []>} : vector<8x64xbf16>, vector<64x256xbf16>, vector<8x256xf32> -> vector<8x256xf32>
    %405 = arith.addf %402, %404 : vector<8x256xf32>
    %406 = arith.negf %405 : vector<8x256xf32>
    %407 = math.exp %406 : vector<8x256xf32>
    %cst_143 = arith.constant 1.000000e+00 : f32
    %408 = vector.broadcast %cst_143 : f32 to vector<8x256xf32>
    %409 = arith.addf %408, %407 : vector<8x256xf32>
    %410 = arith.divf %408, %409 : vector<8x256xf32>
    %cst_144 = arith.constant 2.000000e+00 : f32
    %411 = vector.broadcast %cst_144 : f32 to vector<8x256xf32>
    %412 = arith.mulf %411, %410 : vector<8x256xf32>
    %cst_145 = arith.constant 1.000000e+00 : f32
    %413 = vector.broadcast %cst_145 : f32 to vector<8x256xf32>
    %414 = arith.subf %412, %413 : vector<8x256xf32>
    %415 = arith.select %5, %414, %410 : vector<8x256xi1>, vector<8x256xf32>
    %416 = vector.extract_strided_slice %415 {offsets = [0, 0], sizes = [8, 64], strides = [1, 1]} : vector<8x256xf32> to vector<8x64xf32>
    %417 = vector.extract_strided_slice %415 {offsets = [0, 64], sizes = [8, 64], strides = [1, 1]} : vector<8x256xf32> to vector<8x64xf32>
    %418 = vector.extract_strided_slice %415 {offsets = [0, 128], sizes = [8, 64], strides = [1, 1]} : vector<8x256xf32> to vector<8x64xf32>
    %419 = vector.extract_strided_slice %415 {offsets = [0, 192], sizes = [8, 64], strides = [1, 1]} : vector<8x256xf32> to vector<8x64xf32>
    %420 = arith.mulf %417, %384 : vector<8x64xf32>
    %421 = arith.mulf %416, %418 : vector<8x64xf32>
    %422 = arith.addf %420, %421 : vector<8x64xf32>
    %423 = math.tanh %422 : vector<8x64xf32>
    %424 = arith.mulf %419, %423 : vector<8x64xf32>
    %425 = vector.extract_strided_slice %424 {offsets = [0, 0], sizes = [8, 32], strides = [1, 1]} : vector<8x64xf32> to vector<8x32xf32>
    %426 = arith.index_cast %394 : i32 to index
    %c0_146 = arith.constant 0 : index
    %427 = vector.load %arg8[%426, %c0_146] : memref<64x64xf32, #tpu.memory_space<vmem>>, vector<8x32xf32>
    tpu.vector_store %arg8[%426, %c0_146], %425 {strides = array<i32>} : memref<64x64xf32, #tpu.memory_space<vmem>>, vector<8x32xf32>,
    %428 = vector.extract_strided_slice %424 {offsets = [0, 32], sizes = [8, 32], strides = [1, 1]} : vector<8x64xf32> to vector<8x32xf32>
    %429 = arith.index_cast %397 : i32 to index
    %c32_147 = arith.constant 32 : index
    %430 = vector.load %arg8[%429, %c32_147] : memref<64x64xf32, #tpu.memory_space<vmem>>, vector<8x32xf32>
    tpu.vector_store %arg8[%429, %c32_147], %428 {strides = array<i32>} : memref<64x64xf32, #tpu.memory_space<vmem>>, vector<8x32xf32>,
    %c2_i32_148 = arith.constant 2 : i32
    %c8_i32_149 = arith.constant 8 : i32
    %431 = arith.muli %c2_i32_148, %c8_i32_149 : i32
    %432 = tpu.assume_multiple %431, 8 : i32
    %c7_i32_150 = arith.constant 7 : i32
    %433 = arith.subi %c7_i32_150, %c2_i32_148 : i32
    %c8_i32_151 = arith.constant 8 : i32
    %434 = arith.muli %433, %c8_i32_151 : i32
    %435 = tpu.assume_multiple %434, 8 : i32
    %436 = arith.index_cast %432 : i32 to index
    %c0_152 = arith.constant 0 : index
    %437 = vector.load %arg6[%436, %c0_152] : memref<64x256xf32, #tpu.memory_space<vmem>>, vector<8x256xf32>
    %438 = arith.index_cast %435 : i32 to index
    %c0_153 = arith.constant 0 : index
    %439 = vector.load %arg6[%438, %c0_153] : memref<64x256xf32, #tpu.memory_space<vmem>>, vector<8x256xf32>
    %440 = arith.select %23, %437, %439 : vector<8x256xi1>, vector<8x256xf32>
    %441 = arith.truncf %424 : vector<8x64xf32> to vector<8x64xbf16>
    %cst_154 = arith.constant dense<0.000000e+00> : vector<8x256xf32>
    %442 = tpu.matmul %441, %348, %cst_154 {dimension_numbers = #tpu.dot_dimension_numbers<[1], [0], [0], [1], [0, 0, 1, 1], [], []>} : vector<8x64xbf16>, vector<64x256xbf16>, vector<8x256xf32> -> vector<8x256xf32>
    %443 = arith.addf %440, %442 : vector<8x256xf32>
    %444 = arith.negf %443 : vector<8x256xf32>
    %445 = math.exp %444 : vector<8x256xf32>
    %cst_155 = arith.constant 1.000000e+00 : f32
    %446 = vector.broadcast %cst_155 : f32 to vector<8x256xf32>
    %447 = arith.addf %446, %445 : vector<8x256xf32>
    %448 = arith.divf %446, %447 : vector<8x256xf32>
    %cst_156 = arith.constant 2.000000e+00 : f32
    %449 = vector.broadcast %cst_156 : f32 to vector<8x256xf32>
    %450 = arith.mulf %449, %448 : vector<8x256xf32>
    %cst_157 = arith.constant 1.000000e+00 : f32
    %451 = vector.broadcast %cst_157 : f32 to vector<8x256xf32>
    %452 = arith.subf %450, %451 : vector<8x256xf32>
    %453 = arith.select %5, %452, %448 : vector<8x256xi1>, vector<8x256xf32>
    %454 = vector.extract_strided_slice %453 {offsets = [0, 0], sizes = [8, 64], strides = [1, 1]} : vector<8x256xf32> to vector<8x64xf32>
    %455 = vector.extract_strided_slice %453 {offsets = [0, 64], sizes = [8, 64], strides = [1, 1]} : vector<8x256xf32> to vector<8x64xf32>
    %456 = vector.extract_strided_slice %453 {offsets = [0, 128], sizes = [8, 64], strides = [1, 1]} : vector<8x256xf32> to vector<8x64xf32>
    %457 = vector.extract_strided_slice %453 {offsets = [0, 192], sizes = [8, 64], strides = [1, 1]} : vector<8x256xf32> to vector<8x64xf32>
    %458 = arith.mulf %455, %422 : vector<8x64xf32>
    %459 = arith.mulf %454, %456 : vector<8x64xf32>
    %460 = arith.addf %458, %459 : vector<8x64xf32>
    %461 = math.tanh %460 : vector<8x64xf32>
    %462 = arith.mulf %457, %461 : vector<8x64xf32>
    %463 = vector.extract_strided_slice %462 {offsets = [0, 0], sizes = [8, 32], strides = [1, 1]} : vector<8x64xf32> to vector<8x32xf32>
    %464 = arith.index_cast %432 : i32 to index
    %c0_158 = arith.constant 0 : index
    %465 = vector.load %arg8[%464, %c0_158] : memref<64x64xf32, #tpu.memory_space<vmem>>, vector<8x32xf32>
    tpu.vector_store %arg8[%464, %c0_158], %463 {strides = array<i32>} : memref<64x64xf32, #tpu.memory_space<vmem>>, vector<8x32xf32>,
    %466 = vector.extract_strided_slice %462 {offsets = [0, 32], sizes = [8, 32], strides = [1, 1]} : vector<8x64xf32> to vector<8x32xf32>
    %467 = arith.index_cast %435 : i32 to index
    %c32_159 = arith.constant 32 : index
    %468 = vector.load %arg8[%467, %c32_159] : memref<64x64xf32, #tpu.memory_space<vmem>>, vector<8x32xf32>
    tpu.vector_store %arg8[%467, %c32_159], %466 {strides = array<i32>} : memref<64x64xf32, #tpu.memory_space<vmem>>, vector<8x32xf32>,
    %c3_i32_160 = arith.constant 3 : i32
    %c8_i32_161 = arith.constant 8 : i32
    %469 = arith.muli %c3_i32_160, %c8_i32_161 : i32
    %470 = tpu.assume_multiple %469, 8 : i32
    %c7_i32_162 = arith.constant 7 : i32
    %471 = arith.subi %c7_i32_162, %c3_i32_160 : i32
    %c8_i32_163 = arith.constant 8 : i32
    %472 = arith.muli %471, %c8_i32_163 : i32
    %473 = tpu.assume_multiple %472, 8 : i32
    %474 = arith.index_cast %470 : i32 to index
    %c0_164 = arith.constant 0 : index
    %475 = vector.load %arg6[%474, %c0_164] : memref<64x256xf32, #tpu.memory_space<vmem>>, vector<8x256xf32>
    %476 = arith.index_cast %473 : i32 to index
    %c0_165 = arith.constant 0 : index
    %477 = vector.load %arg6[%476, %c0_165] : memref<64x256xf32, #tpu.memory_space<vmem>>, vector<8x256xf32>
    %478 = arith.select %23, %475, %477 : vector<8x256xi1>, vector<8x256xf32>
    %479 = arith.truncf %462 : vector<8x64xf32> to vector<8x64xbf16>
    %cst_166 = arith.constant dense<0.000000e+00> : vector<8x256xf32>
    %480 = tpu.matmul %479, %348, %cst_166 {dimension_numbers = #tpu.dot_dimension_numbers<[1], [0], [0], [1], [0, 0, 1, 1], [], []>} : vector<8x64xbf16>, vector<64x256xbf16>, vector<8x256xf32> -> vector<8x256xf32>
    %481 = arith.addf %478, %480 : vector<8x256xf32>
    %482 = arith.negf %481 : vector<8x256xf32>
    %483 = math.exp %482 : vector<8x256xf32>
    %cst_167 = arith.constant 1.000000e+00 : f32
    %484 = vector.broadcast %cst_167 : f32 to vector<8x256xf32>
    %485 = arith.addf %484, %483 : vector<8x256xf32>
    %486 = arith.divf %484, %485 : vector<8x256xf32>
    %cst_168 = arith.constant 2.000000e+00 : f32
    %487 = vector.broadcast %cst_168 : f32 to vector<8x256xf32>
    %488 = arith.mulf %487, %486 : vector<8x256xf32>
    %cst_169 = arith.constant 1.000000e+00 : f32
    %489 = vector.broadcast %cst_169 : f32 to vector<8x256xf32>
    %490 = arith.subf %488, %489 : vector<8x256xf32>
    %491 = arith.select %5, %490, %486 : vector<8x256xi1>, vector<8x256xf32>
    %492 = vector.extract_strided_slice %491 {offsets = [0, 0], sizes = [8, 64], strides = [1, 1]} : vector<8x256xf32> to vector<8x64xf32>
    %493 = vector.extract_strided_slice %491 {offsets = [0, 64], sizes = [8, 64], strides = [1, 1]} : vector<8x256xf32> to vector<8x64xf32>
    %494 = vector.extract_strided_slice %491 {offsets = [0, 128], sizes = [8, 64], strides = [1, 1]} : vector<8x256xf32> to vector<8x64xf32>
    %495 = vector.extract_strided_slice %491 {offsets = [0, 192], sizes = [8, 64], strides = [1, 1]} : vector<8x256xf32> to vector<8x64xf32>
    %496 = arith.mulf %493, %460 : vector<8x64xf32>
    %497 = arith.mulf %492, %494 : vector<8x64xf32>
    %498 = arith.addf %496, %497 : vector<8x64xf32>
    %499 = math.tanh %498 : vector<8x64xf32>
    %500 = arith.mulf %495, %499 : vector<8x64xf32>
    %501 = vector.extract_strided_slice %500 {offsets = [0, 0], sizes = [8, 32], strides = [1, 1]} : vector<8x64xf32> to vector<8x32xf32>
    %502 = arith.index_cast %470 : i32 to index
    %c0_170 = arith.constant 0 : index
    %503 = vector.load %arg8[%502, %c0_170] : memref<64x64xf32, #tpu.memory_space<vmem>>, vector<8x32xf32>
    tpu.vector_store %arg8[%502, %c0_170], %501 {strides = array<i32>} : memref<64x64xf32, #tpu.memory_space<vmem>>, vector<8x32xf32>,
    %504 = vector.extract_strided_slice %500 {offsets = [0, 32], sizes = [8, 32], strides = [1, 1]} : vector<8x64xf32> to vector<8x32xf32>
    %505 = arith.index_cast %473 : i32 to index
    %c32_171 = arith.constant 32 : index
    %506 = vector.load %arg8[%505, %c32_171] : memref<64x64xf32, #tpu.memory_space<vmem>>, vector<8x32xf32>
    tpu.vector_store %arg8[%505, %c32_171], %504 {strides = array<i32>} : memref<64x64xf32, #tpu.memory_space<vmem>>, vector<8x32xf32>,
    %c4_i32_172 = arith.constant 4 : i32
    %c8_i32_173 = arith.constant 8 : i32
    %507 = arith.muli %c4_i32_172, %c8_i32_173 : i32
    %508 = tpu.assume_multiple %507, 8 : i32
    %c7_i32_174 = arith.constant 7 : i32
    %509 = arith.subi %c7_i32_174, %c4_i32_172 : i32
    %c8_i32_175 = arith.constant 8 : i32
    %510 = arith.muli %509, %c8_i32_175 : i32
    %511 = tpu.assume_multiple %510, 8 : i32
    %512 = arith.index_cast %508 : i32 to index
    %c0_176 = arith.constant 0 : index
    %513 = vector.load %arg6[%512, %c0_176] : memref<64x256xf32, #tpu.memory_space<vmem>>, vector<8x256xf32>
    %514 = arith.index_cast %511 : i32 to index
    %c0_177 = arith.constant 0 : index
    %515 = vector.load %arg6[%514, %c0_177] : memref<64x256xf32, #tpu.memory_space<vmem>>, vector<8x256xf32>
    %516 = arith.select %23, %513, %515 : vector<8x256xi1>, vector<8x256xf32>
    %517 = arith.truncf %500 : vector<8x64xf32> to vector<8x64xbf16>
    %cst_178 = arith.constant dense<0.000000e+00> : vector<8x256xf32>
    %518 = tpu.matmul %517, %348, %cst_178 {dimension_numbers = #tpu.dot_dimension_numbers<[1], [0], [0], [1], [0, 0, 1, 1], [], []>} : vector<8x64xbf16>, vector<64x256xbf16>, vector<8x256xf32> -> vector<8x256xf32>
    %519 = arith.addf %516, %518 : vector<8x256xf32>
    %520 = arith.negf %519 : vector<8x256xf32>
    %521 = math.exp %520 : vector<8x256xf32>
    %cst_179 = arith.constant 1.000000e+00 : f32
    %522 = vector.broadcast %cst_179 : f32 to vector<8x256xf32>
    %523 = arith.addf %522, %521 : vector<8x256xf32>
    %524 = arith.divf %522, %523 : vector<8x256xf32>
    %cst_180 = arith.constant 2.000000e+00 : f32
    %525 = vector.broadcast %cst_180 : f32 to vector<8x256xf32>
    %526 = arith.mulf %525, %524 : vector<8x256xf32>
    %cst_181 = arith.constant 1.000000e+00 : f32
    %527 = vector.broadcast %cst_181 : f32 to vector<8x256xf32>
    %528 = arith.subf %526, %527 : vector<8x256xf32>
    %529 = arith.select %5, %528, %524 : vector<8x256xi1>, vector<8x256xf32>
    %530 = vector.extract_strided_slice %529 {offsets = [0, 0], sizes = [8, 64], strides = [1, 1]} : vector<8x256xf32> to vector<8x64xf32>
    %531 = vector.extract_strided_slice %529 {offsets = [0, 64], sizes = [8, 64], strides = [1, 1]} : vector<8x256xf32> to vector<8x64xf32>
    %532 = vector.extract_strided_slice %529 {offsets = [0, 128], sizes = [8, 64], strides = [1, 1]} : vector<8x256xf32> to vector<8x64xf32>
    %533 = vector.extract_strided_slice %529 {offsets = [0, 192], sizes = [8, 64], strides = [1, 1]} : vector<8x256xf32> to vector<8x64xf32>
    %534 = arith.mulf %531, %498 : vector<8x64xf32>
    %535 = arith.mulf %530, %532 : vector<8x64xf32>
    %536 = arith.addf %534, %535 : vector<8x64xf32>
    %537 = math.tanh %536 : vector<8x64xf32>
    %538 = arith.mulf %533, %537 : vector<8x64xf32>
    %539 = vector.extract_strided_slice %538 {offsets = [0, 0], sizes = [8, 32], strides = [1, 1]} : vector<8x64xf32> to vector<8x32xf32>
    %540 = arith.index_cast %508 : i32 to index
    %c0_182 = arith.constant 0 : index
    %541 = vector.load %arg8[%540, %c0_182] : memref<64x64xf32, #tpu.memory_space<vmem>>, vector<8x32xf32>
    tpu.vector_store %arg8[%540, %c0_182], %539 {strides = array<i32>} : memref<64x64xf32, #tpu.memory_space<vmem>>, vector<8x32xf32>,
    %542 = vector.extract_strided_slice %538 {offsets = [0, 32], sizes = [8, 32], strides = [1, 1]} : vector<8x64xf32> to vector<8x32xf32>
    %543 = arith.index_cast %511 : i32 to index
    %c32_183 = arith.constant 32 : index
    %544 = vector.load %arg8[%543, %c32_183] : memref<64x64xf32, #tpu.memory_space<vmem>>, vector<8x32xf32>
    tpu.vector_store %arg8[%543, %c32_183], %542 {strides = array<i32>} : memref<64x64xf32, #tpu.memory_space<vmem>>, vector<8x32xf32>,
    %c5_i32_184 = arith.constant 5 : i32
    %c8_i32_185 = arith.constant 8 : i32
    %545 = arith.muli %c5_i32_184, %c8_i32_185 : i32
    %546 = tpu.assume_multiple %545, 8 : i32
    %c7_i32_186 = arith.constant 7 : i32
    %547 = arith.subi %c7_i32_186, %c5_i32_184 : i32
    %c8_i32_187 = arith.constant 8 : i32
    %548 = arith.muli %547, %c8_i32_187 : i32
    %549 = tpu.assume_multiple %548, 8 : i32
    %550 = arith.index_cast %546 : i32 to index
    %c0_188 = arith.constant 0 : index
    %551 = vector.load %arg6[%550, %c0_188] : memref<64x256xf32, #tpu.memory_space<vmem>>, vector<8x256xf32>
    %552 = arith.index_cast %549 : i32 to index
    %c0_189 = arith.constant 0 : index
    %553 = vector.load %arg6[%552, %c0_189] : memref<64x256xf32, #tpu.memory_space<vmem>>, vector<8x256xf32>
    %554 = arith.select %23, %551, %553 : vector<8x256xi1>, vector<8x256xf32>
    %555 = arith.truncf %538 : vector<8x64xf32> to vector<8x64xbf16>
    %cst_190 = arith.constant dense<0.000000e+00> : vector<8x256xf32>
    %556 = tpu.matmul %555, %348, %cst_190 {dimension_numbers = #tpu.dot_dimension_numbers<[1], [0], [0], [1], [0, 0, 1, 1], [], []>} : vector<8x64xbf16>, vector<64x256xbf16>, vector<8x256xf32> -> vector<8x256xf32>
    %557 = arith.addf %554, %556 : vector<8x256xf32>
    %558 = arith.negf %557 : vector<8x256xf32>
    %559 = math.exp %558 : vector<8x256xf32>
    %cst_191 = arith.constant 1.000000e+00 : f32
    %560 = vector.broadcast %cst_191 : f32 to vector<8x256xf32>
    %561 = arith.addf %560, %559 : vector<8x256xf32>
    %562 = arith.divf %560, %561 : vector<8x256xf32>
    %cst_192 = arith.constant 2.000000e+00 : f32
    %563 = vector.broadcast %cst_192 : f32 to vector<8x256xf32>
    %564 = arith.mulf %563, %562 : vector<8x256xf32>
    %cst_193 = arith.constant 1.000000e+00 : f32
    %565 = vector.broadcast %cst_193 : f32 to vector<8x256xf32>
    %566 = arith.subf %564, %565 : vector<8x256xf32>
    %567 = arith.select %5, %566, %562 : vector<8x256xi1>, vector<8x256xf32>
    %568 = vector.extract_strided_slice %567 {offsets = [0, 0], sizes = [8, 64], strides = [1, 1]} : vector<8x256xf32> to vector<8x64xf32>
    %569 = vector.extract_strided_slice %567 {offsets = [0, 64], sizes = [8, 64], strides = [1, 1]} : vector<8x256xf32> to vector<8x64xf32>
    %570 = vector.extract_strided_slice %567 {offsets = [0, 128], sizes = [8, 64], strides = [1, 1]} : vector<8x256xf32> to vector<8x64xf32>
    %571 = vector.extract_strided_slice %567 {offsets = [0, 192], sizes = [8, 64], strides = [1, 1]} : vector<8x256xf32> to vector<8x64xf32>
    %572 = arith.mulf %569, %536 : vector<8x64xf32>
    %573 = arith.mulf %568, %570 : vector<8x64xf32>
    %574 = arith.addf %572, %573 : vector<8x64xf32>
    %575 = math.tanh %574 : vector<8x64xf32>
    %576 = arith.mulf %571, %575 : vector<8x64xf32>
    %577 = vector.extract_strided_slice %576 {offsets = [0, 0], sizes = [8, 32], strides = [1, 1]} : vector<8x64xf32> to vector<8x32xf32>
    %578 = arith.index_cast %546 : i32 to index
    %c0_194 = arith.constant 0 : index
    %579 = vector.load %arg8[%578, %c0_194] : memref<64x64xf32, #tpu.memory_space<vmem>>, vector<8x32xf32>
    tpu.vector_store %arg8[%578, %c0_194], %577 {strides = array<i32>} : memref<64x64xf32, #tpu.memory_space<vmem>>, vector<8x32xf32>,
    %580 = vector.extract_strided_slice %576 {offsets = [0, 32], sizes = [8, 32], strides = [1, 1]} : vector<8x64xf32> to vector<8x32xf32>
    %581 = arith.index_cast %549 : i32 to index
    %c32_195 = arith.constant 32 : index
    %582 = vector.load %arg8[%581, %c32_195] : memref<64x64xf32, #tpu.memory_space<vmem>>, vector<8x32xf32>
    tpu.vector_store %arg8[%581, %c32_195], %580 {strides = array<i32>} : memref<64x64xf32, #tpu.memory_space<vmem>>, vector<8x32xf32>,
    %c6_i32_196 = arith.constant 6 : i32
    %c8_i32_197 = arith.constant 8 : i32
    %583 = arith.muli %c6_i32_196, %c8_i32_197 : i32
    %584 = tpu.assume_multiple %583, 8 : i32
    %c7_i32_198 = arith.constant 7 : i32
    %585 = arith.subi %c7_i32_198, %c6_i32_196 : i32
    %c8_i32_199 = arith.constant 8 : i32
    %586 = arith.muli %585, %c8_i32_199 : i32
    %587 = tpu.assume_multiple %586, 8 : i32
    %588 = arith.index_cast %584 : i32 to index
    %c0_200 = arith.constant 0 : index
    %589 = vector.load %arg6[%588, %c0_200] : memref<64x256xf32, #tpu.memory_space<vmem>>, vector<8x256xf32>
    %590 = arith.index_cast %587 : i32 to index
    %c0_201 = arith.constant 0 : index
    %591 = vector.load %arg6[%590, %c0_201] : memref<64x256xf32, #tpu.memory_space<vmem>>, vector<8x256xf32>
    %592 = arith.select %23, %589, %591 : vector<8x256xi1>, vector<8x256xf32>
    %593 = arith.truncf %576 : vector<8x64xf32> to vector<8x64xbf16>
    %cst_202 = arith.constant dense<0.000000e+00> : vector<8x256xf32>
    %594 = tpu.matmul %593, %348, %cst_202 {dimension_numbers = #tpu.dot_dimension_numbers<[1], [0], [0], [1], [0, 0, 1, 1], [], []>} : vector<8x64xbf16>, vector<64x256xbf16>, vector<8x256xf32> -> vector<8x256xf32>
    %595 = arith.addf %592, %594 : vector<8x256xf32>
    %596 = arith.negf %595 : vector<8x256xf32>
    %597 = math.exp %596 : vector<8x256xf32>
    %cst_203 = arith.constant 1.000000e+00 : f32
    %598 = vector.broadcast %cst_203 : f32 to vector<8x256xf32>
    %599 = arith.addf %598, %597 : vector<8x256xf32>
    %600 = arith.divf %598, %599 : vector<8x256xf32>
    %cst_204 = arith.constant 2.000000e+00 : f32
    %601 = vector.broadcast %cst_204 : f32 to vector<8x256xf32>
    %602 = arith.mulf %601, %600 : vector<8x256xf32>
    %cst_205 = arith.constant 1.000000e+00 : f32
    %603 = vector.broadcast %cst_205 : f32 to vector<8x256xf32>
    %604 = arith.subf %602, %603 : vector<8x256xf32>
    %605 = arith.select %5, %604, %600 : vector<8x256xi1>, vector<8x256xf32>
    %606 = vector.extract_strided_slice %605 {offsets = [0, 0], sizes = [8, 64], strides = [1, 1]} : vector<8x256xf32> to vector<8x64xf32>
    %607 = vector.extract_strided_slice %605 {offsets = [0, 64], sizes = [8, 64], strides = [1, 1]} : vector<8x256xf32> to vector<8x64xf32>
    %608 = vector.extract_strided_slice %605 {offsets = [0, 128], sizes = [8, 64], strides = [1, 1]} : vector<8x256xf32> to vector<8x64xf32>
    %609 = vector.extract_strided_slice %605 {offsets = [0, 192], sizes = [8, 64], strides = [1, 1]} : vector<8x256xf32> to vector<8x64xf32>
    %610 = arith.mulf %607, %574 : vector<8x64xf32>
    %611 = arith.mulf %606, %608 : vector<8x64xf32>
    %612 = arith.addf %610, %611 : vector<8x64xf32>
    %613 = math.tanh %612 : vector<8x64xf32>
    %614 = arith.mulf %609, %613 : vector<8x64xf32>
    %615 = vector.extract_strided_slice %614 {offsets = [0, 0], sizes = [8, 32], strides = [1, 1]} : vector<8x64xf32> to vector<8x32xf32>
    %616 = arith.index_cast %584 : i32 to index
    %c0_206 = arith.constant 0 : index
    %617 = vector.load %arg8[%616, %c0_206] : memref<64x64xf32, #tpu.memory_space<vmem>>, vector<8x32xf32>
    tpu.vector_store %arg8[%616, %c0_206], %615 {strides = array<i32>} : memref<64x64xf32, #tpu.memory_space<vmem>>, vector<8x32xf32>,
    %618 = vector.extract_strided_slice %614 {offsets = [0, 32], sizes = [8, 32], strides = [1, 1]} : vector<8x64xf32> to vector<8x32xf32>
    %619 = arith.index_cast %587 : i32 to index
    %c32_207 = arith.constant 32 : index
    %620 = vector.load %arg8[%619, %c32_207] : memref<64x64xf32, #tpu.memory_space<vmem>>, vector<8x32xf32>
    tpu.vector_store %arg8[%619, %c32_207], %618 {strides = array<i32>} : memref<64x64xf32, #tpu.memory_space<vmem>>, vector<8x32xf32>,
    %c7_i32_208 = arith.constant 7 : i32
    %c8_i32_209 = arith.constant 8 : i32
    %621 = arith.muli %c7_i32_208, %c8_i32_209 : i32
    %622 = tpu.assume_multiple %621, 8 : i32
    %c7_i32_210 = arith.constant 7 : i32
    %623 = arith.subi %c7_i32_210, %c7_i32_208 : i32
    %c8_i32_211 = arith.constant 8 : i32
    %624 = arith.muli %623, %c8_i32_211 : i32
    %625 = tpu.assume_multiple %624, 8 : i32
    %626 = arith.index_cast %622 : i32 to index
    %c0_212 = arith.constant 0 : index
    %627 = vector.load %arg6[%626, %c0_212] : memref<64x256xf32, #tpu.memory_space<vmem>>, vector<8x256xf32>
    %628 = arith.index_cast %625 : i32 to index
    %c0_213 = arith.constant 0 : index
    %629 = vector.load %arg6[%628, %c0_213] : memref<64x256xf32, #tpu.memory_space<vmem>>, vector<8x256xf32>
    %630 = arith.select %23, %627, %629 : vector<8x256xi1>, vector<8x256xf32>
    %631 = arith.truncf %614 : vector<8x64xf32> to vector<8x64xbf16>
    %cst_214 = arith.constant dense<0.000000e+00> : vector<8x256xf32>
    %632 = tpu.matmul %631, %348, %cst_214 {dimension_numbers = #tpu.dot_dimension_numbers<[1], [0], [0], [1], [0, 0, 1, 1], [], []>} : vector<8x64xbf16>, vector<64x256xbf16>, vector<8x256xf32> -> vector<8x256xf32>
    %633 = arith.addf %630, %632 : vector<8x256xf32>
    %634 = arith.negf %633 : vector<8x256xf32>
    %635 = math.exp %634 : vector<8x256xf32>
    %cst_215 = arith.constant 1.000000e+00 : f32
    %636 = vector.broadcast %cst_215 : f32 to vector<8x256xf32>
    %637 = arith.addf %636, %635 : vector<8x256xf32>
    %638 = arith.divf %636, %637 : vector<8x256xf32>
    %cst_216 = arith.constant 2.000000e+00 : f32
    %639 = vector.broadcast %cst_216 : f32 to vector<8x256xf32>
    %640 = arith.mulf %639, %638 : vector<8x256xf32>
    %cst_217 = arith.constant 1.000000e+00 : f32
    %641 = vector.broadcast %cst_217 : f32 to vector<8x256xf32>
    %642 = arith.subf %640, %641 : vector<8x256xf32>
    %643 = arith.select %5, %642, %638 : vector<8x256xi1>, vector<8x256xf32>
    %644 = vector.extract_strided_slice %643 {offsets = [0, 0], sizes = [8, 64], strides = [1, 1]} : vector<8x256xf32> to vector<8x64xf32>
    %645 = vector.extract_strided_slice %643 {offsets = [0, 64], sizes = [8, 64], strides = [1, 1]} : vector<8x256xf32> to vector<8x64xf32>
    %646 = vector.extract_strided_slice %643 {offsets = [0, 128], sizes = [8, 64], strides = [1, 1]} : vector<8x256xf32> to vector<8x64xf32>
    %647 = vector.extract_strided_slice %643 {offsets = [0, 192], sizes = [8, 64], strides = [1, 1]} : vector<8x256xf32> to vector<8x64xf32>
    %648 = arith.mulf %645, %612 : vector<8x64xf32>
    %649 = arith.mulf %644, %646 : vector<8x64xf32>
    %650 = arith.addf %648, %649 : vector<8x64xf32>
    %651 = math.tanh %650 : vector<8x64xf32>
    %652 = arith.mulf %647, %651 : vector<8x64xf32>
    %653 = vector.extract_strided_slice %652 {offsets = [0, 0], sizes = [8, 32], strides = [1, 1]} : vector<8x64xf32> to vector<8x32xf32>
    %654 = arith.index_cast %622 : i32 to index
    %c0_218 = arith.constant 0 : index
    %655 = vector.load %arg8[%654, %c0_218] : memref<64x64xf32, #tpu.memory_space<vmem>>, vector<8x32xf32>
    tpu.vector_store %arg8[%654, %c0_218], %653 {strides = array<i32>} : memref<64x64xf32, #tpu.memory_space<vmem>>, vector<8x32xf32>,
    %656 = vector.extract_strided_slice %652 {offsets = [0, 32], sizes = [8, 32], strides = [1, 1]} : vector<8x64xf32> to vector<8x32xf32>
    %657 = arith.index_cast %625 : i32 to index
    %c32_219 = arith.constant 32 : index
    %658 = vector.load %arg8[%657, %c32_219] : memref<64x64xf32, #tpu.memory_space<vmem>>, vector<8x32xf32>
    tpu.vector_store %arg8[%657, %c32_219], %656 {strides = array<i32>} : memref<64x64xf32, #tpu.memory_space<vmem>>, vector<8x32xf32>,
    %c8_i32_220 = arith.constant 8 : i32
    %c56 = arith.constant 56 : index
    %c0_221 = arith.constant 0 : index
    %659 = vector.load %arg8[%c56, %c0_221] : memref<64x64xf32, #tpu.memory_space<vmem>>, vector<8x64xf32>
    %660 = arith.truncf %659 : vector<8x64xf32> to vector<8x64xbf16>
    %c0_222 = arith.constant 0 : index
    %c0_223 = arith.constant 0 : index
    %661 = vector.load %arg3[%c0_222, %c0_223] : memref<64x4xbf16, #tpu.memory_space<vmem>>, vector<64x4xbf16>
    %cst_224 = arith.constant dense<0.000000e+00> : vector<8x4xf32>
    %662 = tpu.matmul %660, %661, %cst_224 {dimension_numbers = #tpu.dot_dimension_numbers<[1], [0], [0], [1], [0, 0, 1, 1], [], []>} : vector<8x64xbf16>, vector<64x4xbf16>, vector<8x4xf32> -> vector<8x4xf32>
    %c0_225 = arith.constant 0 : index
    %c0_226 = arith.constant 0 : index
    %663 = vector.load %arg4[%c0_225, %c0_226] : memref<1x4xf32, #tpu.memory_space<vmem>>, vector<1x4xf32>
    %664 = vector.broadcast %663 : vector<1x4xf32> to vector<8x4xf32>
    %665 = arith.addf %662, %664 : vector<8x4xf32>
    %c0_227 = arith.constant 0 : index
    %c0_228 = arith.constant 0 : index
    %666 = vector.load %arg5[%c0_227, %c0_228] : memref<8x4xf32, #tpu.memory_space<vmem>>, vector<8x4xf32>
    tpu.vector_store %arg5[%c0_227, %c0_228], %665 {strides = array<i32>} : memref<8x4xf32, #tpu.memory_space<vmem>>, vector<8x4xf32>,
    return
  }
}

</mosaic_0001>

<llo_original>
// kernel: bilstm_forward.1
$region0: #{bilstm_forward.1}
  #allocation0 [shape = 'u32[]', space=smem, size = 0x4, offset = 0x4, fixed_abs, tag = 'smem constant byte address 0x4 - core index']
  #allocation1 [shape = 'u32[144,128]{1,0:T(1,128)}', space=vmem, size = 0x12000, scoped, tag = 'internal scratch']
  #allocation2 [shape = 'f32[64,256]{1,0:T(8,128)}', space=vmem, size = 0x10000, scoped, tag = 'scratch operand']
  #allocation3 [shape = 'f32[64,64]{1,0:T(8,128)}', space=vmem, size = 0x8000, scoped, tag = 'scratch operand']
  #allocation4 [shape = 'f32[64,64]{1,0:T(8,128)}', space=vmem, size = 0x8000, scoped, tag = 'scratch operand']
  %s0 = inlined_call_operand.vmem [shape: bf16[64,64], index: 0, kind: input, shape index: {}]
  %s1 = inlined_call_operand.vmem [shape: bf16[2,128,256], index: 1, kind: input, shape index: {}]
  %s2 = inlined_call_operand.vmem [shape: f32[2,256], index: 2, kind: input, shape index: {}]
  %s3 = inlined_call_operand.vmem [shape: bf16[64,4], index: 3, kind: input, shape index: {}]
  %s4 = inlined_call_operand.vmem [shape: f32[1,4], index: 4, kind: input, shape index: {}]
  %s5 = inlined_call_operand.vmem [shape: f32[8,4], index: 5, kind: output, shape index: {}]
  %s6 = sld [smem:[#allocation0]]
  $region30: #{bilstm_forward.1} parent=0
    _
  %s8 = ssub.s32 1, %s6
  %s9 = scalar_select 0, %s8, %s6
  // Predicated region
  $region2: #{bilstm_forward.1} parent=0 // pred_check
    _
  $region3: #{bilstm_forward.1} parent=0 // pred_check_branch
    %11 = sbr.rel (0) target = $region5
  $region4: #{bilstm_forward.1} parent=0 // pred_region
    _
  $region5: #{bilstm_forward.1} parent=0 // pred_fallthru
    _
  // Predicated region
  $region6: #{bilstm_forward.1} parent=0 // pred_check
    _
  $region7: #{bilstm_forward.1} parent=0 // pred_check_branch
    %13 = sbr.rel (0) target = $region9
  $region8: #{bilstm_forward.1} parent=0 // pred_region
    _
  $region9: #{bilstm_forward.1} parent=0 // pred_fallthru
    _
  // Predicated region
  $region10: #{bilstm_forward.1} parent=0 // pred_check
    _
  $region11: #{bilstm_forward.1} parent=0 // pred_check_branch
    %15 = sbr.rel (0) target = $region13
  $region12: #{bilstm_forward.1} parent=0 // pred_region
    _
  $region13: #{bilstm_forward.1} parent=0 // pred_fallthru
    _
  // Predicated region
  $region14: #{bilstm_forward.1} parent=0 // pred_check
    _
  $region15: #{bilstm_forward.1} parent=0 // pred_check_branch
    %17 = sbr.rel (0) target = $region17
  $region16: #{bilstm_forward.1} parent=0 // pred_region
    _
  $region17: #{bilstm_forward.1} parent=0 // pred_fallthru
    _
  // Predicated region
  $region18: #{bilstm_forward.1} parent=0 // pred_check
    _
  $region19: #{bilstm_forward.1} parent=0 // pred_check_branch
    %19 = sbr.rel (0) target = $region21
  $region20: #{bilstm_forward.1} parent=0 // pred_region
    _
  $region21: #{bilstm_forward.1} parent=0 // pred_fallthru
    _
  %v21 = vlaneseq
  %v22 = vand.u32 %v21, 127
  %v23 = vadd.s32 %v22, 128
  %vm24 = vcmp.ge.s32.totalorder %v22, 128
  %vm25 = vcmp.ge.s32.totalorder %v23, 128
  %vm26 = vcmp.lt.s32.totalorder %v22, 192
  %vm27 = vcmp.lt.s32.totalorder %v23, 192
  %vm28 = vmand %vm24, %vm26
  %vm29 = vmand %vm25, %vm27
  %vm30 = vcmp.lt.s32.totalorder %v22, 0
  %v31 = vsub.s32 0, %v22
  %v32 = vsel %vm30, %v31, %v22
  %v33 = vshrl.u32 %v32, 6
  %v34 = vand.u32 %v32, 63
  %v35 = vsub.s32 0, %v34
  %v36 = vsel %vm30, %v35, %v34
  %vm37 = vcmp.lt.s32.totalorder %v23, 0
  %v38 = vsub.s32 0, %v23
  %v39 = vsel %vm37, %v38, %v23
  %v40 = vshrl.u32 %v39, 6
  %v41 = vand.u32 %v39, 63
  %v42 = vsub.s32 0, %v41
  %v43 = vsel %vm37, %v42, %v41
  %vm44 = vcmp.ne.s32.totalorder %v36, 0
  %vm45 = vcmp.ne.s32.totalorder %v43, 0
  %vm46 = vcmp.lt.s32.totalorder %v36, 0
  %vm47 = vcmp.lt.s32.totalorder %v43, 0
  %vm48 = vmand %vm46, %vm44
  %vm49 = vmand %vm47, %vm45
  %v50 = vadd.s32 %v36, 64
  %v51 = vadd.s32 %v43, 64
  %v52 = vsel %vm48, %v50, %v36
  %v53 = vsel %vm49, %v51, %v43
  %vm54 = vcmp.lt.s32.totalorder %v52, 32
  %vm55 = vcmp.lt.s32.totalorder %v53, 32
  %v56 = vld [vmem:[%s0] sm:$0xf]
  %v57 = vld [vmem:[%s0 + $0x4] sm:$0xf]
  %v58 = vld [vmem:[%s0 + $0x8] sm:$0xf]
  %v59 = vld [vmem:[%s0 + $0xc] sm:$0xf]
  %v60 = vld [vmem:[%s0 + $0x10] sm:$0xf]
  %v61 = vld [vmem:[%s0 + $0x14] sm:$0xf]
  %v62 = vld [vmem:[%s0 + $0x18] sm:$0xf]
  %v63 = vld [vmem:[%s0 + $0x1c] sm:$0xf]
  %v64 = vld [vmem:[%s1] sm:$0xff]
  %v65 = vld [vmem:[%s1 + $0x8] sm:$0xff]
  %v66 = vld [vmem:[%s1 + $0x10] sm:$0xff]
  %v67 = vld [vmem:[%s1 + $0x18] sm:$0xff]
  %v68 = vld [vmem:[%s1 + $0x20] sm:$0xff]
  %v69 = vld [vmem:[%s1 + $0x28] sm:$0xff]
  %v70 = vld [vmem:[%s1 + $0x30] sm:$0xff]
  %v71 = vld [vmem:[%s1 + $0x38] sm:$0xff]
  %v72 = vld [vmem:[%s1 + $0x40] sm:$0xff]
  %v73 = vld [vmem:[%s1 + $0x48] sm:$0xff]
  %v74 = vld [vmem:[%s1 + $0x50] sm:$0xff]
  %v75 = vld [vmem:[%s1 + $0x58] sm:$0xff]
  %v76 = vld [vmem:[%s1 + $0x60] sm:$0xff]
  %v77 = vld [vmem:[%s1 + $0x68] sm:$0xff]
  %v78 = vld [vmem:[%s1 + $0x70] sm:$0xff]
  %v79 = vld [vmem:[%s1 + $0x78] sm:$0xff]
  %v80 = vld [vmem:[%s2] ss:$2 sm:$0x3]
  %v82 = vlaneseq
  %v83 = vshrl.u32 %v82, 7
  %v84 = vsub.s32 0, %v83
  %v85 = vrot.slane %v80, %v84
  %v86 = vlaneseq
  %v87 = vshrl.u32 %v86, 7
  %v88 = vsub.s32 1, %v87
  %v89 = vrot.slane %v80, %v88
  %v100 = vunpack.c.l.b16 %v56
  %v101 = vunpack.c.l.b16 %v57
  %v102 = vunpack.c.l.b16 %v58
  %v103 = vunpack.c.l.b16 %v59
  %v104 = vunpack.c.l.b16 %v60
  %v105 = vunpack.c.l.b16 %v61
  %v106 = vunpack.c.l.b16 %v62
  %v107 = vunpack.c.l.b16 %v63
  %v108 = vpack.c.b16 %v101, %v100
  %v109 = vpack.c.b16 %v103, %v102
  %v110 = vpack.c.b16 %v105, %v104
  %v111 = vpack.c.b16 %v107, %v106
  %v120 = vunpack.c.l.b16 %v64
  %v121 = vunpack.c.h.b16 %v64
  %v122 = vunpack.c.l.b16 %v65
  %v123 = vunpack.c.h.b16 %v65
  %v124 = vunpack.c.l.b16 %v66
  %v125 = vunpack.c.h.b16 %v66
  %v126 = vunpack.c.l.b16 %v67
  %v127 = vunpack.c.h.b16 %v67
  %v128 = vunpack.c.l.b16 %v68
  %v129 = vunpack.c.h.b16 %v68
  %v130 = vunpack.c.l.b16 %v69
  %v131 = vunpack.c.h.b16 %v69
  %v132 = vunpack.c.l.b16 %v70
  %v133 = vunpack.c.h.b16 %v70
  %v134 = vunpack.c.l.b16 %v71
  %v135 = vunpack.c.h.b16 %v71
  %v136 = vpack.c.b16 %v122, %v120
  %v137 = vpack.c.b16 %v123, %v121
  %v138 = vpack.c.b16 %v126, %v124
  %v139 = vpack.c.b16 %v127, %v125
  %v140 = vpack.c.b16 %v130, %v128
  %v141 = vpack.c.b16 %v131, %v129
  %v142 = vpack.c.b16 %v134, %v132
  %v143 = vpack.c.b16 %v135, %v133
  %vm152 = vcmask 523264
  %v154 = vsel %vm152, %v108, 0
  %v157 = vsel %vm152, %v109, 0
  %v160 = vsel %vm152, %v110, 0
  %v163 = vsel %vm152, %v111, 0
  %165 = vmatprep.subr.bf16.mxu0 %v137
  %166 = vmatpush1.bf16.msra.mxu0 %v136
  %167 = vmatprep.subr.bf16.mxu0 %v139
  %168 = vmatpush1.bf16.msra.mxu0 %v138
  %169 = vmatprep.subr.bf16.mxu0 %v141
  %170 = vmatpush1.bf16.msra.mxu0 %v140
  %171 = vmatprep.subr.bf16.mxu0 %v143
  %172 = vmatpush1.bf16.msra.mxu0 %v142
  %173 = vmatprep.subr.bf16.mxu0 0
  %174 = vmatpush1.bf16.msra.mxu0 0
  %175 = vmatprep.subr.bf16.mxu0 0
  %176 = vmatpush1.bf16.msra.mxu0 0
  %177 = vmatprep.subr.bf16.mxu0 0
  %178 = vmatpush1.bf16.msra.mxu0 0
  %179 = vmatprep.subr.bf16.mxu0 0
  %180 = vmatpush1.bf16.msra.mxu0 0
  %181 = vmatprep.subr.bf16.mxu0 0
  %182 = vmatpush1.bf16.msra.mxu0 0
  %183 = vmatprep.subr.bf16.mxu0 0
  %184 = vmatpush1.bf16.msra.mxu0 0
  %185 = vmatprep.subr.bf16.mxu0 0
  %186 = vmatpush1.bf16.msra.mxu0 0
  %187 = vmatprep.subr.bf16.mxu0 0
  %188 = vmatpush1.bf16.msra.mxu0 0
  %189 = vmatprep.subr.bf16.mxu0 0
  %190 = vmatpush1.bf16.msra.mxu0 0
  %191 = vmatprep.subr.bf16.mxu0 0
  %192 = vmatpush1.bf16.msra.mxu0 0
  %193 = vmatprep.subr.bf16.mxu0 0
  %194 = vmatpush1.bf16.msra.mxu0 0
  %195 = vmatprep.subr.bf16.mxu0 0
  %196 = vmatpush1.bf16.msra.mxu0 0
  %197 = vmatprep.mubr.bf16.mxu0 0
  %198 = vmatmul.mubr.bf16.gmra.mrb[0].mxu0 %v154
  %v199 = vpop.f32.mrb[0].mxu0
  %v200 = vadd.f32 %v85, %v199
  %v201 = vpop.f32.mrb[0].mxu0
  %v202 = vadd.f32 %v89, %v201
  %v203 = vpop.f32.mrb[0].mxu0
  %v204 = vadd.f32 %v85, %v203
  %v205 = vpop.f32.mrb[0].mxu0
  %v206 = vadd.f32 %v89, %v205
  %207 = vmatprep.mubr.bf16.mxu0 0
  %208 = vmatmul.mubr.bf16.gmra.mrb[0].mxu0 %v157
  %v209 = vpop.f32.mrb[0].mxu0
  %v210 = vadd.f32 %v85, %v209
  %v211 = vpop.f32.mrb[0].mxu0
  %v212 = vadd.f32 %v89, %v211
  %v213 = vpop.f32.mrb[0].mxu0
  %v214 = vadd.f32 %v85, %v213
  %v215 = vpop.f32.mrb[0].mxu0
  %v216 = vadd.f32 %v89, %v215
  %217 = vmatprep.mubr.bf16.mxu0 0
  %218 = vmatmul.mubr.bf16.gmra.mrb[0].mxu0 %v160
  %v219 = vpop.f32.mrb[0].mxu0
  %v220 = vadd.f32 %v85, %v219
  %v221 = vpop.f32.mrb[0].mxu0
  %v222 = vadd.f32 %v89, %v221
  %v223 = vpop.f32.mrb[0].mxu0
  %v224 = vadd.f32 %v85, %v223
  %v225 = vpop.f32.mrb[0].mxu0
  %v226 = vadd.f32 %v89, %v225
  %227 = vmatprep.mubr.bf16.mxu0 0
  %228 = vmatmul.mubr.bf16.gmra.mrb[0].mxu0 %v163
  %v229 = vpop.f32.mrb[0].mxu0
  %v230 = vadd.f32 %v85, %v229
  %v231 = vpop.f32.mrb[0].mxu0
  %v232 = vadd.f32 %v89, %v231
  %v233 = vpop.f32.mrb[0].mxu0
  %v234 = vadd.f32 %v85, %v233
  %v235 = vpop.f32.mrb[0].mxu0
  %v236 = vadd.f32 %v89, %v235
  %237 = vdwg.mxu0
  %238 = vst [vmem:[#allocation2] sm:$0xff] %v200
  %239 = vst [vmem:[#allocation2 + $0x8] sm:$0xff] %v202
  %240 = vst [vmem:[#allocation2 + $0x10] sm:$0xff] %v204
  %241 = vst [vmem:[#allocation2 + $0x18] sm:$0xff] %v206
  %242 = vst [vmem:[#allocation2 + $0x20] sm:$0xff] %v210
  %243 = vst [vmem:[#allocation2 + $0x28] sm:$0xff] %v212
  %244 = vst [vmem:[#allocation2 + $0x30] sm:$0xff] %v214
  %245 = vst [vmem:[#allocation2 + $0x38] sm:$0xff] %v216
  %246 = vst [vmem:[#allocation2 + $0x40] sm:$0xff] %v220
  %247 = vst [vmem:[#allocation2 + $0x48] sm:$0xff] %v222
  %248 = vst [vmem:[#allocation2 + $0x50] sm:$0xff] %v224
  %249 = vst [vmem:[#allocation2 + $0x58] sm:$0xff] %v226
  %250 = vst [vmem:[#allocation2 + $0x60] sm:$0xff] %v230
  %251 = vst [vmem:[#allocation2 + $0x68] sm:$0xff] %v232
  %252 = vst [vmem:[#allocation2 + $0x70] sm:$0xff] %v234
  %253 = vst [vmem:[#allocation2 + $0x78] sm:$0xff] %v236
  %s254 = smul.u32 0, 2
  %s255 = smul.addr %s254, 8
  %s256 = scalar_lea.vmem [#allocation2], %s255
  %v257 = vld [vmem:[%s256] sm:$0xff]
  %v258 = vld [vmem:[%s256 + $0x8] sm:$0xff]
  %s259 = smul.u32 7, 2
  %s260 = smul.addr %s259, 8
  %s261 = scalar_lea.vmem [#allocation2], %s260
  %v262 = vld [vmem:[%s261] sm:$0xff]
  %v263 = vld [vmem:[%s261 + $0x8] sm:$0xff]
  %v264 = vsel %vm54, %v257, %v262
  %v265 = vsel %vm55, %v258, %v263
  %v274 = vunpack.c.l.b16 %v72
  %v275 = vunpack.c.h.b16 %v72
  %v276 = vunpack.c.l.b16 %v73
  %v277 = vunpack.c.h.b16 %v73
  %v278 = vunpack.c.l.b16 %v74
  %v279 = vunpack.c.h.b16 %v74
  %v280 = vunpack.c.l.b16 %v75
  %v281 = vunpack.c.h.b16 %v75
  %v282 = vunpack.c.l.b16 %v76
  %v283 = vunpack.c.h.b16 %v76
  %v284 = vunpack.c.l.b16 %v77
  %v285 = vunpack.c.h.b16 %v77
  %v286 = vunpack.c.l.b16 %v78
  %v287 = vunpack.c.h.b16 %v78
  %v288 = vunpack.c.l.b16 %v79
  %v289 = vunpack.c.h.b16 %v79
  %v290 = vpack.c.b16 %v276, %v274
  %v291 = vpack.c.b16 %v277, %v275
  %v292 = vpack.c.b16 %v280, %v278
  %v293 = vpack.c.b16 %v281, %v279
  %v294 = vpack.c.b16 %v284, %v282
  %v295 = vpack.c.b16 %v285, %v283
  %v296 = vpack.c.b16 %v288, %v286
  %v297 = vpack.c.b16 %v289, %v287
  %v307 = vsel %vm152, 0, 0
  %309 = vmatprep.subr.bf16.mxu0 %v291
  %310 = vmatpush1.bf16.msra.mxu0 %v290
  %311 = vmatprep.subr.bf16.mxu0 %v293
  %312 = vmatpush1.bf16.msra.mxu0 %v292
  %313 = vmatprep.subr.bf16.mxu0 %v295
  %314 = vmatpush1.bf16.msra.mxu0 %v294
  %315 = vmatprep.subr.bf16.mxu0 %v297
  %316 = vmatpush1.bf16.msra.mxu0 %v296
  %317 = vmatprep.subr.bf16.mxu0 0
  %318 = vmatpush1.bf16.msra.mxu0 0
  %319 = vmatprep.subr.bf16.mxu0 0
  %320 = vmatpush1.bf16.msra.mxu0 0
  %321 = vmatprep.subr.bf16.mxu0 0
  %322 = vmatpush1.bf16.msra.mxu0 0
  %323 = vmatprep.subr.bf16.mxu0 0
  %324 = vmatpush1.bf16.msra.mxu0 0
  %325 = vmatprep.subr.bf16.mxu0 0
  %326 = vmatpush1.bf16.msra.mxu0 0
  %327 = vmatprep.subr.bf16.mxu0 0
  %328 = vmatpush1.bf16.msra.mxu0 0
  %329 = vmatprep.subr.bf16.mxu0 0
  %330 = vmatpush1.bf16.msra.mxu0 0
  %331 = vmatprep.subr.bf16.mxu0 0
  %332 = vmatpush1.bf16.msra.mxu0 0
  %333 = vmatprep.subr.bf16.mxu0 0
  %334 = vmatpush1.bf16.msra.mxu0 0
  %335 = vmatprep.subr.bf16.mxu0 0
  %336 = vmatpush1.bf16.msra.mxu0 0
  %337 = vmatprep.subr.bf16.mxu0 0
  %338 = vmatpush1.bf16.msra.mxu0 0
  %339 = vmatprep.subr.bf16.mxu0 0
  %340 = vmatpush1.bf16.msra.mxu0 0
  %341 = vmatprep.mubr.bf16.mxu0 0
  %342 = vmatmul.mubr.bf16.gmra.mrb[0].mxu0 %v307
  %v343 = vpop.f32.mrb[0].mxu0
  %v344 = vadd.f32 0.0, %v343
  %v345 = vpop.f32.mrb[0].mxu0
  %v346 = vadd.f32 0.0, %v345
  %v347 = vpop.f32.mrb[0].mxu0
  %v348 = vpop.f32.mrb[0].mxu0
  %349 = vdwg.mxu0
  %v350 = vadd.f32 %v264, %v344
  %v351 = vadd.f32 %v265, %v346
  %v352 = vxor.u32 %v350, 2147483648
  %v353 = vxor.u32 %v351, 2147483648
  %v354 = vmul.f32 %v352, 1.442695
  %v355 = vpow.pop %v354
  %v356 = vmul.f32 %v353, 1.442695
  %v357 = vpow.pop %v356
  %v358 = vadd.f32 %v355, 1.0
  %v359 = vadd.f32 %v357, 1.0
  %v360 = vrcp.pop %v358
  %v361 = vmul.f32 1.0, %v360
  %v362 = vrcp.pop %v359
  %v363 = vmul.f32 1.0, %v362
  %v364 = vmul.f32 %v361, 2.0
  %v365 = vmul.f32 %v363, 2.0
  %v366 = vsub.f32 %v364, 1.0
  %v367 = vsub.f32 %v365, 1.0
  %v368 = vsel %vm28, %v366, %v361
  %v369 = vsel %vm29, %v367, %v363
  %v370 = vmul.f32 %v368, 0.0
  %v371 = vmul.f32 %v368, %v369
  %373 = vrot.lane.b32.xlu0 %v371, 64
  %v374 = vpop.permute.xlu0 %373
  %v376 = vadd.f32 %v370, %v374
  %v377 = vtanh.pop %v376
  %v378 = vmul.f32 %v369, %v377
  %380 = vrot.lane.b32.xlu0 %v378, 64
  %v381 = vpop.permute.xlu0 %380
  %vm383 = vcmask 261120
  %384 = vst.msk [vmem:[#allocation3] sm:$0xff] %vm383, %v381
  %s385 = scalar_lea.vmem [#allocation3], 56
  %vm386 = vcmask 523520
  %387 = vst.msk [vmem:[%s385] sm:$0xff] %vm386, %v381
  %s388 = smul.u32 1, 2
  %s389 = smul.addr %s388, 8
  %s390 = scalar_lea.vmem [#allocation2], %s389
  %v391 = vld [vmem:[%s390] sm:$0xff]
  %v392 = vld [vmem:[%s390 + $0x8] sm:$0xff]
  %s393 = smul.u32 6, 2
  %s394 = smul.addr %s393, 8
  %s395 = scalar_lea.vmem [#allocation2], %s394
  %v396 = vld [vmem:[%s395] sm:$0xff]
  %v397 = vld [vmem:[%s395 + $0x8] sm:$0xff]
  %v398 = vsel %vm54, %v391, %v396
  %v399 = vsel %vm55, %v392, %v397
  %v400 = vpack.c.bf16 %v378, %v378
  %402 = vrot.lane.b32.xlu0 %v400, 64
  %v403 = vpop.permute.xlu0 %402
  %v405 = vsel %vm152, %v403, 0
  %407 = vmatprep.subr.bf16.mxu0 %v291
  %408 = vmatpush1.bf16.msra.mxu0 %v290
  %409 = vmatprep.subr.bf16.mxu0 %v293
  %410 = vmatpush1.bf16.msra.mxu0 %v292
  %411 = vmatprep.subr.bf16.mxu0 %v295
  %412 = vmatpush1.bf16.msra.mxu0 %v294
  %413 = vmatprep.subr.bf16.mxu0 %v297
  %414 = vmatpush1.bf16.msra.mxu0 %v296
  %415 = vmatprep.subr.bf16.mxu0 0
  %416 = vmatpush1.bf16.msra.mxu0 0
  %417 = vmatprep.subr.bf16.mxu0 0
  %418 = vmatpush1.bf16.msra.mxu0 0
  %419 = vmatprep.subr.bf16.mxu0 0
  %420 = vmatpush1.bf16.msra.mxu0 0
  %421 = vmatprep.subr.bf16.mxu0 0
  %422 = vmatpush1.bf16.msra.mxu0 0
  %423 = vmatprep.subr.bf16.mxu0 0
  %424 = vmatpush1.bf16.msra.mxu0 0
  %425 = vmatprep.subr.bf16.mxu0 0
  %426 = vmatpush1.bf16.msra.mxu0 0
  %427 = vmatprep.subr.bf16.mxu0 0
  %428 = vmatpush1.bf16.msra.mxu0 0
  %429 = vmatprep.subr.bf16.mxu0 0
  %430 = vmatpush1.bf16.msra.mxu0 0
  %431 = vmatprep.subr.bf16.mxu0 0
  %432 = vmatpush1.bf16.msra.mxu0 0
  %433 = vmatprep.subr.bf16.mxu0 0
  %434 = vmatpush1.bf16.msra.mxu0 0
  %435 = vmatprep.subr.bf16.mxu0 0
  %436 = vmatpush1.bf16.msra.mxu0 0
  %437 = vmatprep.subr.bf16.mxu0 0
  %438 = vmatpush1.bf16.msra.mxu0 0
  %439 = vmatprep.mubr.bf16.mxu0 0
  %440 = vmatmul.mubr.bf16.gmra.mrb[0].mxu0 %v405
  %v441 = vpop.f32.mrb[0].mxu0
  %v442 = vadd.f32 0.0, %v441
  %v443 = vpop.f32.mrb[0].mxu0
  %v444 = vadd.f32 0.0, %v443
  %v445 = vpop.f32.mrb[0].mxu0
  %v446 = vpop.f32.mrb[0].mxu0
  %447 = vdwg.mxu0
  %v448 = vadd.f32 %v398, %v442
  %v449 = vadd.f32 %v399, %v444
  %v450 = vxor.u32 %v448, 2147483648
  %v451 = vxor.u32 %v449, 2147483648
  %v452 = vmul.f32 %v450, 1.442695
  %v453 = vpow.pop %v452
  %v454 = vmul.f32 %v451, 1.442695
  %v455 = vpow.pop %v454
  %v456 = vadd.f32 %v453, 1.0
  %v457 = vadd.f32 %v455, 1.0
  %v458 = vrcp.pop %v456
  %v459 = vmul.f32 1.0, %v458
  %v460 = vrcp.pop %v457
  %v461 = vmul.f32 1.0, %v460
  %v462 = vmul.f32 %v459, 2.0
  %v463 = vmul.f32 %v461, 2.0
  %v464 = vsub.f32 %v462, 1.0
  %v465 = vsub.f32 %v463, 1.0
  %v466 = vsel %vm28, %v464, %v459
  %v467 = vsel %vm29, %v465, %v461
  %v468 = vmul.f32 %v466, %v376
  %v469 = vmul.f32 %v466, %v467
  %471 = vrot.lane.b32.xlu0 %v469, 64
  %v472 = vpop.permute.xlu0 %471
  %v474 = vadd.f32 %v468, %v472
  %v475 = vtanh.pop %v474
  %v476 = vmul.f32 %v467, %v475
  %478 = vrot.lane.b32.xlu0 %v476, 64
  %v479 = vpop.permute.xlu0 %478
  %s481 = scalar_lea.vmem [#allocation3], 8
  %482 = vst.msk [vmem:[%s481] sm:$0xff] %vm383, %v479
  %s483 = scalar_lea.vmem [#allocation3], 48
  %484 = vst.msk [vmem:[%s483] sm:$0xff] %vm386, %v479
  %s485 = smul.u32 2, 2
  %s486 = smul.addr %s485, 8
  %s487 = scalar_lea.vmem [#allocation2], %s486
  %v488 = vld [vmem:[%s487] sm:$0xff]
  %v489 = vld [vmem:[%s487 + $0x8] sm:$0xff]
  %s490 = smul.u32 5, 2
  %s491 = smul.addr %s490, 8
  %s492 = scalar_lea.vmem [#allocation2], %s491
  %v493 = vld [vmem:[%s492] sm:$0xff]
  %v494 = vld [vmem:[%s492 + $0x8] sm:$0xff]
  %v495 = vsel %vm54, %v488, %v493
  %v496 = vsel %vm55, %v489, %v494
  %v497 = vpack.c.bf16 %v476, %v476
  %499 = vrot.lane.b32.xlu0 %v497, 64
  %v500 = vpop.permute.xlu0 %499
  %v502 = vsel %vm152, %v500, 0
  %504 = vmatprep.subr.bf16.mxu0 %v291
  %505 = vmatpush1.bf16.msra.mxu0 %v290
  %506 = vmatprep.subr.bf16.mxu0 %v293
  %507 = vmatpush1.bf16.msra.mxu0 %v292
  %508 = vmatprep.subr.bf16.mxu0 %v295
  %509 = vmatpush1.bf16.msra.mxu0 %v294
  %510 = vmatprep.subr.bf16.mxu0 %v297
  %511 = vmatpush1.bf16.msra.mxu0 %v296
  %512 = vmatprep.subr.bf16.mxu0 0
  %513 = vmatpush1.bf16.msra.mxu0 0
  %514 = vmatprep.subr.bf16.mxu0 0
  %515 = vmatpush1.bf16.msra.mxu0 0
  %516 = vmatprep.subr.bf16.mxu0 0
  %517 = vmatpush1.bf16.msra.mxu0 0
  %518 = vmatprep.subr.bf16.mxu0 0
  %519 = vmatpush1.bf16.msra.mxu0 0
  %520 = vmatprep.subr.bf16.mxu0 0
  %521 = vmatpush1.bf16.msra.mxu0 0
  %522 = vmatprep.subr.bf16.mxu0 0
  %523 = vmatpush1.bf16.msra.mxu0 0
  %524 = vmatprep.subr.bf16.mxu0 0
  %525 = vmatpush1.bf16.msra.mxu0 0
  %526 = vmatprep.subr.bf16.mxu0 0
  %527 = vmatpush1.bf16.msra.mxu0 0
  %528 = vmatprep.subr.bf16.mxu0 0
  %529 = vmatpush1.bf16.msra.mxu0 0
  %530 = vmatprep.subr.bf16.mxu0 0
  %531 = vmatpush1.bf16.msra.mxu0 0
  %532 = vmatprep.subr.bf16.mxu0 0
  %533 = vmatpush1.bf16.msra.mxu0 0
  %534 = vmatprep.subr.bf16.mxu0 0
  %535 = vmatpush1.bf16.msra.mxu0 0
  %536 = vmatprep.mubr.bf16.mxu0 0
  %537 = vmatmul.mubr.bf16.gmra.mrb[0].mxu0 %v502
  %v538 = vpop.f32.mrb[0].mxu0
  %v539 = vadd.f32 0.0, %v538
  %v540 = vpop.f32.mrb[0].mxu0
  %v541 = vadd.f32 0.0, %v540
  %v542 = vpop.f32.mrb[0].mxu0
  %v543 = vpop.f32.mrb[0].mxu0
  %544 = vdwg.mxu0
  %v545 = vadd.f32 %v495, %v539
  %v546 = vadd.f32 %v496, %v541
  %v547 = vxor.u32 %v545, 2147483648
  %v548 = vxor.u32 %v546, 2147483648
  %v549 = vmul.f32 %v547, 1.442695
  %v550 = vpow.pop %v549
  %v551 = vmul.f32 %v548, 1.442695
  %v552 = vpow.pop %v551
  %v553 = vadd.f32 %v550, 1.0
  %v554 = vadd.f32 %v552, 1.0
  %v555 = vrcp.pop %v553
  %v556 = vmul.f32 1.0, %v555
  %v557 = vrcp.pop %v554
  %v558 = vmul.f32 1.0, %v557
  %v559 = vmul.f32 %v556, 2.0
  %v560 = vmul.f32 %v558, 2.0
  %v561 = vsub.f32 %v559, 1.0
  %v562 = vsub.f32 %v560, 1.0
  %v563 = vsel %vm28, %v561, %v556
  %v564 = vsel %vm29, %v562, %v558
  %v565 = vmul.f32 %v563, %v474
  %v566 = vmul.f32 %v563, %v564
  %568 = vrot.lane.b32.xlu0 %v566, 64
  %v569 = vpop.permute.xlu0 %568
  %v571 = vadd.f32 %v565, %v569
  %v572 = vtanh.pop %v571
  %v573 = vmul.f32 %v564, %v572
  %575 = vrot.lane.b32.xlu0 %v573, 64
  %v576 = vpop.permute.xlu0 %575
  %s578 = scalar_lea.vmem [#allocation3], 16
  %579 = vst.msk [vmem:[%s578] sm:$0xff] %vm383, %v576
  %s580 = scalar_lea.vmem [#allocation3], 40
  %581 = vst.msk [vmem:[%s580] sm:$0xff] %vm386, %v576
  %s582 = smul.u32 3, 2
  %s583 = smul.addr %s582, 8
  %s584 = scalar_lea.vmem [#allocation2], %s583
  %v585 = vld [vmem:[%s584] sm:$0xff]
  %v586 = vld [vmem:[%s584 + $0x8] sm:$0xff]
  %s587 = smul.u32 4, 2
  %s588 = smul.addr %s587, 8
  %s589 = scalar_lea.vmem [#allocation2], %s588
  %v590 = vld [vmem:[%s589] sm:$0xff]
  %v591 = vld [vmem:[%s589 + $0x8] sm:$0xff]
  %v592 = vsel %vm54, %v585, %v590
  %v593 = vsel %vm55, %v586, %v591
  %v594 = vpack.c.bf16 %v573, %v573
  %596 = vrot.lane.b32.xlu0 %v594, 64
  %v597 = vpop.permute.xlu0 %596
  %v599 = vsel %vm152, %v597, 0
  %601 = vmatprep.subr.bf16.mxu0 %v291
  %602 = vmatpush1.bf16.msra.mxu0 %v290
  %603 = vmatprep.subr.bf16.mxu0 %v293
  %604 = vmatpush1.bf16.msra.mxu0 %v292
  %605 = vmatprep.subr.bf16.mxu0 %v295
  %606 = vmatpush1.bf16.msra.mxu0 %v294
  %607 = vmatprep.subr.bf16.mxu0 %v297
  %608 = vmatpush1.bf16.msra.mxu0 %v296
  %609 = vmatprep.subr.bf16.mxu0 0
  %610 = vmatpush1.bf16.msra.mxu0 0
  %611 = vmatprep.subr.bf16.mxu0 0
  %612 = vmatpush1.bf16.msra.mxu0 0
  %613 = vmatprep.subr.bf16.mxu0 0
  %614 = vmatpush1.bf16.msra.mxu0 0
  %615 = vmatprep.subr.bf16.mxu0 0
  %616 = vmatpush1.bf16.msra.mxu0 0
  %617 = vmatprep.subr.bf16.mxu0 0
  %618 = vmatpush1.bf16.msra.mxu0 0
  %619 = vmatprep.subr.bf16.mxu0 0
  %620 = vmatpush1.bf16.msra.mxu0 0
  %621 = vmatprep.subr.bf16.mxu0 0
  %622 = vmatpush1.bf16.msra.mxu0 0
  %623 = vmatprep.subr.bf16.mxu0 0
  %624 = vmatpush1.bf16.msra.mxu0 0
  %625 = vmatprep.subr.bf16.mxu0 0
  %626 = vmatpush1.bf16.msra.mxu0 0
  %627 = vmatprep.subr.bf16.mxu0 0
  %628 = vmatpush1.bf16.msra.mxu0 0
  %629 = vmatprep.subr.bf16.mxu0 0
  %630 = vmatpush1.bf16.msra.mxu0 0
  %631 = vmatprep.subr.bf16.mxu0 0
  %632 = vmatpush1.bf16.msra.mxu0 0
  %633 = vmatprep.mubr.bf16.mxu0 0
  %634 = vmatmul.mubr.bf16.gmra.mrb[0].mxu0 %v599
  %v635 = vpop.f32.mrb[0].mxu0
  %v636 = vadd.f32 0.0, %v635
  %v637 = vpop.f32.mrb[0].mxu0
  %v638 = vadd.f32 0.0, %v637
  %v639 = vpop.f32.mrb[0].mxu0
  %v640 = vpop.f32.mrb[0].mxu0
  %641 = vdwg.mxu0
  %v642 = vadd.f32 %v592, %v636
  %v643 = vadd.f32 %v593, %v638
  %v644 = vxor.u32 %v642, 2147483648
  %v645 = vxor.u32 %v643, 2147483648
  %v646 = vmul.f32 %v644, 1.442695
  %v647 = vpow.pop %v646
  %v648 = vmul.f32 %v645, 1.442695
  %v649 = vpow.pop %v648
  %v650 = vadd.f32 %v647, 1.0
  %v651 = vadd.f32 %v649, 1.0
  %v652 = vrcp.pop %v650
  %v653 = vmul.f32 1.0, %v652
  %v654 = vrcp.pop %v651
  %v655 = vmul.f32 1.0, %v654
  %v656 = vmul.f32 %v653, 2.0
  %v657 = vmul.f32 %v655, 2.0
  %v658 = vsub.f32 %v656, 1.0
  %v659 = vsub.f32 %v657, 1.0
  %v660 = vsel %vm28, %v658, %v653
  %v661 = vsel %vm29, %v659, %v655
  %v662 = vmul.f32 %v660, %v571
  %v663 = vmul.f32 %v660, %v661
  %665 = vrot.lane.b32.xlu0 %v663, 64
  %v666 = vpop.permute.xlu0 %665
  %v668 = vadd.f32 %v662, %v666
  %v669 = vtanh.pop %v668
  %v670 = vmul.f32 %v661, %v669
  %672 = vrot.lane.b32.xlu0 %v670, 64
  %v673 = vpop.permute.xlu0 %672
  %s675 = scalar_lea.vmem [#allocation3], 24
  %676 = vst.msk [vmem:[%s675] sm:$0xff] %vm383, %v673
  %s677 = scalar_lea.vmem [#allocation3], 32
  %678 = vst.msk [vmem:[%s677] sm:$0xff] %vm386, %v673
  %v679 = vld [vmem:[%s589] sm:$0xff]
  %v680 = vld [vmem:[%s589 + $0x8] sm:$0xff]
  %v681 = vld [vmem:[%s584] sm:$0xff]
  %v682 = vld [vmem:[%s584 + $0x8] sm:$0xff]
  %v683 = vsel %vm54, %v679, %v681
  %v684 = vsel %vm55, %v680, %v682
  %v685 = vpack.c.bf16 %v670, %v670
  %687 = vrot.lane.b32.xlu0 %v685, 64
  %v688 = vpop.permute.xlu0 %687
  %v690 = vsel %vm152, %v688, 0
  %692 = vmatprep.subr.bf16.mxu0 %v291
  %693 = vmatpush1.bf16.msra.mxu0 %v290
  %694 = vmatprep.subr.bf16.mxu0 %v293
  %695 = vmatpush1.bf16.msra.mxu0 %v292
  %696 = vmatprep.subr.bf16.mxu0 %v295
  %697 = vmatpush1.bf16.msra.mxu0 %v294
  %698 = vmatprep.subr.bf16.mxu0 %v297
  %699 = vmatpush1.bf16.msra.mxu0 %v296
  %700 = vmatprep.subr.bf16.mxu0 0
  %701 = vmatpush1.bf16.msra.mxu0 0
  %702 = vmatprep.subr.bf16.mxu0 0
  %703 = vmatpush1.bf16.msra.mxu0 0
  %704 = vmatprep.subr.bf16.mxu0 0
  %705 = vmatpush1.bf16.msra.mxu0 0
  %706 = vmatprep.subr.bf16.mxu0 0
  %707 = vmatpush1.bf16.msra.mxu0 0
  %708 = vmatprep.subr.bf16.mxu0 0
  %709 = vmatpush1.bf16.msra.mxu0 0
  %710 = vmatprep.subr.bf16.mxu0 0
  %711 = vmatpush1.bf16.msra.mxu0 0
  %712 = vmatprep.subr.bf16.mxu0 0
  %713 = vmatpush1.bf16.msra.mxu0 0
  %714 = vmatprep.subr.bf16.mxu0 0
  %715 = vmatpush1.bf16.msra.mxu0 0
  %716 = vmatprep.subr.bf16.mxu0 0
  %717 = vmatpush1.bf16.msra.mxu0 0
  %718 = vmatprep.subr.bf16.mxu0 0
  %719 = vmatpush1.bf16.msra.mxu0 0
  %720 = vmatprep.subr.bf16.mxu0 0
  %721 = vmatpush1.bf16.msra.mxu0 0
  %722 = vmatprep.subr.bf16.mxu0 0
  %723 = vmatpush1.bf16.msra.mxu0 0
  %724 = vmatprep.mubr.bf16.mxu0 0
  %725 = vmatmul.mubr.bf16.gmra.mrb[0].mxu0 %v690
  %v726 = vpop.f32.mrb[0].mxu0
  %v727 = vadd.f32 0.0, %v726
  %v728 = vpop.f32.mrb[0].mxu0
  %v729 = vadd.f32 0.0, %v728
  %v730 = vpop.f32.mrb[0].mxu0
  %v731 = vpop.f32.mrb[0].mxu0
  %732 = vdwg.mxu0
  %v733 = vadd.f32 %v683, %v727
  %v734 = vadd.f32 %v684, %v729
  %v735 = vxor.u32 %v733, 2147483648
  %v736 = vxor.u32 %v734, 2147483648
  %v737 = vmul.f32 %v735, 1.442695
  %v738 = vpow.pop %v737
  %v739 = vmul.f32 %v736, 1.442695
  %v740 = vpow.pop %v739
  %v741 = vadd.f32 %v738, 1.0
  %v742 = vadd.f32 %v740, 1.0
  %v743 = vrcp.pop %v741
  %v744 = vmul.f32 1.0, %v743
  %v745 = vrcp.pop %v742
  %v746 = vmul.f32 1.0, %v745
  %v747 = vmul.f32 %v744, 2.0
  %v748 = vmul.f32 %v746, 2.0
  %v749 = vsub.f32 %v747, 1.0
  %v750 = vsub.f32 %v748, 1.0
  %v751 = vsel %vm28, %v749, %v744
  %v752 = vsel %vm29, %v750, %v746
  %v753 = vmul.f32 %v751, %v668
  %v754 = vmul.f32 %v751, %v752
  %756 = vrot.lane.b32.xlu0 %v754, 64
  %v757 = vpop.permute.xlu0 %756
  %v759 = vadd.f32 %v753, %v757
  %v760 = vtanh.pop %v759
  %v761 = vmul.f32 %v752, %v760
  %763 = vrot.lane.b32.xlu0 %v761, 64
  %v764 = vpop.permute.xlu0 %763
  %766 = vst.msk [vmem:[%s677] sm:$0xff] %vm383, %v764
  %767 = vst.msk [vmem:[%s675] sm:$0xff] %vm386, %v764
  %v768 = vld [vmem:[%s492] sm:$0xff]
  %v769 = vld [vmem:[%s492 + $0x8] sm:$0xff]
  %v770 = vld [vmem:[%s487] sm:$0xff]
  %v771 = vld [vmem:[%s487 + $0x8] sm:$0xff]
  %v772 = vsel %vm54, %v768, %v770
  %v773 = vsel %vm55, %v769, %v771
  %v774 = vpack.c.bf16 %v761, %v761
  %776 = vrot.lane.b32.xlu0 %v774, 64
  %v777 = vpop.permute.xlu0 %776
  %v779 = vsel %vm152, %v777, 0
  %781 = vmatprep.subr.bf16.mxu0 %v291
  %782 = vmatpush1.bf16.msra.mxu0 %v290
  %783 = vmatprep.subr.bf16.mxu0 %v293
  %784 = vmatpush1.bf16.msra.mxu0 %v292
  %785 = vmatprep.subr.bf16.mxu0 %v295
  %786 = vmatpush1.bf16.msra.mxu0 %v294
  %787 = vmatprep.subr.bf16.mxu0 %v297
  %788 = vmatpush1.bf16.msra.mxu0 %v296
  %789 = vmatprep.subr.bf16.mxu0 0
  %790 = vmatpush1.bf16.msra.mxu0 0
  %791 = vmatprep.subr.bf16.mxu0 0
  %792 = vmatpush1.bf16.msra.mxu0 0
  %793 = vmatprep.subr.bf16.mxu0 0
  %794 = vmatpush1.bf16.msra.mxu0 0
  %795 = vmatprep.subr.bf16.mxu0 0
  %796 = vmatpush1.bf16.msra.mxu0 0
  %797 = vmatprep.subr.bf16.mxu0 0
  %798 = vmatpush1.bf16.msra.mxu0 0
  %799 = vmatprep.subr.bf16.mxu0 0
  %800 = vmatpush1.bf16.msra.mxu0 0
  %801 = vmatprep.subr.bf16.mxu0 0
  %802 = vmatpush1.bf16.msra.mxu0 0
  %803 = vmatprep.subr.bf16.mxu0 0
  %804 = vmatpush1.bf16.msra.mxu0 0
  %805 = vmatprep.subr.bf16.mxu0 0
  %806 = vmatpush1.bf16.msra.mxu0 0
  %807 = vmatprep.subr.bf16.mxu0 0
  %808 = vmatpush1.bf16.msra.mxu0 0
  %809 = vmatprep.subr.bf16.mxu0 0
  %810 = vmatpush1.bf16.msra.mxu0 0
  %811 = vmatprep.subr.bf16.mxu0 0
  %812 = vmatpush1.bf16.msra.mxu0 0
  %813 = vmatprep.mubr.bf16.mxu0 0
  %814 = vmatmul.mubr.bf16.gmra.mrb[0].mxu0 %v779
  %v815 = vpop.f32.mrb[0].mxu0
  %v816 = vadd.f32 0.0, %v815
  %v817 = vpop.f32.mrb[0].mxu0
  %v818 = vadd.f32 0.0, %v817
  %v819 = vpop.f32.mrb[0].mxu0
  %v820 = vpop.f32.mrb[0].mxu0
  %821 = vdwg.mxu0
  %v822 = vadd.f32 %v772, %v816
  %v823 = vadd.f32 %v773, %v818
  %v824 = vxor.u32 %v822, 2147483648
  %v825 = vxor.u32 %v823, 2147483648
  %v826 = vmul.f32 %v824, 1.442695
  %v827 = vpow.pop %v826
  %v828 = vmul.f32 %v825, 1.442695
  %v829 = vpow.pop %v828
  %v830 = vadd.f32 %v827, 1.0
  %v831 = vadd.f32 %v829, 1.0
  %v832 = vrcp.pop %v830
  %v833 = vmul.f32 1.0, %v832
  %v834 = vrcp.pop %v831
  %v835 = vmul.f32 1.0, %v834
  %v836 = vmul.f32 %v833, 2.0
  %v837 = vmul.f32 %v835, 2.0
  %v838 = vsub.f32 %v836, 1.0
  %v839 = vsub.f32 %v837, 1.0
  %v840 = vsel %vm28, %v838, %v833
  %v841 = vsel %vm29, %v839, %v835
  %v842 = vmul.f32 %v840, %v759
  %v843 = vmul.f32 %v840, %v841
  %845 = vrot.lane.b32.xlu0 %v843, 64
  %v846 = vpop.permute.xlu0 %845
  %v848 = vadd.f32 %v842, %v846
  %v849 = vtanh.pop %v848
  %v850 = vmul.f32 %v841, %v849
  %852 = vrot.lane.b32.xlu0 %v850, 64
  %v853 = vpop.permute.xlu0 %852
  %855 = vst.msk [vmem:[%s580] sm:$0xff] %vm383, %v853
  %856 = vst.msk [vmem:[%s578] sm:$0xff] %vm386, %v853
  %v857 = vld [vmem:[%s395] sm:$0xff]
  %v858 = vld [vmem:[%s395 + $0x8] sm:$0xff]
  %v859 = vld [vmem:[%s390] sm:$0xff]
  %v860 = vld [vmem:[%s390 + $0x8] sm:$0xff]
  %v861 = vsel %vm54, %v857, %v859
  %v862 = vsel %vm55, %v858, %v860
  %v863 = vpack.c.bf16 %v850, %v850
  %865 = vrot.lane.b32.xlu0 %v863, 64
  %v866 = vpop.permute.xlu0 %865
  %v868 = vsel %vm152, %v866, 0
  %870 = vmatprep.subr.bf16.mxu0 %v291
  %871 = vmatpush1.bf16.msra.mxu0 %v290
  %872 = vmatprep.subr.bf16.mxu0 %v293
  %873 = vmatpush1.bf16.msra.mxu0 %v292
  %874 = vmatprep.subr.bf16.mxu0 %v295
  %875 = vmatpush1.bf16.msra.mxu0 %v294
  %876 = vmatprep.subr.bf16.mxu0 %v297
  %877 = vmatpush1.bf16.msra.mxu0 %v296
  %878 = vmatprep.subr.bf16.mxu0 0
  %879 = vmatpush1.bf16.msra.mxu0 0
  %880 = vmatprep.subr.bf16.mxu0 0
  %881 = vmatpush1.bf16.msra.mxu0 0
  %882 = vmatprep.subr.bf16.mxu0 0
  %883 = vmatpush1.bf16.msra.mxu0 0
  %884 = vmatprep.subr.bf16.mxu0 0
  %885 = vmatpush1.bf16.msra.mxu0 0
  %886 = vmatprep.subr.bf16.mxu0 0
  %887 = vmatpush1.bf16.msra.mxu0 0
  %888 = vmatprep.subr.bf16.mxu0 0
  %889 = vmatpush1.bf16.msra.mxu0 0
  %890 = vmatprep.subr.bf16.mxu0 0
  %891 = vmatpush1.bf16.msra.mxu0 0
  %892 = vmatprep.subr.bf16.mxu0 0
  %893 = vmatpush1.bf16.msra.mxu0 0
  %894 = vmatprep.subr.bf16.mxu0 0
  %895 = vmatpush1.bf16.msra.mxu0 0
  %896 = vmatprep.subr.bf16.mxu0 0
  %897 = vmatpush1.bf16.msra.mxu0 0
  %898 = vmatprep.subr.bf16.mxu0 0
  %899 = vmatpush1.bf16.msra.mxu0 0
  %900 = vmatprep.subr.bf16.mxu0 0
  %901 = vmatpush1.bf16.msra.mxu0 0
  %902 = vmatprep.mubr.bf16.mxu0 0
  %903 = vmatmul.mubr.bf16.gmra.mrb[0].mxu0 %v868
  %v904 = vpop.f32.mrb[0].mxu0
  %v905 = vadd.f32 0.0, %v904
  %v906 = vpop.f32.mrb[0].mxu0
  %v907 = vadd.f32 0.0, %v906
  %v908 = vpop.f32.mrb[0].mxu0
  %v909 = vpop.f32.mrb[0].mxu0
  %910 = vdwg.mxu0
  %v911 = vadd.f32 %v861, %v905
  %v912 = vadd.f32 %v862, %v907
  %v913 = vxor.u32 %v911, 2147483648
  %v914 = vxor.u32 %v912, 2147483648
  %v915 = vmul.f32 %v913, 1.442695
  %v916 = vpow.pop %v915
  %v917 = vmul.f32 %v914, 1.442695
  %v918 = vpow.pop %v917
  %v919 = vadd.f32 %v916, 1.0
  %v920 = vadd.f32 %v918, 1.0
  %v921 = vrcp.pop %v919
  %v922 = vmul.f32 1.0, %v921
  %v923 = vrcp.pop %v920
  %v924 = vmul.f32 1.0, %v923
  %v925 = vmul.f32 %v922, 2.0
  %v926 = vmul.f32 %v924, 2.0
  %v927 = vsub.f32 %v925, 1.0
  %v928 = vsub.f32 %v926, 1.0
  %v929 = vsel %vm28, %v927, %v922
  %v930 = vsel %vm29, %v928, %v924
  %v931 = vmul.f32 %v929, %v848
  %v932 = vmul.f32 %v929, %v930
  %934 = vrot.lane.b32.xlu0 %v932, 64
  %v935 = vpop.permute.xlu0 %934
  %v937 = vadd.f32 %v931, %v935
  %v938 = vtanh.pop %v937
  %v939 = vmul.f32 %v930, %v938
  %941 = vrot.lane.b32.xlu0 %v939, 64
  %v942 = vpop.permute.xlu0 %941
  %944 = vst.msk [vmem:[%s483] sm:$0xff] %vm383, %v942
  %945 = vst.msk [vmem:[%s481] sm:$0xff] %vm386, %v942
  %v946 = vld [vmem:[%s261] sm:$0xff]
  %v947 = vld [vmem:[%s261 + $0x8] sm:$0xff]
  %v948 = vld [vmem:[%s256] sm:$0xff]
  %v949 = vld [vmem:[%s256 + $0x8] sm:$0xff]
  %v950 = vsel %vm54, %v946, %v948
  %v951 = vsel %vm55, %v947, %v949
  %v952 = vpack.c.bf16 %v939, %v939
  %954 = vrot.lane.b32.xlu0 %v952, 64
  %v955 = vpop.permute.xlu0 %954
  %v957 = vsel %vm152, %v955, 0
  %959 = vmatprep.subr.bf16.mxu0 %v291
  %960 = vmatpush1.bf16.msra.mxu0 %v290
  %961 = vmatprep.subr.bf16.mxu0 %v293
  %962 = vmatpush1.bf16.msra.mxu0 %v292
  %963 = vmatprep.subr.bf16.mxu0 %v295
  %964 = vmatpush1.bf16.msra.mxu0 %v294
  %965 = vmatprep.subr.bf16.mxu0 %v297
  %966 = vmatpush1.bf16.msra.mxu0 %v296
  %967 = vmatprep.subr.bf16.mxu0 0
  %968 = vmatpush1.bf16.msra.mxu0 0
  %969 = vmatprep.subr.bf16.mxu0 0
  %970 = vmatpush1.bf16.msra.mxu0 0
  %971 = vmatprep.subr.bf16.mxu0 0
  %972 = vmatpush1.bf16.msra.mxu0 0
  %973 = vmatprep.subr.bf16.mxu0 0
  %974 = vmatpush1.bf16.msra.mxu0 0
  %975 = vmatprep.subr.bf16.mxu0 0
  %976 = vmatpush1.bf16.msra.mxu0 0
  %977 = vmatprep.subr.bf16.mxu0 0
  %978 = vmatpush1.bf16.msra.mxu0 0
  %979 = vmatprep.subr.bf16.mxu0 0
  %980 = vmatpush1.bf16.msra.mxu0 0
  %981 = vmatprep.subr.bf16.mxu0 0
  %982 = vmatpush1.bf16.msra.mxu0 0
  %983 = vmatprep.subr.bf16.mxu0 0
  %984 = vmatpush1.bf16.msra.mxu0 0
  %985 = vmatprep.subr.bf16.mxu0 0
  %986 = vmatpush1.bf16.msra.mxu0 0
  %987 = vmatprep.subr.bf16.mxu0 0
  %988 = vmatpush1.bf16.msra.mxu0 0
  %989 = vmatprep.subr.bf16.mxu0 0
  %990 = vmatpush1.bf16.msra.mxu0 0
  %991 = vmatprep.mubr.bf16.mxu0 0
  %992 = vmatmul.mubr.bf16.gmra.mrb[0].mxu0 %v957
  %v993 = vpop.f32.mrb[0].mxu0
  %v994 = vadd.f32 0.0, %v993
  %v995 = vpop.f32.mrb[0].mxu0
  %v996 = vadd.f32 0.0, %v995
  %v997 = vpop.f32.mrb[0].mxu0
  %v998 = vpop.f32.mrb[0].mxu0
  %999 = vdwg.mxu0
  %v1000 = vadd.f32 %v950, %v994
  %v1001 = vadd.f32 %v951, %v996
  %v1002 = vxor.u32 %v1000, 2147483648
  %v1003 = vxor.u32 %v1001, 2147483648
  %v1004 = vmul.f32 %v1002, 1.442695
  %v1005 = vpow.pop %v1004
  %v1006 = vmul.f32 %v1003, 1.442695
  %v1007 = vpow.pop %v1006
  %v1008 = vadd.f32 %v1005, 1.0
  %v1009 = vadd.f32 %v1007, 1.0
  %v1010 = vrcp.pop %v1008
  %v1011 = vmul.f32 1.0, %v1010
  %v1012 = vrcp.pop %v1009
  %v1013 = vmul.f32 1.0, %v1012
  %v1014 = vmul.f32 %v1011, 2.0
  %v1015 = vmul.f32 %v1013, 2.0
  %v1016 = vsub.f32 %v1014, 1.0
  %v1017 = vsub.f32 %v1015, 1.0
  %v1018 = vsel %vm28, %v1016, %v1011
  %v1019 = vsel %vm29, %v1017, %v1013
  %v1020 = vmul.f32 %v1018, %v937
  %v1021 = vmul.f32 %v1018, %v1019
  %1023 = vrot.lane.b32.xlu0 %v1021, 64
  %v1024 = vpop.permute.xlu0 %1023
  %v1026 = vadd.f32 %v1020, %v1024
  %v1027 = vtanh.pop %v1026
  %v1028 = vmul.f32 %v1019, %v1027
  %1030 = vrot.lane.b32.xlu0 %v1028, 64
  %v1031 = vpop.permute.xlu0 %1030
  %1033 = vst.msk [vmem:[%s385] sm:$0xff] %vm383, %v1031
  %1034 = vst.msk [vmem:[#allocation3] sm:$0xff] %vm386, %v1031
  %v1035 = vld [vmem:[#allocation3] sm:$0xff]
  %v1036 = vld [vmem:[#allocation3 + $0x8] sm:$0xff]
  %v1037 = vld [vmem:[#allocation3 + $0x10] sm:$0xff]
  %v1038 = vld [vmem:[#allocation3 + $0x18] sm:$0xff]
  %v1039 = vld [vmem:[#allocation3 + $0x20] sm:$0xff]
  %v1040 = vld [vmem:[#allocation3 + $0x28] sm:$0xff]
  %v1041 = vld [vmem:[#allocation3 + $0x30] sm:$0xff]
  %v1042 = vld [vmem:[#allocation3 + $0x38] sm:$0xff]
  %v1043 = vpack.c.bf16 %v1036, %v1035
  %v1044 = vpack.c.bf16 %v1038, %v1037
  %v1045 = vpack.c.bf16 %v1040, %v1039
  %v1046 = vpack.c.bf16 %v1042, %v1041
  %s1047 = scalar_lea.vmem %s1, 128
  %v1048 = vld [vmem:[%s1047] sm:$0xff]
  %v1049 = vld [vmem:[%s1047 + $0x8] sm:$0xff]
  %v1050 = vld [vmem:[%s1047 + $0x10] sm:$0xff]
  %v1051 = vld [vmem:[%s1047 + $0x18] sm:$0xff]
  %v1052 = vld [vmem:[%s1047 + $0x20] sm:$0xff]
  %v1053 = vld [vmem:[%s1047 + $0x28] sm:$0xff]
  %v1054 = vld [vmem:[%s1047 + $0x30] sm:$0xff]
  %v1055 = vld [vmem:[%s1047 + $0x38] sm:$0xff]
  %v1056 = vld [vmem:[%s1047 + $0x40] sm:$0xff]
  %v1057 = vld [vmem:[%s1047 + $0x48] sm:$0xff]
  %v1058 = vld [vmem:[%s1047 + $0x50] sm:$0xff]
  %v1059 = vld [vmem:[%s1047 + $0x58] sm:$0xff]
  %v1060 = vld [vmem:[%s1047 + $0x60] sm:$0xff]
  %v1061 = vld [vmem:[%s1047 + $0x68] sm:$0xff]
  %v1062 = vld [vmem:[%s1047 + $0x70] sm:$0xff]
  %v1063 = vld [vmem:[%s1047 + $0x78] sm:$0xff]
  %s1064 = scalar_lea.vmem %s2, 1
  %v1065 = vld [vmem:[%s1064] ss:$2 sm:$0x3]
  %v1067 = vlaneseq
  %v1068 = vshrl.u32 %v1067, 7
  %v1069 = vsub.s32 0, %v1068
  %v1070 = vrot.slane %v1065, %v1069
  %v1071 = vlaneseq
  %v1072 = vshrl.u32 %v1071, 7
  %v1073 = vsub.s32 1, %v1072
  %v1074 = vrot.slane %v1065, %v1073
  %v1085 = vunpack.c.l.b16 %v1048
  %v1086 = vunpack.c.h.b16 %v1048
  %v1087 = vunpack.c.l.b16 %v1049
  %v1088 = vunpack.c.h.b16 %v1049
  %v1089 = vunpack.c.l.b16 %v1050
  %v1090 = vunpack.c.h.b16 %v1050
  %v1091 = vunpack.c.l.b16 %v1051
  %v1092 = vunpack.c.h.b16 %v1051
  %v1093 = vunpack.c.l.b16 %v1052
  %v1094 = vunpack.c.h.b16 %v1052
  %v1095 = vunpack.c.l.b16 %v1053
  %v1096 = vunpack.c.h.b16 %v1053
  %v1097 = vunpack.c.l.b16 %v1054
  %v1098 = vunpack.c.h.b16 %v1054
  %v1099 = vunpack.c.l.b16 %v1055
  %v1100 = vunpack.c.h.b16 %v1055
  %v1101 = vpack.c.b16 %v1087, %v1085
  %v1102 = vpack.c.b16 %v1088, %v1086
  %v1103 = vpack.c.b16 %v1091, %v1089
  %v1104 = vpack.c.b16 %v1092, %v1090
  %v1105 = vpack.c.b16 %v1095, %v1093
  %v1106 = vpack.c.b16 %v1096, %v1094
  %v1107 = vpack.c.b16 %v1099, %v1097
  %v1108 = vpack.c.b16 %v1100, %v1098
  %v1118 = vsel %vm152, %v1043, 0
  %v1121 = vsel %vm152, %v1044, 0
  %v1124 = vsel %vm152, %v1045, 0
  %v1127 = vsel %vm152, %v1046, 0
  %1129 = vmatprep.subr.bf16.mxu0 %v1102
  %1130 = vmatpush1.bf16.msra.mxu0 %v1101
  %1131 = vmatprep.subr.bf16.mxu0 %v1104
  %1132 = vmatpush1.bf16.msra.mxu0 %v1103
  %1133 = vmatprep.subr.bf16.mxu0 %v1106
  %1134 = vmatpush1.bf16.msra.mxu0 %v1105
  %1135 = vmatprep.subr.bf16.mxu0 %v1108
  %1136 = vmatpush1.bf16.msra.mxu0 %v1107
  %1137 = vmatprep.subr.bf16.mxu0 0
  %1138 = vmatpush1.bf16.msra.mxu0 0
  %1139 = vmatprep.subr.bf16.mxu0 0
  %1140 = vmatpush1.bf16.msra.mxu0 0
  %1141 = vmatprep.subr.bf16.mxu0 0
  %1142 = vmatpush1.bf16.msra.mxu0 0
  %1143 = vmatprep.subr.bf16.mxu0 0
  %1144 = vmatpush1.bf16.msra.mxu0 0
  %1145 = vmatprep.subr.bf16.mxu0 0
  %1146 = vmatpush1.bf16.msra.mxu0 0
  %1147 = vmatprep.subr.bf16.mxu0 0
  %1148 = vmatpush1.bf16.msra.mxu0 0
  %1149 = vmatprep.subr.bf16.mxu0 0
  %1150 = vmatpush1.bf16.msra.mxu0 0
  %1151 = vmatprep.subr.bf16.mxu0 0
  %1152 = vmatpush1.bf16.msra.mxu0 0
  %1153 = vmatprep.subr.bf16.mxu0 0
  %1154 = vmatpush1.bf16.msra.mxu0 0
  %1155 = vmatprep.subr.bf16.mxu0 0
  %1156 = vmatpush1.bf16.msra.mxu0 0
  %1157 = vmatprep.subr.bf16.mxu0 0
  %1158 = vmatpush1.bf16.msra.mxu0 0
  %1159 = vmatprep.subr.bf16.mxu0 0
  %1160 = vmatpush1.bf16.msra.mxu0 0
  %1161 = vmatprep.mubr.bf16.mxu0 0
  %1162 = vmatmul.mubr.bf16.gmra.mrb[0].mxu0 %v1118
  %v1163 = vpop.f32.mrb[0].mxu0
  %v1164 = vadd.f32 %v1070, %v1163
  %v1165 = vpop.f32.mrb[0].mxu0
  %v1166 = vadd.f32 %v1074, %v1165
  %v1167 = vpop.f32.mrb[0].mxu0
  %v1168 = vadd.f32 %v1070, %v1167
  %v1169 = vpop.f32.mrb[0].mxu0
  %v1170 = vadd.f32 %v1074, %v1169
  %1171 = vmatprep.mubr.bf16.mxu0 0
  %1172 = vmatmul.mubr.bf16.gmra.mrb[0].mxu0 %v1121
  %v1173 = vpop.f32.mrb[0].mxu0
  %v1174 = vadd.f32 %v1070, %v1173
  %v1175 = vpop.f32.mrb[0].mxu0
  %v1176 = vadd.f32 %v1074, %v1175
  %v1177 = vpop.f32.mrb[0].mxu0
  %v1178 = vadd.f32 %v1070, %v1177
  %v1179 = vpop.f32.mrb[0].mxu0
  %v1180 = vadd.f32 %v1074, %v1179
  %1181 = vmatprep.mubr.bf16.mxu0 0
  %1182 = vmatmul.mubr.bf16.gmra.mrb[0].mxu0 %v1124
  %v1183 = vpop.f32.mrb[0].mxu0
  %v1184 = vadd.f32 %v1070, %v1183
  %v1185 = vpop.f32.mrb[0].mxu0
  %v1186 = vadd.f32 %v1074, %v1185
  %v1187 = vpop.f32.mrb[0].mxu0
  %v1188 = vadd.f32 %v1070, %v1187
  %v1189 = vpop.f32.mrb[0].mxu0
  %v1190 = vadd.f32 %v1074, %v1189
  %1191 = vmatprep.mubr.bf16.mxu0 0
  %1192 = vmatmul.mubr.bf16.gmra.mrb[0].mxu0 %v1127
  %v1193 = vpop.f32.mrb[0].mxu0
  %v1194 = vadd.f32 %v1070, %v1193
  %v1195 = vpop.f32.mrb[0].mxu0
  %v1196 = vadd.f32 %v1074, %v1195
  %v1197 = vpop.f32.mrb[0].mxu0
  %v1198 = vadd.f32 %v1070, %v1197
  %v1199 = vpop.f32.mrb[0].mxu0
  %v1200 = vadd.f32 %v1074, %v1199
  %1201 = vdwg.mxu0
  %1202 = vst [vmem:[#allocation2] sm:$0xff] %v1164
  %1203 = vst [vmem:[#allocation2 + $0x8] sm:$0xff] %v1166
  %1204 = vst [vmem:[#allocation2 + $0x10] sm:$0xff] %v1168
  %1205 = vst [vmem:[#allocation2 + $0x18] sm:$0xff] %v1170
  %1206 = vst [vmem:[#allocation2 + $0x20] sm:$0xff] %v1174
  %1207 = vst [vmem:[#allocation2 + $0x28] sm:$0xff] %v1176
  %1208 = vst [vmem:[#allocation2 + $0x30] sm:$0xff] %v1178
  %1209 = vst [vmem:[#allocation2 + $0x38] sm:$0xff] %v1180
  %1210 = vst [vmem:[#allocation2 + $0x40] sm:$0xff] %v1184
  %1211 = vst [vmem:[#allocation2 + $0x48] sm:$0xff] %v1186
  %1212 = vst [vmem:[#allocation2 + $0x50] sm:$0xff] %v1188
  %1213 = vst [vmem:[#allocation2 + $0x58] sm:$0xff] %v1190
  %1214 = vst [vmem:[#allocation2 + $0x60] sm:$0xff] %v1194
  %1215 = vst [vmem:[#allocation2 + $0x68] sm:$0xff] %v1196
  %1216 = vst [vmem:[#allocation2 + $0x70] sm:$0xff] %v1198
  %1217 = vst [vmem:[#allocation2 + $0x78] sm:$0xff] %v1200
  %v1218 = vld [vmem:[%s256] sm:$0xff]
  %v1219 = vld [vmem:[%s256 + $0x8] sm:$0xff]
  %v1220 = vld [vmem:[%s261] sm:$0xff]
  %v1221 = vld [vmem:[%s261 + $0x8] sm:$0xff]
  %v1222 = vsel %vm54, %v1218, %v1220
  %v1223 = vsel %vm55, %v1219, %v1221
  %v1232 = vunpack.c.l.b16 %v1056
  %v1233 = vunpack.c.h.b16 %v1056
  %v1234 = vunpack.c.l.b16 %v1057
  %v1235 = vunpack.c.h.b16 %v1057
  %v1236 = vunpack.c.l.b16 %v1058
  %v1237 = vunpack.c.h.b16 %v1058
  %v1238 = vunpack.c.l.b16 %v1059
  %v1239 = vunpack.c.h.b16 %v1059
  %v1240 = vunpack.c.l.b16 %v1060
  %v1241 = vunpack.c.h.b16 %v1060
  %v1242 = vunpack.c.l.b16 %v1061
  %v1243 = vunpack.c.h.b16 %v1061
  %v1244 = vunpack.c.l.b16 %v1062
  %v1245 = vunpack.c.h.b16 %v1062
  %v1246 = vunpack.c.l.b16 %v1063
  %v1247 = vunpack.c.h.b16 %v1063
  %v1248 = vpack.c.b16 %v1234, %v1232
  %v1249 = vpack.c.b16 %v1235, %v1233
  %v1250 = vpack.c.b16 %v1238, %v1236
  %v1251 = vpack.c.b16 %v1239, %v1237
  %v1252 = vpack.c.b16 %v1242, %v1240
  %v1253 = vpack.c.b16 %v1243, %v1241
  %v1254 = vpack.c.b16 %v1246, %v1244
  %v1255 = vpack.c.b16 %v1247, %v1245
  %1264 = vmatprep.subr.bf16.mxu0 %v1249
  %1265 = vmatpush1.bf16.msra.mxu0 %v1248
  %1266 = vmatprep.subr.bf16.mxu0 %v1251
  %1267 = vmatpush1.bf16.msra.mxu0 %v1250
  %1268 = vmatprep.subr.bf16.mxu0 %v1253
  %1269 = vmatpush1.bf16.msra.mxu0 %v1252
  %1270 = vmatprep.subr.bf16.mxu0 %v1255
  %1271 = vmatpush1.bf16.msra.mxu0 %v1254
  %1272 = vmatprep.subr.bf16.mxu0 0
  %1273 = vmatpush1.bf16.msra.mxu0 0
  %1274 = vmatprep.subr.bf16.mxu0 0
  %1275 = vmatpush1.bf16.msra.mxu0 0
  %1276 = vmatprep.subr.bf16.mxu0 0
  %1277 = vmatpush1.bf16.msra.mxu0 0
  %1278 = vmatprep.subr.bf16.mxu0 0
  %1279 = vmatpush1.bf16.msra.mxu0 0
  %1280 = vmatprep.subr.bf16.mxu0 0
  %1281 = vmatpush1.bf16.msra.mxu0 0
  %1282 = vmatprep.subr.bf16.mxu0 0
  %1283 = vmatpush1.bf16.msra.mxu0 0
  %1284 = vmatprep.subr.bf16.mxu0 0
  %1285 = vmatpush1.bf16.msra.mxu0 0
  %1286 = vmatprep.subr.bf16.mxu0 0
  %1287 = vmatpush1.bf16.msra.mxu0 0
  %1288 = vmatprep.subr.bf16.mxu0 0
  %1289 = vmatpush1.bf16.msra.mxu0 0
  %1290 = vmatprep.subr.bf16.mxu0 0
  %1291 = vmatpush1.bf16.msra.mxu0 0
  %1292 = vmatprep.subr.bf16.mxu0 0
  %1293 = vmatpush1.bf16.msra.mxu0 0
  %1294 = vmatprep.subr.bf16.mxu0 0
  %1295 = vmatpush1.bf16.msra.mxu0 0
  %1296 = vmatprep.mubr.bf16.mxu0 0
  %1297 = vmatmul.mubr.bf16.gmra.mrb[0].mxu0 %v307
  %v1298 = vpop.f32.mrb[0].mxu0
  %v1299 = vadd.f32 0.0, %v1298
  %v1300 = vpop.f32.mrb[0].mxu0
  %v1301 = vadd.f32 0.0, %v1300
  %v1302 = vpop.f32.mrb[0].mxu0
  %v1303 = vpop.f32.mrb[0].mxu0
  %1304 = vdwg.mxu0
  %v1305 = vadd.f32 %v1222, %v1299
  %v1306 = vadd.f32 %v1223, %v1301
  %v1307 = vxor.u32 %v1305, 2147483648
  %v1308 = vxor.u32 %v1306, 2147483648
  %v1309 = vmul.f32 %v1307, 1.442695
  %v1310 = vpow.pop %v1309
  %v1311 = vmul.f32 %v1308, 1.442695
  %v1312 = vpow.pop %v1311
  %v1313 = vadd.f32 %v1310, 1.0
  %v1314 = vadd.f32 %v1312, 1.0
  %v1315 = vrcp.pop %v1313
  %v1316 = vmul.f32 1.0, %v1315
  %v1317 = vrcp.pop %v1314
  %v1318 = vmul.f32 1.0, %v1317
  %v1319 = vmul.f32 %v1316, 2.0
  %v1320 = vmul.f32 %v1318, 2.0
  %v1321 = vsub.f32 %v1319, 1.0
  %v1322 = vsub.f32 %v1320, 1.0
  %v1323 = vsel %vm28, %v1321, %v1316
  %v1324 = vsel %vm29, %v1322, %v1318
  %v1325 = vmul.f32 %v1323, 0.0
  %v1326 = vmul.f32 %v1323, %v1324
  %1328 = vrot.lane.b32.xlu0 %v1326, 64
  %v1329 = vpop.permute.xlu0 %1328
  %v1331 = vadd.f32 %v1325, %v1329
  %v1332 = vtanh.pop %v1331
  %v1333 = vmul.f32 %v1324, %v1332
  %1335 = vrot.lane.b32.xlu0 %v1333, 64
  %v1336 = vpop.permute.xlu0 %1335
  %1338 = vst.msk [vmem:[#allocation4] sm:$0xff] %vm383, %v1336
  %s1339 = scalar_lea.vmem [#allocation4], 56
  %1340 = vst.msk [vmem:[%s1339] sm:$0xff] %vm386, %v1336
  %v1341 = vld [vmem:[%s390] sm:$0xff]
  %v1342 = vld [vmem:[%s390 + $0x8] sm:$0xff]
  %v1343 = vld [vmem:[%s395] sm:$0xff]
  %v1344 = vld [vmem:[%s395 + $0x8] sm:$0xff]
  %v1345 = vsel %vm54, %v1341, %v1343
  %v1346 = vsel %vm55, %v1342, %v1344
  %v1347 = vpack.c.bf16 %v1333, %v1333
  %1349 = vrot.lane.b32.xlu0 %v1347, 64
  %v1350 = vpop.permute.xlu0 %1349
  %v1352 = vsel %vm152, %v1350, 0
  %1354 = vmatprep.subr.bf16.mxu0 %v1249
  %1355 = vmatpush1.bf16.msra.mxu0 %v1248
  %1356 = vmatprep.subr.bf16.mxu0 %v1251
  %1357 = vmatpush1.bf16.msra.mxu0 %v1250
  %1358 = vmatprep.subr.bf16.mxu0 %v1253
  %1359 = vmatpush1.bf16.msra.mxu0 %v1252
  %1360 = vmatprep.subr.bf16.mxu0 %v1255
  %1361 = vmatpush1.bf16.msra.mxu0 %v1254
  %1362 = vmatprep.subr.bf16.mxu0 0
  %1363 = vmatpush1.bf16.msra.mxu0 0
  %1364 = vmatprep.subr.bf16.mxu0 0
  %1365 = vmatpush1.bf16.msra.mxu0 0
  %1366 = vmatprep.subr.bf16.mxu0 0
  %1367 = vmatpush1.bf16.msra.mxu0 0
  %1368 = vmatprep.subr.bf16.mxu0 0
  %1369 = vmatpush1.bf16.msra.mxu0 0
  %1370 = vmatprep.subr.bf16.mxu0 0
  %1371 = vmatpush1.bf16.msra.mxu0 0
  %1372 = vmatprep.subr.bf16.mxu0 0
  %1373 = vmatpush1.bf16.msra.mxu0 0
  %1374 = vmatprep.subr.bf16.mxu0 0
  %1375 = vmatpush1.bf16.msra.mxu0 0
  %1376 = vmatprep.subr.bf16.mxu0 0
  %1377 = vmatpush1.bf16.msra.mxu0 0
  %1378 = vmatprep.subr.bf16.mxu0 0
  %1379 = vmatpush1.bf16.msra.mxu0 0
  %1380 = vmatprep.subr.bf16.mxu0 0
  %1381 = vmatpush1.bf16.msra.mxu0 0
  %1382 = vmatprep.subr.bf16.mxu0 0
  %1383 = vmatpush1.bf16.msra.mxu0 0
  %1384 = vmatprep.subr.bf16.mxu0 0
  %1385 = vmatpush1.bf16.msra.mxu0 0
  %1386 = vmatprep.mubr.bf16.mxu0 0
  %1387 = vmatmul.mubr.bf16.gmra.mrb[0].mxu0 %v1352
  %v1388 = vpop.f32.mrb[0].mxu0
  %v1389 = vadd.f32 0.0, %v1388
  %v1390 = vpop.f32.mrb[0].mxu0
  %v1391 = vadd.f32 0.0, %v1390
  %v1392 = vpop.f32.mrb[0].mxu0
  %v1393 = vpop.f32.mrb[0].mxu0
  %1394 = vdwg.mxu0
  %v1395 = vadd.f32 %v1345, %v1389
  %v1396 = vadd.f32 %v1346, %v1391
  %v1397 = vxor.u32 %v1395, 2147483648
  %v1398 = vxor.u32 %v1396, 2147483648
  %v1399 = vmul.f32 %v1397, 1.442695
  %v1400 = vpow.pop %v1399
  %v1401 = vmul.f32 %v1398, 1.442695
  %v1402 = vpow.pop %v1401
  %v1403 = vadd.f32 %v1400, 1.0
  %v1404 = vadd.f32 %v1402, 1.0
  %v1405 = vrcp.pop %v1403
  %v1406 = vmul.f32 1.0, %v1405
  %v1407 = vrcp.pop %v1404
  %v1408 = vmul.f32 1.0, %v1407
  %v1409 = vmul.f32 %v1406, 2.0
  %v1410 = vmul.f32 %v1408, 2.0
  %v1411 = vsub.f32 %v1409, 1.0
  %v1412 = vsub.f32 %v1410, 1.0
  %v1413 = vsel %vm28, %v1411, %v1406
  %v1414 = vsel %vm29, %v1412, %v1408
  %v1415 = vmul.f32 %v1413, %v1331
  %v1416 = vmul.f32 %v1413, %v1414
  %1418 = vrot.lane.b32.xlu0 %v1416, 64
  %v1419 = vpop.permute.xlu0 %1418
  %v1421 = vadd.f32 %v1415, %v1419
  %v1422 = vtanh.pop %v1421
  %v1423 = vmul.f32 %v1414, %v1422
  %1425 = vrot.lane.b32.xlu0 %v1423, 64
  %v1426 = vpop.permute.xlu0 %1425
  %s1428 = scalar_lea.vmem [#allocation4], 8
  %1429 = vst.msk [vmem:[%s1428] sm:$0xff] %vm383, %v1426
  %s1430 = scalar_lea.vmem [#allocation4], 48
  %1431 = vst.msk [vmem:[%s1430] sm:$0xff] %vm386, %v1426
  %v1432 = vld [vmem:[%s487] sm:$0xff]
  %v1433 = vld [vmem:[%s487 + $0x8] sm:$0xff]
  %v1434 = vld [vmem:[%s492] sm:$0xff]
  %v1435 = vld [vmem:[%s492 + $0x8] sm:$0xff]
  %v1436 = vsel %vm54, %v1432, %v1434
  %v1437 = vsel %vm55, %v1433, %v1435
  %v1438 = vpack.c.bf16 %v1423, %v1423
  %1440 = vrot.lane.b32.xlu0 %v1438, 64
  %v1441 = vpop.permute.xlu0 %1440
  %v1443 = vsel %vm152, %v1441, 0
  %1445 = vmatprep.subr.bf16.mxu0 %v1249
  %1446 = vmatpush1.bf16.msra.mxu0 %v1248
  %1447 = vmatprep.subr.bf16.mxu0 %v1251
  %1448 = vmatpush1.bf16.msra.mxu0 %v1250
  %1449 = vmatprep.subr.bf16.mxu0 %v1253
  %1450 = vmatpush1.bf16.msra.mxu0 %v1252
  %1451 = vmatprep.subr.bf16.mxu0 %v1255
  %1452 = vmatpush1.bf16.msra.mxu0 %v1254
  %1453 = vmatprep.subr.bf16.mxu0 0
  %1454 = vmatpush1.bf16.msra.mxu0 0
  %1455 = vmatprep.subr.bf16.mxu0 0
  %1456 = vmatpush1.bf16.msra.mxu0 0
  %1457 = vmatprep.subr.bf16.mxu0 0
  %1458 = vmatpush1.bf16.msra.mxu0 0
  %1459 = vmatprep.subr.bf16.mxu0 0
  %1460 = vmatpush1.bf16.msra.mxu0 0
  %1461 = vmatprep.subr.bf16.mxu0 0
  %1462 = vmatpush1.bf16.msra.mxu0 0
  %1463 = vmatprep.subr.bf16.mxu0 0
  %1464 = vmatpush1.bf16.msra.mxu0 0
  %1465 = vmatprep.subr.bf16.mxu0 0
  %1466 = vmatpush1.bf16.msra.mxu0 0
  %1467 = vmatprep.subr.bf16.mxu0 0
  %1468 = vmatpush1.bf16.msra.mxu0 0
  %1469 = vmatprep.subr.bf16.mxu0 0
  %1470 = vmatpush1.bf16.msra.mxu0 0
  %1471 = vmatprep.subr.bf16.mxu0 0
  %1472 = vmatpush1.bf16.msra.mxu0 0
  %1473 = vmatprep.subr.bf16.mxu0 0
  %1474 = vmatpush1.bf16.msra.mxu0 0
  %1475 = vmatprep.subr.bf16.mxu0 0
  %1476 = vmatpush1.bf16.msra.mxu0 0
  %1477 = vmatprep.mubr.bf16.mxu0 0
  %1478 = vmatmul.mubr.bf16.gmra.mrb[0].mxu0 %v1443
  %v1479 = vpop.f32.mrb[0].mxu0
  %v1480 = vadd.f32 0.0, %v1479
  %v1481 = vpop.f32.mrb[0].mxu0
  %v1482 = vadd.f32 0.0, %v1481
  %v1483 = vpop.f32.mrb[0].mxu0
  %v1484 = vpop.f32.mrb[0].mxu0
  %1485 = vdwg.mxu0
  %v1486 = vadd.f32 %v1436, %v1480
  %v1487 = vadd.f32 %v1437, %v1482
  %v1488 = vxor.u32 %v1486, 2147483648
  %v1489 = vxor.u32 %v1487, 2147483648
  %v1490 = vmul.f32 %v1488, 1.442695
  %v1491 = vpow.pop %v1490
  %v1492 = vmul.f32 %v1489, 1.442695
  %v1493 = vpow.pop %v1492
  %v1494 = vadd.f32 %v1491, 1.0
  %v1495 = vadd.f32 %v1493, 1.0
  %v1496 = vrcp.pop %v1494
  %v1497 = vmul.f32 1.0, %v1496
  %v1498 = vrcp.pop %v1495
  %v1499 = vmul.f32 1.0, %v1498
  %v1500 = vmul.f32 %v1497, 2.0
  %v1501 = vmul.f32 %v1499, 2.0
  %v1502 = vsub.f32 %v1500, 1.0
  %v1503 = vsub.f32 %v1501, 1.0
  %v1504 = vsel %vm28, %v1502, %v1497
  %v1505 = vsel %vm29, %v1503, %v1499
  %v1506 = vmul.f32 %v1504, %v1421
  %v1507 = vmul.f32 %v1504, %v1505
  %1509 = vrot.lane.b32.xlu0 %v1507, 64
  %v1510 = vpop.permute.xlu0 %1509
  %v1512 = vadd.f32 %v1506, %v1510
  %v1513 = vtanh.pop %v1512
  %v1514 = vmul.f32 %v1505, %v1513
  %1516 = vrot.lane.b32.xlu0 %v1514, 64
  %v1517 = vpop.permute.xlu0 %1516
  %s1519 = scalar_lea.vmem [#allocation4], 16
  %1520 = vst.msk [vmem:[%s1519] sm:$0xff] %vm383, %v1517
  %s1521 = scalar_lea.vmem [#allocation4], 40
  %1522 = vst.msk [vmem:[%s1521] sm:$0xff] %vm386, %v1517
  %v1523 = vld [vmem:[%s584] sm:$0xff]
  %v1524 = vld [vmem:[%s584 + $0x8] sm:$0xff]
  %v1525 = vld [vmem:[%s589] sm:$0xff]
  %v1526 = vld [vmem:[%s589 + $0x8] sm:$0xff]
  %v1527 = vsel %vm54, %v1523, %v1525
  %v1528 = vsel %vm55, %v1524, %v1526
  %v1529 = vpack.c.bf16 %v1514, %v1514
  %1531 = vrot.lane.b32.xlu0 %v1529, 64
  %v1532 = vpop.permute.xlu0 %1531
  %v1534 = vsel %vm152, %v1532, 0
  %1536 = vmatprep.subr.bf16.mxu0 %v1249
  %1537 = vmatpush1.bf16.msra.mxu0 %v1248
  %1538 = vmatprep.subr.bf16.mxu0 %v1251
  %1539 = vmatpush1.bf16.msra.mxu0 %v1250
  %1540 = vmatprep.subr.bf16.mxu0 %v1253
  %1541 = vmatpush1.bf16.msra.mxu0 %v1252
  %1542 = vmatprep.subr.bf16.mxu0 %v1255
  %1543 = vmatpush1.bf16.msra.mxu0 %v1254
  %1544 = vmatprep.subr.bf16.mxu0 0
  %1545 = vmatpush1.bf16.msra.mxu0 0
  %1546 = vmatprep.subr.bf16.mxu0 0
  %1547 = vmatpush1.bf16.msra.mxu0 0
  %1548 = vmatprep.subr.bf16.mxu0 0
  %1549 = vmatpush1.bf16.msra.mxu0 0
  %1550 = vmatprep.subr.bf16.mxu0 0
  %1551 = vmatpush1.bf16.msra.mxu0 0
  %1552 = vmatprep.subr.bf16.mxu0 0
  %1553 = vmatpush1.bf16.msra.mxu0 0
  %1554 = vmatprep.subr.bf16.mxu0 0
  %1555 = vmatpush1.bf16.msra.mxu0 0
  %1556 = vmatprep.subr.bf16.mxu0 0
  %1557 = vmatpush1.bf16.msra.mxu0 0
  %1558 = vmatprep.subr.bf16.mxu0 0
  %1559 = vmatpush1.bf16.msra.mxu0 0
  %1560 = vmatprep.subr.bf16.mxu0 0
  %1561 = vmatpush1.bf16.msra.mxu0 0
  %1562 = vmatprep.subr.bf16.mxu0 0
  %1563 = vmatpush1.bf16.msra.mxu0 0
  %1564 = vmatprep.subr.bf16.mxu0 0
  %1565 = vmatpush1.bf16.msra.mxu0 0
  %1566 = vmatprep.subr.bf16.mxu0 0
  %1567 = vmatpush1.bf16.msra.mxu0 0
  %1568 = vmatprep.mubr.bf16.mxu0 0
  %1569 = vmatmul.mubr.bf16.gmra.mrb[0].mxu0 %v1534
  %v1570 = vpop.f32.mrb[0].mxu0
  %v1571 = vadd.f32 0.0, %v1570
  %v1572 = vpop.f32.mrb[0].mxu0
  %v1573 = vadd.f32 0.0, %v1572
  %v1574 = vpop.f32.mrb[0].mxu0
  %v1575 = vpop.f32.mrb[0].mxu0
  %1576 = vdwg.mxu0
  %v1577 = vadd.f32 %v1527, %v1571
  %v1578 = vadd.f32 %v1528, %v1573
  %v1579 = vxor.u32 %v1577, 2147483648
  %v1580 = vxor.u32 %v1578, 2147483648
  %v1581 = vmul.f32 %v1579, 1.442695
  %v1582 = vpow.pop %v1581
  %v1583 = vmul.f32 %v1580, 1.442695
  %v1584 = vpow.pop %v1583
  %v1585 = vadd.f32 %v1582, 1.0
  %v1586 = vadd.f32 %v1584, 1.0
  %v1587 = vrcp.pop %v1585
  %v1588 = vmul.f32 1.0, %v1587
  %v1589 = vrcp.pop %v1586
  %v1590 = vmul.f32 1.0, %v1589
  %v1591 = vmul.f32 %v1588, 2.0
  %v1592 = vmul.f32 %v1590, 2.0
  %v1593 = vsub.f32 %v1591, 1.0
  %v1594 = vsub.f32 %v1592, 1.0
  %v1595 = vsel %vm28, %v1593, %v1588
  %v1596 = vsel %vm29, %v1594, %v1590
  %v1597 = vmul.f32 %v1595, %v1512
  %v1598 = vmul.f32 %v1595, %v1596
  %1600 = vrot.lane.b32.xlu0 %v1598, 64
  %v1601 = vpop.permute.xlu0 %1600
  %v1603 = vadd.f32 %v1597, %v1601
  %v1604 = vtanh.pop %v1603
  %v1605 = vmul.f32 %v1596, %v1604
  %1607 = vrot.lane.b32.xlu0 %v1605, 64
  %v1608 = vpop.permute.xlu0 %1607
  %s1610 = scalar_lea.vmem [#allocation4], 24
  %1611 = vst.msk [vmem:[%s1610] sm:$0xff] %vm383, %v1608
  %s1612 = scalar_lea.vmem [#allocation4], 32
  %1613 = vst.msk [vmem:[%s1612] sm:$0xff] %vm386, %v1608
  %v1614 = vld [vmem:[%s589] sm:$0xff]
  %v1615 = vld [vmem:[%s589 + $0x8] sm:$0xff]
  %v1616 = vld [vmem:[%s584] sm:$0xff]
  %v1617 = vld [vmem:[%s584 + $0x8] sm:$0xff]
  %v1618 = vsel %vm54, %v1614, %v1616
  %v1619 = vsel %vm55, %v1615, %v1617
  %v1620 = vpack.c.bf16 %v1605, %v1605
  %1622 = vrot.lane.b32.xlu0 %v1620, 64
  %v1623 = vpop.permute.xlu0 %1622
  %v1625 = vsel %vm152, %v1623, 0
  %1627 = vmatprep.subr.bf16.mxu0 %v1249
  %1628 = vmatpush1.bf16.msra.mxu0 %v1248
  %1629 = vmatprep.subr.bf16.mxu0 %v1251
  %1630 = vmatpush1.bf16.msra.mxu0 %v1250
  %1631 = vmatprep.subr.bf16.mxu0 %v1253
  %1632 = vmatpush1.bf16.msra.mxu0 %v1252
  %1633 = vmatprep.subr.bf16.mxu0 %v1255
  %1634 = vmatpush1.bf16.msra.mxu0 %v1254
  %1635 = vmatprep.subr.bf16.mxu0 0
  %1636 = vmatpush1.bf16.msra.mxu0 0
  %1637 = vmatprep.subr.bf16.mxu0 0
  %1638 = vmatpush1.bf16.msra.mxu0 0
  %1639 = vmatprep.subr.bf16.mxu0 0
  %1640 = vmatpush1.bf16.msra.mxu0 0
  %1641 = vmatprep.subr.bf16.mxu0 0
  %1642 = vmatpush1.bf16.msra.mxu0 0
  %1643 = vmatprep.subr.bf16.mxu0 0
  %1644 = vmatpush1.bf16.msra.mxu0 0
  %1645 = vmatprep.subr.bf16.mxu0 0
  %1646 = vmatpush1.bf16.msra.mxu0 0
  %1647 = vmatprep.subr.bf16.mxu0 0
  %1648 = vmatpush1.bf16.msra.mxu0 0
  %1649 = vmatprep.subr.bf16.mxu0 0
  %1650 = vmatpush1.bf16.msra.mxu0 0
  %1651 = vmatprep.subr.bf16.mxu0 0
  %1652 = vmatpush1.bf16.msra.mxu0 0
  %1653 = vmatprep.subr.bf16.mxu0 0
  %1654 = vmatpush1.bf16.msra.mxu0 0
  %1655 = vmatprep.subr.bf16.mxu0 0
  %1656 = vmatpush1.bf16.msra.mxu0 0
  %1657 = vmatprep.subr.bf16.mxu0 0
  %1658 = vmatpush1.bf16.msra.mxu0 0
  %1659 = vmatprep.mubr.bf16.mxu0 0
  %1660 = vmatmul.mubr.bf16.gmra.mrb[0].mxu0 %v1625
  %v1661 = vpop.f32.mrb[0].mxu0
  %v1662 = vadd.f32 0.0, %v1661
  %v1663 = vpop.f32.mrb[0].mxu0
  %v1664 = vadd.f32 0.0, %v1663
  %v1665 = vpop.f32.mrb[0].mxu0
  %v1666 = vpop.f32.mrb[0].mxu0
  %1667 = vdwg.mxu0
  %v1668 = vadd.f32 %v1618, %v1662
  %v1669 = vadd.f32 %v1619, %v1664
  %v1670 = vxor.u32 %v1668, 2147483648
  %v1671 = vxor.u32 %v1669, 2147483648
  %v1672 = vmul.f32 %v1670, 1.442695
  %v1673 = vpow.pop %v1672
  %v1674 = vmul.f32 %v1671, 1.442695
  %v1675 = vpow.pop %v1674
  %v1676 = vadd.f32 %v1673, 1.0
  %v1677 = vadd.f32 %v1675, 1.0
  %v1678 = vrcp.pop %v1676
  %v1679 = vmul.f32 1.0, %v1678
  %v1680 = vrcp.pop %v1677
  %v1681 = vmul.f32 1.0, %v1680
  %v1682 = vmul.f32 %v1679, 2.0
  %v1683 = vmul.f32 %v1681, 2.0
  %v1684 = vsub.f32 %v1682, 1.0
  %v1685 = vsub.f32 %v1683, 1.0
  %v1686 = vsel %vm28, %v1684, %v1679
  %v1687 = vsel %vm29, %v1685, %v1681
  %v1688 = vmul.f32 %v1686, %v1603
  %v1689 = vmul.f32 %v1686, %v1687
  %1691 = vrot.lane.b32.xlu0 %v1689, 64
  %v1692 = vpop.permute.xlu0 %1691
  %v1694 = vadd.f32 %v1688, %v1692
  %v1695 = vtanh.pop %v1694
  %v1696 = vmul.f32 %v1687, %v1695
  %1698 = vrot.lane.b32.xlu0 %v1696, 64
  %v1699 = vpop.permute.xlu0 %1698
  %1701 = vst.msk [vmem:[%s1612] sm:$0xff] %vm383, %v1699
  %1702 = vst.msk [vmem:[%s1610] sm:$0xff] %vm386, %v1699
  %v1703 = vld [vmem:[%s492] sm:$0xff]
  %v1704 = vld [vmem:[%s492 + $0x8] sm:$0xff]
  %v1705 = vld [vmem:[%s487] sm:$0xff]
  %v1706 = vld [vmem:[%s487 + $0x8] sm:$0xff]
  %v1707 = vsel %vm54, %v1703, %v1705
  %v1708 = vsel %vm55, %v1704, %v1706
  %v1709 = vpack.c.bf16 %v1696, %v1696
  %1711 = vrot.lane.b32.xlu0 %v1709, 64
  %v1712 = vpop.permute.xlu0 %1711
  %v1714 = vsel %vm152, %v1712, 0
  %1716 = vmatprep.subr.bf16.mxu0 %v1249
  %1717 = vmatpush1.bf16.msra.mxu0 %v1248
  %1718 = vmatprep.subr.bf16.mxu0 %v1251
  %1719 = vmatpush1.bf16.msra.mxu0 %v1250
  %1720 = vmatprep.subr.bf16.mxu0 %v1253
  %1721 = vmatpush1.bf16.msra.mxu0 %v1252
  %1722 = vmatprep.subr.bf16.mxu0 %v1255
  %1723 = vmatpush1.bf16.msra.mxu0 %v1254
  %1724 = vmatprep.subr.bf16.mxu0 0
  %1725 = vmatpush1.bf16.msra.mxu0 0
  %1726 = vmatprep.subr.bf16.mxu0 0
  %1727 = vmatpush1.bf16.msra.mxu0 0
  %1728 = vmatprep.subr.bf16.mxu0 0
  %1729 = vmatpush1.bf16.msra.mxu0 0
  %1730 = vmatprep.subr.bf16.mxu0 0
  %1731 = vmatpush1.bf16.msra.mxu0 0
  %1732 = vmatprep.subr.bf16.mxu0 0
  %1733 = vmatpush1.bf16.msra.mxu0 0
  %1734 = vmatprep.subr.bf16.mxu0 0
  %1735 = vmatpush1.bf16.msra.mxu0 0
  %1736 = vmatprep.subr.bf16.mxu0 0
  %1737 = vmatpush1.bf16.msra.mxu0 0
  %1738 = vmatprep.subr.bf16.mxu0 0
  %1739 = vmatpush1.bf16.msra.mxu0 0
  %1740 = vmatprep.subr.bf16.mxu0 0
  %1741 = vmatpush1.bf16.msra.mxu0 0
  %1742 = vmatprep.subr.bf16.mxu0 0
  %1743 = vmatpush1.bf16.msra.mxu0 0
  %1744 = vmatprep.subr.bf16.mxu0 0
  %1745 = vmatpush1.bf16.msra.mxu0 0
  %1746 = vmatprep.subr.bf16.mxu0 0
  %1747 = vmatpush1.bf16.msra.mxu0 0
  %1748 = vmatprep.mubr.bf16.mxu0 0
  %1749 = vmatmul.mubr.bf16.gmra.mrb[0].mxu0 %v1714
  %v1750 = vpop.f32.mrb[0].mxu0
  %v1751 = vadd.f32 0.0, %v1750
  %v1752 = vpop.f32.mrb[0].mxu0
  %v1753 = vadd.f32 0.0, %v1752
  %v1754 = vpop.f32.mrb[0].mxu0
  %v1755 = vpop.f32.mrb[0].mxu0
  %1756 = vdwg.mxu0
  %v1757 = vadd.f32 %v1707, %v1751
  %v1758 = vadd.f32 %v1708, %v1753
  %v1759 = vxor.u32 %v1757, 2147483648
  %v1760 = vxor.u32 %v1758, 2147483648
  %v1761 = vmul.f32 %v1759, 1.442695
  %v1762 = vpow.pop %v1761
  %v1763 = vmul.f32 %v1760, 1.442695
  %v1764 = vpow.pop %v1763
  %v1765 = vadd.f32 %v1762, 1.0
  %v1766 = vadd.f32 %v1764, 1.0
  %v1767 = vrcp.pop %v1765
  %v1768 = vmul.f32 1.0, %v1767
  %v1769 = vrcp.pop %v1766
  %v1770 = vmul.f32 1.0, %v1769
  %v1771 = vmul.f32 %v1768, 2.0
  %v1772 = vmul.f32 %v1770, 2.0
  %v1773 = vsub.f32 %v1771, 1.0
  %v1774 = vsub.f32 %v1772, 1.0
  %v1775 = vsel %vm28, %v1773, %v1768
  %v1776 = vsel %vm29, %v1774, %v1770
  %v1777 = vmul.f32 %v1775, %v1694
  %v1778 = vmul.f32 %v1775, %v1776
  %1780 = vrot.lane.b32.xlu0 %v1778, 64
  %v1781 = vpop.permute.xlu0 %1780
  %v1783 = vadd.f32 %v1777, %v1781
  %v1784 = vtanh.pop %v1783
  %v1785 = vmul.f32 %v1776, %v1784
  %1787 = vrot.lane.b32.xlu0 %v1785, 64
  %v1788 = vpop.permute.xlu0 %1787
  %1790 = vst.msk [vmem:[%s1521] sm:$0xff] %vm383, %v1788
  %1791 = vst.msk [vmem:[%s1519] sm:$0xff] %vm386, %v1788
  %v1792 = vld [vmem:[%s395] sm:$0xff]
  %v1793 = vld [vmem:[%s395 + $0x8] sm:$0xff]
  %v1794 = vld [vmem:[%s390] sm:$0xff]
  %v1795 = vld [vmem:[%s390 + $0x8] sm:$0xff]
  %v1796 = vsel %vm54, %v1792, %v1794
  %v1797 = vsel %vm55, %v1793, %v1795
  %v1798 = vpack.c.bf16 %v1785, %v1785
  %1800 = vrot.lane.b32.xlu0 %v1798, 64
  %v1801 = vpop.permute.xlu0 %1800
  %v1803 = vsel %vm152, %v1801, 0
  %1805 = vmatprep.subr.bf16.mxu0 %v1249
  %1806 = vmatpush1.bf16.msra.mxu0 %v1248
  %1807 = vmatprep.subr.bf16.mxu0 %v1251
  %1808 = vmatpush1.bf16.msra.mxu0 %v1250
  %1809 = vmatprep.subr.bf16.mxu0 %v1253
  %1810 = vmatpush1.bf16.msra.mxu0 %v1252
  %1811 = vmatprep.subr.bf16.mxu0 %v1255
  %1812 = vmatpush1.bf16.msra.mxu0 %v1254
  %1813 = vmatprep.subr.bf16.mxu0 0
  %1814 = vmatpush1.bf16.msra.mxu0 0
  %1815 = vmatprep.subr.bf16.mxu0 0
  %1816 = vmatpush1.bf16.msra.mxu0 0
  %1817 = vmatprep.subr.bf16.mxu0 0
  %1818 = vmatpush1.bf16.msra.mxu0 0
  %1819 = vmatprep.subr.bf16.mxu0 0
  %1820 = vmatpush1.bf16.msra.mxu0 0
  %1821 = vmatprep.subr.bf16.mxu0 0
  %1822 = vmatpush1.bf16.msra.mxu0 0
  %1823 = vmatprep.subr.bf16.mxu0 0
  %1824 = vmatpush1.bf16.msra.mxu0 0
  %1825 = vmatprep.subr.bf16.mxu0 0
  %1826 = vmatpush1.bf16.msra.mxu0 0
  %1827 = vmatprep.subr.bf16.mxu0 0
  %1828 = vmatpush1.bf16.msra.mxu0 0
  %1829 = vmatprep.subr.bf16.mxu0 0
  %1830 = vmatpush1.bf16.msra.mxu0 0
  %1831 = vmatprep.subr.bf16.mxu0 0
  %1832 = vmatpush1.bf16.msra.mxu0 0
  %1833 = vmatprep.subr.bf16.mxu0 0
  %1834 = vmatpush1.bf16.msra.mxu0 0
  %1835 = vmatprep.subr.bf16.mxu0 0
  %1836 = vmatpush1.bf16.msra.mxu0 0
  %1837 = vmatprep.mubr.bf16.mxu0 0
  %1838 = vmatmul.mubr.bf16.gmra.mrb[0].mxu0 %v1803
  %v1839 = vpop.f32.mrb[0].mxu0
  %v1840 = vadd.f32 0.0, %v1839
  %v1841 = vpop.f32.mrb[0].mxu0
  %v1842 = vadd.f32 0.0, %v1841
  %v1843 = vpop.f32.mrb[0].mxu0
  %v1844 = vpop.f32.mrb[0].mxu0
  %1845 = vdwg.mxu0
  %v1846 = vadd.f32 %v1796, %v1840
  %v1847 = vadd.f32 %v1797, %v1842
  %v1848 = vxor.u32 %v1846, 2147483648
  %v1849 = vxor.u32 %v1847, 2147483648
  %v1850 = vmul.f32 %v1848, 1.442695
  %v1851 = vpow.pop %v1850
  %v1852 = vmul.f32 %v1849, 1.442695
  %v1853 = vpow.pop %v1852
  %v1854 = vadd.f32 %v1851, 1.0
  %v1855 = vadd.f32 %v1853, 1.0
  %v1856 = vrcp.pop %v1854
  %v1857 = vmul.f32 1.0, %v1856
  %v1858 = vrcp.pop %v1855
  %v1859 = vmul.f32 1.0, %v1858
  %v1860 = vmul.f32 %v1857, 2.0
  %v1861 = vmul.f32 %v1859, 2.0
  %v1862 = vsub.f32 %v1860, 1.0
  %v1863 = vsub.f32 %v1861, 1.0
  %v1864 = vsel %vm28, %v1862, %v1857
  %v1865 = vsel %vm29, %v1863, %v1859
  %v1866 = vmul.f32 %v1864, %v1783
  %v1867 = vmul.f32 %v1864, %v1865
  %1869 = vrot.lane.b32.xlu0 %v1867, 64
  %v1870 = vpop.permute.xlu0 %1869
  %v1872 = vadd.f32 %v1866, %v1870
  %v1873 = vtanh.pop %v1872
  %v1874 = vmul.f32 %v1865, %v1873
  %1876 = vrot.lane.b32.xlu0 %v1874, 64
  %v1877 = vpop.permute.xlu0 %1876
  %1879 = vst.msk [vmem:[%s1430] sm:$0xff] %vm383, %v1877
  %1880 = vst.msk [vmem:[%s1428] sm:$0xff] %vm386, %v1877
  %v1881 = vld [vmem:[%s261] sm:$0xff]
  %v1882 = vld [vmem:[%s261 + $0x8] sm:$0xff]
  %v1883 = vld [vmem:[%s256] sm:$0xff]
  %v1884 = vld [vmem:[%s256 + $0x8] sm:$0xff]
  %v1885 = vsel %vm54, %v1881, %v1883
  %v1886 = vsel %vm55, %v1882, %v1884
  %v1887 = vpack.c.bf16 %v1874, %v1874
  %1889 = vrot.lane.b32.xlu0 %v1887, 64
  %v1890 = vpop.permute.xlu0 %1889
  %v1892 = vsel %vm152, %v1890, 0
  %1894 = vmatprep.subr.bf16.mxu0 %v1249
  %1895 = vmatpush1.bf16.msra.mxu0 %v1248
  %1896 = vmatprep.subr.bf16.mxu0 %v1251
  %1897 = vmatpush1.bf16.msra.mxu0 %v1250
  %1898 = vmatprep.subr.bf16.mxu0 %v1253
  %1899 = vmatpush1.bf16.msra.mxu0 %v1252
  %1900 = vmatprep.subr.bf16.mxu0 %v1255
  %1901 = vmatpush1.bf16.msra.mxu0 %v1254
  %1902 = vmatprep.subr.bf16.mxu0 0
  %1903 = vmatpush1.bf16.msra.mxu0 0
  %1904 = vmatprep.subr.bf16.mxu0 0
  %1905 = vmatpush1.bf16.msra.mxu0 0
  %1906 = vmatprep.subr.bf16.mxu0 0
  %1907 = vmatpush1.bf16.msra.mxu0 0
  %1908 = vmatprep.subr.bf16.mxu0 0
  %1909 = vmatpush1.bf16.msra.mxu0 0
  %1910 = vmatprep.subr.bf16.mxu0 0
  %1911 = vmatpush1.bf16.msra.mxu0 0
  %1912 = vmatprep.subr.bf16.mxu0 0
  %1913 = vmatpush1.bf16.msra.mxu0 0
  %1914 = vmatprep.subr.bf16.mxu0 0
  %1915 = vmatpush1.bf16.msra.mxu0 0
  %1916 = vmatprep.subr.bf16.mxu0 0
  %1917 = vmatpush1.bf16.msra.mxu0 0
  %1918 = vmatprep.subr.bf16.mxu0 0
  %1919 = vmatpush1.bf16.msra.mxu0 0
  %1920 = vmatprep.subr.bf16.mxu0 0
  %1921 = vmatpush1.bf16.msra.mxu0 0
  %1922 = vmatprep.subr.bf16.mxu0 0
  %1923 = vmatpush1.bf16.msra.mxu0 0
  %1924 = vmatprep.subr.bf16.mxu0 0
  %1925 = vmatpush1.bf16.msra.mxu0 0
  %1926 = vmatprep.mubr.bf16.mxu0 0
  %1927 = vmatmul.mubr.bf16.gmra.mrb[0].mxu0 %v1892
  %v1928 = vpop.f32.mrb[0].mxu0
  %v1929 = vadd.f32 0.0, %v1928
  %v1930 = vpop.f32.mrb[0].mxu0
  %v1931 = vadd.f32 0.0, %v1930
  %v1932 = vpop.f32.mrb[0].mxu0
  %v1933 = vpop.f32.mrb[0].mxu0
  %1934 = vdwg.mxu0
  %v1935 = vadd.f32 %v1885, %v1929
  %v1936 = vadd.f32 %v1886, %v1931
  %v1937 = vxor.u32 %v1935, 2147483648
  %v1938 = vxor.u32 %v1936, 2147483648
  %v1939 = vmul.f32 %v1937, 1.442695
  %v1940 = vpow.pop %v1939
  %v1941 = vmul.f32 %v1938, 1.442695
  %v1942 = vpow.pop %v1941
  %v1943 = vadd.f32 %v1940, 1.0
  %v1944 = vadd.f32 %v1942, 1.0
  %v1945 = vrcp.pop %v1943
  %v1946 = vmul.f32 1.0, %v1945
  %v1947 = vrcp.pop %v1944
  %v1948 = vmul.f32 1.0, %v1947
  %v1949 = vmul.f32 %v1946, 2.0
  %v1950 = vmul.f32 %v1948, 2.0
  %v1951 = vsub.f32 %v1949, 1.0
  %v1952 = vsub.f32 %v1950, 1.0
  %v1953 = vsel %vm28, %v1951, %v1946
  %v1954 = vsel %vm29, %v1952, %v1948
  %v1955 = vmul.f32 %v1953, %v1872
  %v1956 = vmul.f32 %v1953, %v1954
  %1958 = vrot.lane.b32.xlu0 %v1956, 64
  %v1959 = vpop.permute.xlu0 %1958
  %v1961 = vadd.f32 %v1955, %v1959
  %v1962 = vtanh.pop %v1961
  %v1963 = vmul.f32 %v1954, %v1962
  %1965 = vrot.lane.b32.xlu0 %v1963, 64
  %v1966 = vpop.permute.xlu0 %1965
  %1968 = vst.msk [vmem:[%s1339] sm:$0xff] %vm383, %v1966
  %1969 = vst.msk [vmem:[#allocation4] sm:$0xff] %vm386, %v1966
  %v1970 = vld [vmem:[#allocation4 + $0x38] sm:$0xff]
  %v1971 = vpack.c.bf16 %v1970, %v1970
  %v1972 = vld [vmem:[%s3] sm:$0xf]
  %v1973 = vld [vmem:[%s3 + $0x4] sm:$0xf]
  %v1974 = vld [vmem:[%s3 + $0x8] sm:$0xf]
  %v1975 = vld [vmem:[%s3 + $0xc] sm:$0xf]
  %v1976 = vld [vmem:[%s3 + $0x10] sm:$0xf]
  %v1977 = vld [vmem:[%s3 + $0x14] sm:$0xf]
  %v1978 = vld [vmem:[%s3 + $0x18] sm:$0xf]
  %v1979 = vld [vmem:[%s3 + $0x1c] sm:$0xf]
  %v1980 = vld [vmem:[%s4] sm:$0x1]
  %v1982 = vlaneseq
  %v1983 = vshrl.u32 %v1982, 7
  %v1984 = vsub.s32 0, %v1983
  %v1985 = vrot.slane %v1980, %v1984
  %v1995 = vunpack.c.l.b16 %v1972
  %v1996 = vunpack.c.l.b16 %v1973
  %v1997 = vunpack.c.l.b16 %v1974
  %v1998 = vunpack.c.l.b16 %v1975
  %v1999 = vunpack.c.l.b16 %v1976
  %v2000 = vunpack.c.l.b16 %v1977
  %v2001 = vunpack.c.l.b16 %v1978
  %v2002 = vunpack.c.l.b16 %v1979
  %v2003 = vpack.c.b16 %v1996, %v1995
  %v2004 = vpack.c.b16 %v1998, %v1997
  %v2005 = vpack.c.b16 %v2000, %v1999
  %v2006 = vpack.c.b16 %v2002, %v2001
  %v2012 = vsel %vm152, %v1971, 0
  %2014 = vmatprep.subr.bf16.mxu0 0
  %2015 = vmatpush1.bf16.msra.mxu0 %v2003
  %2016 = vmatprep.subr.bf16.mxu0 0
  %2017 = vmatpush1.bf16.msra.mxu0 %v2004
  %2018 = vmatprep.subr.bf16.mxu0 0
  %2019 = vmatpush1.bf16.msra.mxu0 %v2005
  %2020 = vmatprep.subr.bf16.mxu0 0
  %2021 = vmatpush1.bf16.msra.mxu0 %v2006
  %2022 = vmatprep.subr.bf16.mxu0 0
  %2023 = vmatpush1.bf16.msra.mxu0 0
  %2024 = vmatprep.subr.bf16.mxu0 0
  %2025 = vmatpush1.bf16.msra.mxu0 0
  %2026 = vmatprep.subr.bf16.mxu0 0
  %2027 = vmatpush1.bf16.msra.mxu0 0
  %2028 = vmatprep.subr.bf16.mxu0 0
  %2029 = vmatpush1.bf16.msra.mxu0 0
  %2030 = vmatprep.subr.bf16.mxu0 0
  %2031 = vmatpush1.bf16.msra.mxu0 0
  %2032 = vmatprep.subr.bf16.mxu0 0
  %2033 = vmatpush1.bf16.msra.mxu0 0
  %2034 = vmatprep.subr.bf16.mxu0 0
  %2035 = vmatpush1.bf16.msra.mxu0 0
  %2036 = vmatprep.subr.bf16.mxu0 0
  %2037 = vmatpush1.bf16.msra.mxu0 0
  %2038 = vmatprep.subr.bf16.mxu0 0
  %2039 = vmatpush1.bf16.msra.mxu0 0
  %2040 = vmatprep.subr.bf16.mxu0 0
  %2041 = vmatpush1.bf16.msra.mxu0 0
  %2042 = vmatprep.subr.bf16.mxu0 0
  %2043 = vmatpush1.bf16.msra.mxu0 0
  %2044 = vmatprep.subr.bf16.mxu0 0
  %2045 = vmatpush1.bf16.msra.mxu0 0
  %2046 = vmatprep.mubr.bf16.mxu0 0
  %2047 = vmatmul.mubr.bf16.gmra.mrb[0].mxu0 %v2012
  %v2048 = vpop.f32.mrb[0].mxu0
  %v2049 = vadd.f32 %v1985, %v2048
  %v2050 = vpop.f32.mrb[0].mxu0
  %v2051 = vpop.f32.mrb[0].mxu0
  %v2052 = vpop.f32.mrb[0].mxu0
  %2053 = vdwg.mxu0
  %vm2054 = vcmask 31744
  %2055 = vst.msk [vmem:[%s5] sm:$0xff] %vm2054, %v2049
  // Predicated region
  $region22: #{bilstm_forward.1} parent=0 // pred_check
    _
  $region23: #{bilstm_forward.1} parent=0 // pred_check_branch
    %2057 = sbr.rel (0) target = $region25
  $region24: #{bilstm_forward.1} parent=0 // pred_region
    _
  $region25: #{bilstm_forward.1} parent=0 // pred_fallthru
    _
  // Predicated region
  $region26: #{bilstm_forward.1} parent=0 // pred_check
    _
  $region27: #{bilstm_forward.1} parent=0 // pred_check_branch
    %2059 = sbr.rel (0) target = $region29
  $region28: #{bilstm_forward.1} parent=0 // pred_region
    _
  $region29: #{bilstm_forward.1} parent=0 // pred_fallthru
    _

</llo_original>
